<compile_context>
chip_gen: v7x
topology: tpu7x:2x2x1
jax: 0.10.0
libtpu: 0.0.40
codegen_flags: <defaults>
</compile_context>

<pallas_src>
import functools
import math

import jax
import jax.numpy as jnp
from jax.experimental import pallas as pl
from jax.experimental.pallas import tpu as pltpu

# ----------------------------- synthetic config ------------------------------
VOCAB = 100
MAX_POS = 32
TYPE_VOCAB = 2
HIDDEN = 32
N_LAYERS = 2
N_HEADS = 4
HEAD_DIM = HIDDEN // N_HEADS
INTERMEDIATE = 64
LN_EPS = 1e-12
NEG_INF = -1e9
DROPOUT_RATE = 0.1  # hidden_dropout_prob (identity in eval mode)


def full_spec(shape):
    n = len(shape)
    return pl.BlockSpec(shape, lambda i, _n=n: (0,) * _n)


# ------------------------------ fused kernel ----------------------------------
def _fused_forward_kernel(
    x_ref, bias_ref,
    ln1_g_ref, ln1_b_ref, qkv_w_ref, qkv_b_ref, ao_w_ref, ao_b_ref,
    ln2_g_ref, ln2_b_ref, i_w_ref, i_b_ref, o_w_ref, o_b_ref,
    fln_g_ref, fln_b_ref, ww_ref, wb_ref, cw_ref, cb_ref,
    o_ref, *, batch, seq):
    B, S, H = batch, seq, HIDDEN
    scale = 1.0 / math.sqrt(HEAD_DIM)
    inv_sqrt2 = 1.0 / math.sqrt(2.0)

    def layer_norm(x, g, b):
        mu = jnp.mean(x, axis=-1, keepdims=True)
        var = jnp.mean(jnp.square(x - mu), axis=-1, keepdims=True)
        return (x - mu) * jax.lax.rsqrt(var + LN_EPS) * g + b

    h = x_ref[...]                              # (B*S, H)  summed embeddings
    # Hoist the (B,1,S) key-mask broadcast out of BOTH loops: JAX does not CSE
    # broadcast_in_dim, so doing it per head would emit N_LAYERS*N_HEADS copies.
    bias_b = bias_ref[...][:, None, :]          # (B, 1, S)

    for l in range(N_LAYERS):
        # --------------- pre-LN self-attention + residual --------------------
        ln1 = layer_norm(h, ln1_g_ref[l], ln1_b_ref[l])
        # fused Q|K|V projection: one (B*S,H)x(H,3H) MXU pass instead of three
        qkv = (jnp.dot(ln1, qkv_w_ref[l], preferred_element_type=jnp.float32)
               + qkv_b_ref[l])                                   # (B*S, 3H)
        ao_w = ao_w_ref[l]                                       # (H, H)
        attn = None
        for hd in range(N_HEADS):
            lo = hd * HEAD_DIM
            hi = lo + HEAD_DIM
            q = qkv[:, lo:hi].reshape(B, S, HEAD_DIM)
            k = qkv[:, H + lo:H + hi].reshape(B, S, HEAD_DIM)
            v = qkv[:, 2 * H + lo:2 * H + hi].reshape(B, S, HEAD_DIM)
            s = (jnp.einsum('bqd,bkd->bqk', q, k,
                            preferred_element_type=jnp.float32) * scale
                 + bias_b)                                       # (B, S, S)
            m = jnp.max(s, axis=-1, keepdims=True)
            e = jnp.exp(s - m)
            p = e * pl.reciprocal(jnp.sum(e, axis=-1, keepdims=True), approx=True)
            ctx = jnp.einsum('bqk,bkd->bqd', p, v,
                             preferred_element_type=jnp.float32)  # (B, S, Dh)
            # fold this head's context straight into the output projection
            part = jnp.dot(ctx.reshape(B * S, HEAD_DIM), ao_w[lo:hi, :],
                           preferred_element_type=jnp.float32)
            attn = part if attn is None else attn + part
        h = attn + ao_b_ref[l] + h                               # residual

        # --------------- pre-LN feed-forward + residual ----------------------
        ln2 = layer_norm(h, ln2_g_ref[l], ln2_b_ref[l])
        inter = (jnp.dot(ln2, i_w_ref[l], preferred_element_type=jnp.float32)
                 + i_b_ref[l])
        # exact (erf-based) GELU, matching PyTorch / HF MegatronBert default
        inter = 0.5 * inter * (1.0 + jax.lax.erf(inter * inv_sqrt2))
        h = (jnp.dot(inter, o_w_ref[l], preferred_element_type=jnp.float32)
             + o_b_ref[l] + h)

    # --------------- encoder final LayerNorm ---------------------------------
    h = layer_norm(h, fln_g_ref[...], fln_b_ref[...])

    # --------------- weighting -> softmax(seq) pooling -> classifier ---------
    h3 = h.reshape(B, S, H)
    w = jnp.sum(h3 * ww_ref[...], axis=-1) + wb_ref[...]         # (B, S)
    m = jnp.max(w, axis=-1, keepdims=True)
    e = jnp.exp(w - m)
    probs = e * pl.reciprocal(jnp.sum(e, axis=-1, keepdims=True), approx=True)
    pooled = jnp.sum(probs[:, :, None] * h3, axis=1)             # (B, H)
    # dropout is identity in eval mode
    o_ref[...] = (jnp.dot(pooled, cw_ref[...], preferred_element_type=jnp.float32)
                  + cb_ref[...])                                 # (B, 2)


# ------------------------------ model wrapper ---------------------------------
def forward(input_ids, attention_mask, params, labels=None):
    B, S = input_ids.shape
    # Embedding gathers are glue (plain JAX); MegatronBert has no embedding LN.
    emb = (params["word_emb"][input_ids]
           + params["pos_emb"][jnp.arange(S)][None, :, :]
           + params["type_emb"][jnp.zeros((B, S), jnp.int32)])
    x = emb.reshape(B * S, HIDDEN).astype(jnp.float32)
    # additive mask bias per (batch, key); broadcast across heads inside the kernel
    bias = (1.0 - attention_mask.astype(jnp.float32)) * NEG_INF  # (B, S)

    inputs = [
        x, bias,
        params["ln1_g"], params["ln1_b"], params["qkv_w"], params["qkv_b"],
        params["ao_w"], params["ao_b"], params["ln2_g"], params["ln2_b"],
        params["i_w"], params["i_b"], params["o_w"], params["o_b"],
        params["final_ln_g"], params["final_ln_b"],
        params["w_weight"], params["w_bias"],
        params["clf_weight"], params["clf_bias"],
    ]
    kern = functools.partial(_fused_forward_kernel, batch=B, seq=S)
    # Entire live set (~30 KB weights + ~10 KB activations) fits trivially in VMEM
    # on v5e/v6e/v7x; raise vmem_limit_bytes only if scaled to real prokbert dims.
    logits = pl.pallas_call(
        kern,
        grid=(1,),
        in_specs=[full_spec(a.shape) for a in inputs],
        out_specs=full_spec((B, 2)),
        out_shape=jax.ShapeDtypeStruct((B, 2), jnp.float32),
        compiler_params=pltpu.CompilerParams(
            dimension_semantics=("arbitrary",)),
    )(*inputs)

    output = {"logits": logits}
    if labels is not None:
        logp = jax.nn.log_softmax(logits.reshape(-1, 2), axis=-1)
        nll = -jnp.take_along_axis(logp, labels.reshape(-1, 1), axis=-1)
        output["loss"] = jnp.mean(nll)
    return output


# ----------------------------- parameter creation -----------------------------
def init_params(key):
    keys = iter(jax.random.split(key, 64))

    def nrm(shape):
        return (0.02 * jax.random.normal(next(keys), shape)).astype(jnp.float32)

    L = N_LAYERS
    return {
        "word_emb": nrm((VOCAB, HIDDEN)),
        "pos_emb": nrm((MAX_POS, HIDDEN)),
        "type_emb": nrm((TYPE_VOCAB, HIDDEN)),
        # per-layer weights stacked along a leading layer axis
        "ln1_g": jnp.ones((L, 1, HIDDEN), jnp.float32),
        "ln1_b": jnp.zeros((L, 1, HIDDEN), jnp.float32),
        "qkv_w": nrm((L, HIDDEN, 3 * HIDDEN)),          # fused Q|K|V projection
        "qkv_b": jnp.zeros((L, 1, 3 * HIDDEN), jnp.float32),
        "ao_w": nrm((L, HIDDEN, HIDDEN)),
        "ao_b": jnp.zeros((L, 1, HIDDEN), jnp.float32),
        "ln2_g": jnp.ones((L, 1, HIDDEN), jnp.float32),
        "ln2_b": jnp.zeros((L, 1, HIDDEN), jnp.float32),
        "i_w": nrm((L, HIDDEN, INTERMEDIATE)),
        "i_b": jnp.zeros((L, 1, INTERMEDIATE), jnp.float32),
        "o_w": nrm((L, INTERMEDIATE, HIDDEN)),
        "o_b": jnp.zeros((L, 1, HIDDEN), jnp.float32),
        "final_ln_g": jnp.ones((1, HIDDEN), jnp.float32),
        "final_ln_b": jnp.zeros((1, HIDDEN), jnp.float32),
        # weighting_layer = nn.Linear(hidden_size, 1), weight stored (1, H)
        "w_weight": nrm((1, HIDDEN)),
        "w_bias": jnp.zeros((1, 1), jnp.float32),
        # classifier = nn.Linear(hidden_size, 2), stored transposed (H, 2) for x @ W
        "clf_weight": nrm((HIDDEN, 2)),
        "clf_bias": jnp.zeros((1, 2), jnp.float32),
    }


# ------------------------------------ main ------------------------------------
if __name__ == "__main__":
    key = jax.random.PRNGKey(0)
    pkey, ikey, lkey = jax.random.split(key, 3)
    params = init_params(pkey)

    B, S = 2, 8
    input_ids = jax.random.randint(ikey, (B, S), 0, VOCAB, dtype=jnp.int32)
    attention_mask = jnp.ones((B, S), jnp.int32)
    labels = jax.random.randint(lkey, (B,), 0, 2, dtype=jnp.int32)

    out = forward(input_ids, attention_mask, params, labels=labels)
    logits = jax.block_until_ready(out["logits"])
    loss = jax.block_until_ready(out["loss"])

    assert logits.shape == (B, 2) and logits.dtype == jnp.float32
    assert loss.shape == ()
    assert bool(jnp.all(jnp.isfinite(logits))) and bool(jnp.isfinite(loss))
    # TODO(synk): dropout layers are identity (inference mode); no stochastic path here.
    print("KERNEL_OK")
</pallas_src>

<mosaic_0001>
module attributes {stable_mosaic.version = 11 : i64} {
  func.func @_fused_forward_kernel(%arg0: i32, %arg1: memref<16x32xf32, #tpu.memory_space<vmem>>, %arg2: memref<2x8xf32, #tpu.memory_space<vmem>>, %arg3: memref<2x1x32xf32, #tpu.memory_space<vmem>>, %arg4: memref<2x1x32xf32, #tpu.memory_space<vmem>>, %arg5: memref<2x32x96xf32, #tpu.memory_space<vmem>>, %arg6: memref<2x1x96xf32, #tpu.memory_space<vmem>>, %arg7: memref<2x32x32xf32, #tpu.memory_space<vmem>>, %arg8: memref<2x1x32xf32, #tpu.memory_space<vmem>>, %arg9: memref<2x1x32xf32, #tpu.memory_space<vmem>>, %arg10: memref<2x1x32xf32, #tpu.memory_space<vmem>>, %arg11: memref<2x32x64xf32, #tpu.memory_space<vmem>>, %arg12: memref<2x1x64xf32, #tpu.memory_space<vmem>>, %arg13: memref<2x64x32xf32, #tpu.memory_space<vmem>>, %arg14: memref<2x1x32xf32, #tpu.memory_space<vmem>>, %arg15: memref<1x32xf32, #tpu.memory_space<vmem>>, %arg16: memref<1x32xf32, #tpu.memory_space<vmem>>, %arg17: memref<1x32xf32, #tpu.memory_space<vmem>>, %arg18: memref<1x1xf32, #tpu.memory_space<vmem>>, %arg19: memref<32x2xf32, #tpu.memory_space<vmem>>, %arg20: memref<1x2xf32, #tpu.memory_space<vmem>>, %arg21: memref<2x2xf32, #tpu.memory_space<vmem>>) attributes {dimension_semantics = [#tpu.dimension_semantics<arbitrary>], iteration_bounds = array<i64: 1>, scalar_prefetch = 0 : i64, scratch_operands = 0 : i64, tpu.core_type = #tpu.core_type<tc>, window_params = [{pipeline_mode = #tpu.pipeline_mode<synchronous>, transform_indices = @transform_0, window_bounds = array<i64: 16, 32>}, {pipeline_mode = #tpu.pipeline_mode<synchronous>, transform_indices = @transform_1, window_bounds = array<i64: 2, 8>}, {pipeline_mode = #tpu.pipeline_mode<synchronous>, transform_indices = @transform_2, window_bounds = array<i64: 2, 1, 32>}, {pipeline_mode = #tpu.pipeline_mode<synchronous>, transform_indices = @transform_3, window_bounds = array<i64: 2, 1, 32>}, {pipeline_mode = #tpu.pipeline_mode<synchronous>, transform_indices = @transform_4, window_bounds = array<i64: 2, 32, 96>}, {pipeline_mode = #tpu.pipeline_mode<synchronous>, transform_indices = @transform_5, window_bounds = array<i64: 2, 1, 96>}, {pipeline_mode = #tpu.pipeline_mode<synchronous>, transform_indices = @transform_6, window_bounds = array<i64: 2, 32, 32>}, {pipeline_mode = #tpu.pipeline_mode<synchronous>, transform_indices = @transform_7, window_bounds = array<i64: 2, 1, 32>}, {pipeline_mode = #tpu.pipeline_mode<synchronous>, transform_indices = @transform_8, window_bounds = array<i64: 2, 1, 32>}, {pipeline_mode = #tpu.pipeline_mode<synchronous>, transform_indices = @transform_9, window_bounds = array<i64: 2, 1, 32>}, {pipeline_mode = #tpu.pipeline_mode<synchronous>, transform_indices = @transform_10, window_bounds = array<i64: 2, 32, 64>}, {pipeline_mode = #tpu.pipeline_mode<synchronous>, transform_indices = @transform_11, window_bounds = array<i64: 2, 1, 64>}, {pipeline_mode = #tpu.pipeline_mode<synchronous>, transform_indices = @transform_12, window_bounds = array<i64: 2, 64, 32>}, {pipeline_mode = #tpu.pipeline_mode<synchronous>, transform_indices = @transform_13, window_bounds = array<i64: 2, 1, 32>}, {pipeline_mode = #tpu.pipeline_mode<synchronous>, transform_indices = @transform_14, window_bounds = array<i64: 1, 32>}, {pipeline_mode = #tpu.pipeline_mode<synchronous>, transform_indices = @transform_15, window_bounds = array<i64: 1, 32>}, {pipeline_mode = #tpu.pipeline_mode<synchronous>, transform_indices = @transform_16, window_bounds = array<i64: 1, 32>}, {pipeline_mode = #tpu.pipeline_mode<synchronous>, transform_indices = @transform_17, window_bounds = array<i64: 1, 1>}, {pipeline_mode = #tpu.pipeline_mode<synchronous>, transform_indices = @transform_18, window_bounds = array<i64: 32, 2>}, {pipeline_mode = #tpu.pipeline_mode<synchronous>, transform_indices = @transform_19, window_bounds = array<i64: 1, 2>}, {pipeline_mode = #tpu.pipeline_mode<synchronous>, transform_indices = @transform_20, window_bounds = array<i64: 2, 2>}]} {
    %c0 = arith.constant 0 : index
    %c0_0 = arith.constant 0 : index
    %0 = vector.load %arg1[%c0, %c0_0] : memref<16x32xf32, #tpu.memory_space<vmem>>, vector<16x32xf32>
    %c0_1 = arith.constant 0 : index
    %c0_2 = arith.constant 0 : index
    %1 = vector.load %arg2[%c0_1, %c0_2] : memref<2x8xf32, #tpu.memory_space<vmem>>, vector<2x8xf32>
    %2 = vector.shape_cast %1 : vector<2x8xf32> to vector<2x1x8xf32>
    %c0_3 = arith.constant 0 : index
    %c0_4 = arith.constant 0 : index
    %c0_5 = arith.constant 0 : index
    %3 = vector.load %arg3[%c0_3, %c0_4, %c0_5] : memref<2x1x32xf32, #tpu.memory_space<vmem>>, vector<1x1x32xf32>
    %4 = vector.shape_cast %3 : vector<1x1x32xf32> to vector<1x32xf32>
    %c0_6 = arith.constant 0 : index
    %c0_7 = arith.constant 0 : index
    %c0_8 = arith.constant 0 : index
    %5 = vector.load %arg4[%c0_6, %c0_7, %c0_8] : memref<2x1x32xf32, #tpu.memory_space<vmem>>, vector<1x1x32xf32>
    %6 = vector.shape_cast %5 : vector<1x1x32xf32> to vector<1x32xf32>
    %cst = arith.constant dense<0.000000e+00> : vector<16xf32>
    %7 = vector.multi_reduction <add>, %0, %cst [1] : vector<16x32xf32> to vector<16xf32>
    %8 = vector.shape_cast %7 : vector<16xf32> to vector<16x1xf32>
    %cst_9 = arith.constant 3.200000e+01 : f32
    %9 = vector.broadcast %cst_9 : f32 to vector<16x1xf32>
    %10 = arith.divf %8, %9 : vector<16x1xf32>
    %11 = vector.broadcast %10 : vector<16x1xf32> to vector<16x32xf32>
    %12 = arith.subf %0, %11 : vector<16x32xf32>
    %13 = arith.mulf %12, %12 : vector<16x32xf32>
    %cst_10 = arith.constant dense<0.000000e+00> : vector<16xf32>
    %14 = vector.multi_reduction <add>, %13, %cst_10 [1] : vector<16x32xf32> to vector<16xf32>
    %15 = vector.shape_cast %14 : vector<16xf32> to vector<16x1xf32>
    %cst_11 = arith.constant 3.200000e+01 : f32
    %16 = vector.broadcast %cst_11 : f32 to vector<16x1xf32>
    %17 = arith.divf %15, %16 : vector<16x1xf32>
    %18 = vector.broadcast %10 : vector<16x1xf32> to vector<16x32xf32>
    %19 = arith.subf %0, %18 : vector<16x32xf32>
    %cst_12 = arith.constant 9.99999996E-13 : f32
    %20 = vector.broadcast %cst_12 : f32 to vector<16x1xf32>
    %21 = arith.addf %17, %20 : vector<16x1xf32>
    %22 = math.rsqrt %21 : vector<16x1xf32>
    %23 = vector.broadcast %22 : vector<16x1xf32> to vector<16x32xf32>
    %24 = arith.mulf %19, %23 : vector<16x32xf32>
    %25 = vector.broadcast %4 : vector<1x32xf32> to vector<16x32xf32>
    %26 = arith.mulf %24, %25 : vector<16x32xf32>
    %27 = vector.broadcast %6 : vector<1x32xf32> to vector<16x32xf32>
    %28 = arith.addf %26, %27 : vector<16x32xf32>
    %c0_13 = arith.constant 0 : index
    %c0_14 = arith.constant 0 : index
    %c0_15 = arith.constant 0 : index
    %29 = vector.load %arg5[%c0_13, %c0_14, %c0_15] : memref<2x32x96xf32, #tpu.memory_space<vmem>>, vector<1x32x96xf32>
    %30 = vector.shape_cast %29 : vector<1x32x96xf32> to vector<32x96xf32>
    %cst_16 = arith.constant dense<0.000000e+00> : vector<16x96xf32>
    %31 = tpu.matmul %28, %30, %cst_16 {dimension_numbers = #tpu.dot_dimension_numbers<[1], [0], [0], [1], [0, 0, 1, 1], [], []>} : vector<16x32xf32>, vector<32x96xf32>, vector<16x96xf32> -> vector<16x96xf32>
    %c0_17 = arith.constant 0 : index
    %c0_18 = arith.constant 0 : index
    %c0_19 = arith.constant 0 : index
    %32 = vector.load %arg6[%c0_17, %c0_18, %c0_19] : memref<2x1x96xf32, #tpu.memory_space<vmem>>, vector<1x1x96xf32>
    %33 = vector.shape_cast %32 : vector<1x1x96xf32> to vector<1x96xf32>
    %34 = vector.broadcast %33 : vector<1x96xf32> to vector<16x96xf32>
    %35 = arith.addf %31, %34 : vector<16x96xf32>
    %c0_20 = arith.constant 0 : index
    %c0_21 = arith.constant 0 : index
    %c0_22 = arith.constant 0 : index
    %36 = vector.load %arg7[%c0_20, %c0_21, %c0_22] : memref<2x32x32xf32, #tpu.memory_space<vmem>>, vector<1x32x32xf32>
    %37 = vector.shape_cast %36 : vector<1x32x32xf32> to vector<32x32xf32>
    %38 = vector.extract_strided_slice %35 {offsets = [0, 0], sizes = [16, 8], strides = [1, 1]} : vector<16x96xf32> to vector<16x8xf32>
    %39 = vector.shape_cast %38 : vector<16x8xf32> to vector<2x8x8xf32>
    %40 = vector.extract_strided_slice %35 {offsets = [0, 32], sizes = [16, 8], strides = [1, 1]} : vector<16x96xf32> to vector<16x8xf32>
    %41 = vector.shape_cast %40 : vector<16x8xf32> to vector<2x8x8xf32>
    %42 = vector.extract_strided_slice %35 {offsets = [0, 64], sizes = [16, 8], strides = [1, 1]} : vector<16x96xf32> to vector<16x8xf32>
    %43 = vector.shape_cast %42 : vector<16x8xf32> to vector<2x8x8xf32>
    "tpu.trace_start"() <{level = 10 : i32, message = "bqd,bkd->bqk"}> : () -> ()
    %cst_23 = arith.constant dense<0.000000e+00> : vector<2x8x8xf32>
    %44 = tpu.matmul %39, %41, %cst_23 {dimension_numbers = #tpu.dot_dimension_numbers<[2], [2], [1], [1], [0, 0, 0, 1, 1, 1], [0], [0]>} : vector<2x8x8xf32>, vector<2x8x8xf32>, vector<2x8x8xf32> -> vector<2x8x8xf32>
    "tpu.trace_stop"() : () -> ()
    %cst_24 = arith.constant 0.353553385 : f32
    %45 = vector.broadcast %cst_24 : f32 to vector<2x8x8xf32>
    %46 = arith.mulf %44, %45 : vector<2x8x8xf32>
    %47 = vector.broadcast %2 : vector<2x1x8xf32> to vector<2x8x8xf32>
    %48 = arith.addf %46, %47 : vector<2x8x8xf32>
    %cst_25 = arith.constant dense<0xFF800000> : vector<2x8xf32>
    %49 = vector.multi_reduction <maximumf>, %48, %cst_25 [2] : vector<2x8x8xf32> to vector<2x8xf32>
    %50 = vector.shape_cast %49 : vector<2x8xf32> to vector<2x8x1xf32>
    %51 = vector.broadcast %50 : vector<2x8x1xf32> to vector<2x8x8xf32>
    %52 = arith.subf %48, %51 : vector<2x8x8xf32>
    %53 = math.exp %52 : vector<2x8x8xf32>
    %cst_26 = arith.constant dense<0.000000e+00> : vector<2x8xf32>
    %54 = vector.multi_reduction <add>, %53, %cst_26 [2] : vector<2x8x8xf32> to vector<2x8xf32>
    %55 = vector.shape_cast %54 : vector<2x8xf32> to vector<2x8x1xf32>
    %56 = tpu.reciprocal %55 {approx = true} : vector<2x8x1xf32> -> vector<2x8x1xf32>
    %57 = vector.broadcast %56 : vector<2x8x1xf32> to vector<2x8x8xf32>
    %58 = arith.mulf %53, %57 : vector<2x8x8xf32>
    "tpu.trace_start"() <{level = 10 : i32, message = "bqk,bkd->bqd"}> : () -> ()
    %cst_27 = arith.constant dense<0.000000e+00> : vector<2x8x8xf32>
    %59 = tpu.matmul %58, %43, %cst_27 {dimension_numbers = #tpu.dot_dimension_numbers<[2], [1], [1], [2], [0, 0, 0, 1, 1, 2], [0], [0]>} : vector<2x8x8xf32>, vector<2x8x8xf32>, vector<2x8x8xf32> -> vector<2x8x8xf32>
    "tpu.trace_stop"() : () -> ()
    %60 = vector.shape_cast %59 : vector<2x8x8xf32> to vector<16x8xf32>
    %61 = vector.extract_strided_slice %37 {offsets = [0, 0], sizes = [8, 32], strides = [1, 1]} : vector<32x32xf32> to vector<8x32xf32>
    %cst_28 = arith.constant dense<0.000000e+00> : vector<16x32xf32>
    %62 = tpu.matmul %60, %61, %cst_28 {dimension_numbers = #tpu.dot_dimension_numbers<[1], [0], [0], [1], [0, 0, 1, 1], [], []>} : vector<16x8xf32>, vector<8x32xf32>, vector<16x32xf32> -> vector<16x32xf32>
    %63 = vector.extract_strided_slice %35 {offsets = [0, 8], sizes = [16, 8], strides = [1, 1]} : vector<16x96xf32> to vector<16x8xf32>
    %64 = vector.shape_cast %63 : vector<16x8xf32> to vector<2x8x8xf32>
    %65 = vector.extract_strided_slice %35 {offsets = [0, 40], sizes = [16, 8], strides = [1, 1]} : vector<16x96xf32> to vector<16x8xf32>
    %66 = vector.shape_cast %65 : vector<16x8xf32> to vector<2x8x8xf32>
    %67 = vector.extract_strided_slice %35 {offsets = [0, 72], sizes = [16, 8], strides = [1, 1]} : vector<16x96xf32> to vector<16x8xf32>
    %68 = vector.shape_cast %67 : vector<16x8xf32> to vector<2x8x8xf32>
    "tpu.trace_start"() <{level = 10 : i32, message = "bqd,bkd->bqk"}> : () -> ()
    %cst_29 = arith.constant dense<0.000000e+00> : vector<2x8x8xf32>
    %69 = tpu.matmul %64, %66, %cst_29 {dimension_numbers = #tpu.dot_dimension_numbers<[2], [2], [1], [1], [0, 0, 0, 1, 1, 1], [0], [0]>} : vector<2x8x8xf32>, vector<2x8x8xf32>, vector<2x8x8xf32> -> vector<2x8x8xf32>
    "tpu.trace_stop"() : () -> ()
    %cst_30 = arith.constant 0.353553385 : f32
    %70 = vector.broadcast %cst_30 : f32 to vector<2x8x8xf32>
    %71 = arith.mulf %69, %70 : vector<2x8x8xf32>
    %72 = vector.broadcast %2 : vector<2x1x8xf32> to vector<2x8x8xf32>
    %73 = arith.addf %71, %72 : vector<2x8x8xf32>
    %cst_31 = arith.constant dense<0xFF800000> : vector<2x8xf32>
    %74 = vector.multi_reduction <maximumf>, %73, %cst_31 [2] : vector<2x8x8xf32> to vector<2x8xf32>
    %75 = vector.shape_cast %74 : vector<2x8xf32> to vector<2x8x1xf32>
    %76 = vector.broadcast %75 : vector<2x8x1xf32> to vector<2x8x8xf32>
    %77 = arith.subf %73, %76 : vector<2x8x8xf32>
    %78 = math.exp %77 : vector<2x8x8xf32>
    %cst_32 = arith.constant dense<0.000000e+00> : vector<2x8xf32>
    %79 = vector.multi_reduction <add>, %78, %cst_32 [2] : vector<2x8x8xf32> to vector<2x8xf32>
    %80 = vector.shape_cast %79 : vector<2x8xf32> to vector<2x8x1xf32>
    %81 = tpu.reciprocal %80 {approx = true} : vector<2x8x1xf32> -> vector<2x8x1xf32>
    %82 = vector.broadcast %81 : vector<2x8x1xf32> to vector<2x8x8xf32>
    %83 = arith.mulf %78, %82 : vector<2x8x8xf32>
    "tpu.trace_start"() <{level = 10 : i32, message = "bqk,bkd->bqd"}> : () -> ()
    %cst_33 = arith.constant dense<0.000000e+00> : vector<2x8x8xf32>
    %84 = tpu.matmul %83, %68, %cst_33 {dimension_numbers = #tpu.dot_dimension_numbers<[2], [1], [1], [2], [0, 0, 0, 1, 1, 2], [0], [0]>} : vector<2x8x8xf32>, vector<2x8x8xf32>, vector<2x8x8xf32> -> vector<2x8x8xf32>
    "tpu.trace_stop"() : () -> ()
    %85 = vector.shape_cast %84 : vector<2x8x8xf32> to vector<16x8xf32>
    %86 = vector.extract_strided_slice %37 {offsets = [8, 0], sizes = [8, 32], strides = [1, 1]} : vector<32x32xf32> to vector<8x32xf32>
    %cst_34 = arith.constant dense<0.000000e+00> : vector<16x32xf32>
    %87 = tpu.matmul %85, %86, %cst_34 {dimension_numbers = #tpu.dot_dimension_numbers<[1], [0], [0], [1], [0, 0, 1, 1], [], []>} : vector<16x8xf32>, vector<8x32xf32>, vector<16x32xf32> -> vector<16x32xf32>
    %88 = arith.addf %62, %87 : vector<16x32xf32>
    %89 = vector.extract_strided_slice %35 {offsets = [0, 16], sizes = [16, 8], strides = [1, 1]} : vector<16x96xf32> to vector<16x8xf32>
    %90 = vector.shape_cast %89 : vector<16x8xf32> to vector<2x8x8xf32>
    %91 = vector.extract_strided_slice %35 {offsets = [0, 48], sizes = [16, 8], strides = [1, 1]} : vector<16x96xf32> to vector<16x8xf32>
    %92 = vector.shape_cast %91 : vector<16x8xf32> to vector<2x8x8xf32>
    %93 = vector.extract_strided_slice %35 {offsets = [0, 80], sizes = [16, 8], strides = [1, 1]} : vector<16x96xf32> to vector<16x8xf32>
    %94 = vector.shape_cast %93 : vector<16x8xf32> to vector<2x8x8xf32>
    "tpu.trace_start"() <{level = 10 : i32, message = "bqd,bkd->bqk"}> : () -> ()
    %cst_35 = arith.constant dense<0.000000e+00> : vector<2x8x8xf32>
    %95 = tpu.matmul %90, %92, %cst_35 {dimension_numbers = #tpu.dot_dimension_numbers<[2], [2], [1], [1], [0, 0, 0, 1, 1, 1], [0], [0]>} : vector<2x8x8xf32>, vector<2x8x8xf32>, vector<2x8x8xf32> -> vector<2x8x8xf32>
    "tpu.trace_stop"() : () -> ()
    %cst_36 = arith.constant 0.353553385 : f32
    %96 = vector.broadcast %cst_36 : f32 to vector<2x8x8xf32>
    %97 = arith.mulf %95, %96 : vector<2x8x8xf32>
    %98 = vector.broadcast %2 : vector<2x1x8xf32> to vector<2x8x8xf32>
    %99 = arith.addf %97, %98 : vector<2x8x8xf32>
    %cst_37 = arith.constant dense<0xFF800000> : vector<2x8xf32>
    %100 = vector.multi_reduction <maximumf>, %99, %cst_37 [2] : vector<2x8x8xf32> to vector<2x8xf32>
    %101 = vector.shape_cast %100 : vector<2x8xf32> to vector<2x8x1xf32>
    %102 = vector.broadcast %101 : vector<2x8x1xf32> to vector<2x8x8xf32>
    %103 = arith.subf %99, %102 : vector<2x8x8xf32>
    %104 = math.exp %103 : vector<2x8x8xf32>
    %cst_38 = arith.constant dense<0.000000e+00> : vector<2x8xf32>
    %105 = vector.multi_reduction <add>, %104, %cst_38 [2] : vector<2x8x8xf32> to vector<2x8xf32>
    %106 = vector.shape_cast %105 : vector<2x8xf32> to vector<2x8x1xf32>
    %107 = tpu.reciprocal %106 {approx = true} : vector<2x8x1xf32> -> vector<2x8x1xf32>
    %108 = vector.broadcast %107 : vector<2x8x1xf32> to vector<2x8x8xf32>
    %109 = arith.mulf %104, %108 : vector<2x8x8xf32>
    "tpu.trace_start"() <{level = 10 : i32, message = "bqk,bkd->bqd"}> : () -> ()
    %cst_39 = arith.constant dense<0.000000e+00> : vector<2x8x8xf32>
    %110 = tpu.matmul %109, %94, %cst_39 {dimension_numbers = #tpu.dot_dimension_numbers<[2], [1], [1], [2], [0, 0, 0, 1, 1, 2], [0], [0]>} : vector<2x8x8xf32>, vector<2x8x8xf32>, vector<2x8x8xf32> -> vector<2x8x8xf32>
    "tpu.trace_stop"() : () -> ()
    %111 = vector.shape_cast %110 : vector<2x8x8xf32> to vector<16x8xf32>
    %112 = vector.extract_strided_slice %37 {offsets = [16, 0], sizes = [8, 32], strides = [1, 1]} : vector<32x32xf32> to vector<8x32xf32>
    %cst_40 = arith.constant dense<0.000000e+00> : vector<16x32xf32>
    %113 = tpu.matmul %111, %112, %cst_40 {dimension_numbers = #tpu.dot_dimension_numbers<[1], [0], [0], [1], [0, 0, 1, 1], [], []>} : vector<16x8xf32>, vector<8x32xf32>, vector<16x32xf32> -> vector<16x32xf32>
    %114 = arith.addf %88, %113 : vector<16x32xf32>
    %115 = vector.extract_strided_slice %35 {offsets = [0, 24], sizes = [16, 8], strides = [1, 1]} : vector<16x96xf32> to vector<16x8xf32>
    %116 = vector.shape_cast %115 : vector<16x8xf32> to vector<2x8x8xf32>
    %117 = vector.extract_strided_slice %35 {offsets = [0, 56], sizes = [16, 8], strides = [1, 1]} : vector<16x96xf32> to vector<16x8xf32>
    %118 = vector.shape_cast %117 : vector<16x8xf32> to vector<2x8x8xf32>
    %119 = vector.extract_strided_slice %35 {offsets = [0, 88], sizes = [16, 8], strides = [1, 1]} : vector<16x96xf32> to vector<16x8xf32>
    %120 = vector.shape_cast %119 : vector<16x8xf32> to vector<2x8x8xf32>
    "tpu.trace_start"() <{level = 10 : i32, message = "bqd,bkd->bqk"}> : () -> ()
    %cst_41 = arith.constant dense<0.000000e+00> : vector<2x8x8xf32>
    %121 = tpu.matmul %116, %118, %cst_41 {dimension_numbers = #tpu.dot_dimension_numbers<[2], [2], [1], [1], [0, 0, 0, 1, 1, 1], [0], [0]>} : vector<2x8x8xf32>, vector<2x8x8xf32>, vector<2x8x8xf32> -> vector<2x8x8xf32>
    "tpu.trace_stop"() : () -> ()
    %cst_42 = arith.constant 0.353553385 : f32
    %122 = vector.broadcast %cst_42 : f32 to vector<2x8x8xf32>
    %123 = arith.mulf %121, %122 : vector<2x8x8xf32>
    %124 = vector.broadcast %2 : vector<2x1x8xf32> to vector<2x8x8xf32>
    %125 = arith.addf %123, %124 : vector<2x8x8xf32>
    %cst_43 = arith.constant dense<0xFF800000> : vector<2x8xf32>
    %126 = vector.multi_reduction <maximumf>, %125, %cst_43 [2] : vector<2x8x8xf32> to vector<2x8xf32>
    %127 = vector.shape_cast %126 : vector<2x8xf32> to vector<2x8x1xf32>
    %128 = vector.broadcast %127 : vector<2x8x1xf32> to vector<2x8x8xf32>
    %129 = arith.subf %125, %128 : vector<2x8x8xf32>
    %130 = math.exp %129 : vector<2x8x8xf32>
    %cst_44 = arith.constant dense<0.000000e+00> : vector<2x8xf32>
    %131 = vector.multi_reduction <add>, %130, %cst_44 [2] : vector<2x8x8xf32> to vector<2x8xf32>
    %132 = vector.shape_cast %131 : vector<2x8xf32> to vector<2x8x1xf32>
    %133 = tpu.reciprocal %132 {approx = true} : vector<2x8x1xf32> -> vector<2x8x1xf32>
    %134 = vector.broadcast %133 : vector<2x8x1xf32> to vector<2x8x8xf32>
    %135 = arith.mulf %130, %134 : vector<2x8x8xf32>
    "tpu.trace_start"() <{level = 10 : i32, message = "bqk,bkd->bqd"}> : () -> ()
    %cst_45 = arith.constant dense<0.000000e+00> : vector<2x8x8xf32>
    %136 = tpu.matmul %135, %120, %cst_45 {dimension_numbers = #tpu.dot_dimension_numbers<[2], [1], [1], [2], [0, 0, 0, 1, 1, 2], [0], [0]>} : vector<2x8x8xf32>, vector<2x8x8xf32>, vector<2x8x8xf32> -> vector<2x8x8xf32>
    "tpu.trace_stop"() : () -> ()
    %137 = vector.shape_cast %136 : vector<2x8x8xf32> to vector<16x8xf32>
    %138 = vector.extract_strided_slice %37 {offsets = [24, 0], sizes = [8, 32], strides = [1, 1]} : vector<32x32xf32> to vector<8x32xf32>
    %cst_46 = arith.constant dense<0.000000e+00> : vector<16x32xf32>
    %139 = tpu.matmul %137, %138, %cst_46 {dimension_numbers = #tpu.dot_dimension_numbers<[1], [0], [0], [1], [0, 0, 1, 1], [], []>} : vector<16x8xf32>, vector<8x32xf32>, vector<16x32xf32> -> vector<16x32xf32>
    %140 = arith.addf %114, %139 : vector<16x32xf32>
    %c0_47 = arith.constant 0 : index
    %c0_48 = arith.constant 0 : index
    %c0_49 = arith.constant 0 : index
    %141 = vector.load %arg8[%c0_47, %c0_48, %c0_49] : memref<2x1x32xf32, #tpu.memory_space<vmem>>, vector<1x1x32xf32>
    %142 = vector.shape_cast %141 : vector<1x1x32xf32> to vector<1x32xf32>
    %143 = vector.broadcast %142 : vector<1x32xf32> to vector<16x32xf32>
    %144 = arith.addf %140, %143 : vector<16x32xf32>
    %145 = arith.addf %144, %0 : vector<16x32xf32>
    %c0_50 = arith.constant 0 : index
    %c0_51 = arith.constant 0 : index
    %c0_52 = arith.constant 0 : index
    %146 = vector.load %arg9[%c0_50, %c0_51, %c0_52] : memref<2x1x32xf32, #tpu.memory_space<vmem>>, vector<1x1x32xf32>
    %147 = vector.shape_cast %146 : vector<1x1x32xf32> to vector<1x32xf32>
    %c0_53 = arith.constant 0 : index
    %c0_54 = arith.constant 0 : index
    %c0_55 = arith.constant 0 : index
    %148 = vector.load %arg10[%c0_53, %c0_54, %c0_55] : memref<2x1x32xf32, #tpu.memory_space<vmem>>, vector<1x1x32xf32>
    %149 = vector.shape_cast %148 : vector<1x1x32xf32> to vector<1x32xf32>
    %cst_56 = arith.constant dense<0.000000e+00> : vector<16xf32>
    %150 = vector.multi_reduction <add>, %145, %cst_56 [1] : vector<16x32xf32> to vector<16xf32>
    %151 = vector.shape_cast %150 : vector<16xf32> to vector<16x1xf32>
    %cst_57 = arith.constant 3.200000e+01 : f32
    %152 = vector.broadcast %cst_57 : f32 to vector<16x1xf32>
    %153 = arith.divf %151, %152 : vector<16x1xf32>
    %154 = vector.broadcast %153 : vector<16x1xf32> to vector<16x32xf32>
    %155 = arith.subf %145, %154 : vector<16x32xf32>
    %156 = arith.mulf %155, %155 : vector<16x32xf32>
    %cst_58 = arith.constant dense<0.000000e+00> : vector<16xf32>
    %157 = vector.multi_reduction <add>, %156, %cst_58 [1] : vector<16x32xf32> to vector<16xf32>
    %158 = vector.shape_cast %157 : vector<16xf32> to vector<16x1xf32>
    %cst_59 = arith.constant 3.200000e+01 : f32
    %159 = vector.broadcast %cst_59 : f32 to vector<16x1xf32>
    %160 = arith.divf %158, %159 : vector<16x1xf32>
    %161 = vector.broadcast %153 : vector<16x1xf32> to vector<16x32xf32>
    %162 = arith.subf %145, %161 : vector<16x32xf32>
    %cst_60 = arith.constant 9.99999996E-13 : f32
    %163 = vector.broadcast %cst_60 : f32 to vector<16x1xf32>
    %164 = arith.addf %160, %163 : vector<16x1xf32>
    %165 = math.rsqrt %164 : vector<16x1xf32>
    %166 = vector.broadcast %165 : vector<16x1xf32> to vector<16x32xf32>
    %167 = arith.mulf %162, %166 : vector<16x32xf32>
    %168 = vector.broadcast %147 : vector<1x32xf32> to vector<16x32xf32>
    %169 = arith.mulf %167, %168 : vector<16x32xf32>
    %170 = vector.broadcast %149 : vector<1x32xf32> to vector<16x32xf32>
    %171 = arith.addf %169, %170 : vector<16x32xf32>
    %c0_61 = arith.constant 0 : index
    %c0_62 = arith.constant 0 : index
    %c0_63 = arith.constant 0 : index
    %172 = vector.load %arg11[%c0_61, %c0_62, %c0_63] : memref<2x32x64xf32, #tpu.memory_space<vmem>>, vector<1x32x64xf32>
    %173 = vector.shape_cast %172 : vector<1x32x64xf32> to vector<32x64xf32>
    %cst_64 = arith.constant dense<0.000000e+00> : vector<16x64xf32>
    %174 = tpu.matmul %171, %173, %cst_64 {dimension_numbers = #tpu.dot_dimension_numbers<[1], [0], [0], [1], [0, 0, 1, 1], [], []>} : vector<16x32xf32>, vector<32x64xf32>, vector<16x64xf32> -> vector<16x64xf32>
    %c0_65 = arith.constant 0 : index
    %c0_66 = arith.constant 0 : index
    %c0_67 = arith.constant 0 : index
    %175 = vector.load %arg12[%c0_65, %c0_66, %c0_67] : memref<2x1x64xf32, #tpu.memory_space<vmem>>, vector<1x1x64xf32>
    %176 = vector.shape_cast %175 : vector<1x1x64xf32> to vector<1x64xf32>
    %177 = vector.broadcast %176 : vector<1x64xf32> to vector<16x64xf32>
    %178 = arith.addf %174, %177 : vector<16x64xf32>
    %cst_68 = arith.constant 5.000000e-01 : f32
    %179 = vector.broadcast %cst_68 : f32 to vector<16x64xf32>
    %180 = arith.mulf %179, %178 : vector<16x64xf32>
    %cst_69 = arith.constant 0.707106769 : f32
    %181 = vector.broadcast %cst_69 : f32 to vector<16x64xf32>
    %182 = arith.mulf %178, %181 : vector<16x64xf32>
    %183 = math.erf %182 : vector<16x64xf32>
    %cst_70 = arith.constant 1.000000e+00 : f32
    %184 = vector.broadcast %cst_70 : f32 to vector<16x64xf32>
    %185 = arith.addf %184, %183 : vector<16x64xf32>
    %186 = arith.mulf %180, %185 : vector<16x64xf32>
    %c0_71 = arith.constant 0 : index
    %c0_72 = arith.constant 0 : index
    %c0_73 = arith.constant 0 : index
    %187 = vector.load %arg13[%c0_71, %c0_72, %c0_73] : memref<2x64x32xf32, #tpu.memory_space<vmem>>, vector<1x64x32xf32>
    %188 = vector.shape_cast %187 : vector<1x64x32xf32> to vector<64x32xf32>
    %cst_74 = arith.constant dense<0.000000e+00> : vector<16x32xf32>
    %189 = tpu.matmul %186, %188, %cst_74 {dimension_numbers = #tpu.dot_dimension_numbers<[1], [0], [0], [1], [0, 0, 1, 1], [], []>} : vector<16x64xf32>, vector<64x32xf32>, vector<16x32xf32> -> vector<16x32xf32>
    %c0_75 = arith.constant 0 : index
    %c0_76 = arith.constant 0 : index
    %c0_77 = arith.constant 0 : index
    %190 = vector.load %arg14[%c0_75, %c0_76, %c0_77] : memref<2x1x32xf32, #tpu.memory_space<vmem>>, vector<1x1x32xf32>
    %191 = vector.shape_cast %190 : vector<1x1x32xf32> to vector<1x32xf32>
    %192 = vector.broadcast %191 : vector<1x32xf32> to vector<16x32xf32>
    %193 = arith.addf %189, %192 : vector<16x32xf32>
    %194 = arith.addf %193, %145 : vector<16x32xf32>
    %c1 = arith.constant 1 : index
    %c0_78 = arith.constant 0 : index
    %c0_79 = arith.constant 0 : index
    %195 = vector.load %arg3[%c1, %c0_78, %c0_79] : memref<2x1x32xf32, #tpu.memory_space<vmem>>, vector<1x1x32xf32>
    %196 = vector.shape_cast %195 : vector<1x1x32xf32> to vector<1x32xf32>
    %c1_80 = arith.constant 1 : index
    %c0_81 = arith.constant 0 : index
    %c0_82 = arith.constant 0 : index
    %197 = vector.load %arg4[%c1_80, %c0_81, %c0_82] : memref<2x1x32xf32, #tpu.memory_space<vmem>>, vector<1x1x32xf32>
    %198 = vector.shape_cast %197 : vector<1x1x32xf32> to vector<1x32xf32>
    %cst_83 = arith.constant dense<0.000000e+00> : vector<16xf32>
    %199 = vector.multi_reduction <add>, %194, %cst_83 [1] : vector<16x32xf32> to vector<16xf32>
    %200 = vector.shape_cast %199 : vector<16xf32> to vector<16x1xf32>
    %cst_84 = arith.constant 3.200000e+01 : f32
    %201 = vector.broadcast %cst_84 : f32 to vector<16x1xf32>
    %202 = arith.divf %200, %201 : vector<16x1xf32>
    %203 = vector.broadcast %202 : vector<16x1xf32> to vector<16x32xf32>
    %204 = arith.subf %194, %203 : vector<16x32xf32>
    %205 = arith.mulf %204, %204 : vector<16x32xf32>
    %cst_85 = arith.constant dense<0.000000e+00> : vector<16xf32>
    %206 = vector.multi_reduction <add>, %205, %cst_85 [1] : vector<16x32xf32> to vector<16xf32>
    %207 = vector.shape_cast %206 : vector<16xf32> to vector<16x1xf32>
    %cst_86 = arith.constant 3.200000e+01 : f32
    %208 = vector.broadcast %cst_86 : f32 to vector<16x1xf32>
    %209 = arith.divf %207, %208 : vector<16x1xf32>
    %210 = vector.broadcast %202 : vector<16x1xf32> to vector<16x32xf32>
    %211 = arith.subf %194, %210 : vector<16x32xf32>
    %cst_87 = arith.constant 9.99999996E-13 : f32
    %212 = vector.broadcast %cst_87 : f32 to vector<16x1xf32>
    %213 = arith.addf %209, %212 : vector<16x1xf32>
    %214 = math.rsqrt %213 : vector<16x1xf32>
    %215 = vector.broadcast %214 : vector<16x1xf32> to vector<16x32xf32>
    %216 = arith.mulf %211, %215 : vector<16x32xf32>
    %217 = vector.broadcast %196 : vector<1x32xf32> to vector<16x32xf32>
    %218 = arith.mulf %216, %217 : vector<16x32xf32>
    %219 = vector.broadcast %198 : vector<1x32xf32> to vector<16x32xf32>
    %220 = arith.addf %218, %219 : vector<16x32xf32>
    %c1_88 = arith.constant 1 : index
    %c0_89 = arith.constant 0 : index
    %c0_90 = arith.constant 0 : index
    %221 = vector.load %arg5[%c1_88, %c0_89, %c0_90] : memref<2x32x96xf32, #tpu.memory_space<vmem>>, vector<1x32x96xf32>
    %222 = vector.shape_cast %221 : vector<1x32x96xf32> to vector<32x96xf32>
    %cst_91 = arith.constant dense<0.000000e+00> : vector<16x96xf32>
    %223 = tpu.matmul %220, %222, %cst_91 {dimension_numbers = #tpu.dot_dimension_numbers<[1], [0], [0], [1], [0, 0, 1, 1], [], []>} : vector<16x32xf32>, vector<32x96xf32>, vector<16x96xf32> -> vector<16x96xf32>
    %c1_92 = arith.constant 1 : index
    %c0_93 = arith.constant 0 : index
    %c0_94 = arith.constant 0 : index
    %224 = vector.load %arg6[%c1_92, %c0_93, %c0_94] : memref<2x1x96xf32, #tpu.memory_space<vmem>>, vector<1x1x96xf32>
    %225 = vector.shape_cast %224 : vector<1x1x96xf32> to vector<1x96xf32>
    %226 = vector.broadcast %225 : vector<1x96xf32> to vector<16x96xf32>
    %227 = arith.addf %223, %226 : vector<16x96xf32>
    %c1_95 = arith.constant 1 : index
    %c0_96 = arith.constant 0 : index
    %c0_97 = arith.constant 0 : index
    %228 = vector.load %arg7[%c1_95, %c0_96, %c0_97] : memref<2x32x32xf32, #tpu.memory_space<vmem>>, vector<1x32x32xf32>
    %229 = vector.shape_cast %228 : vector<1x32x32xf32> to vector<32x32xf32>
    %230 = vector.extract_strided_slice %227 {offsets = [0, 0], sizes = [16, 8], strides = [1, 1]} : vector<16x96xf32> to vector<16x8xf32>
    %231 = vector.shape_cast %230 : vector<16x8xf32> to vector<2x8x8xf32>
    %232 = vector.extract_strided_slice %227 {offsets = [0, 32], sizes = [16, 8], strides = [1, 1]} : vector<16x96xf32> to vector<16x8xf32>
    %233 = vector.shape_cast %232 : vector<16x8xf32> to vector<2x8x8xf32>
    %234 = vector.extract_strided_slice %227 {offsets = [0, 64], sizes = [16, 8], strides = [1, 1]} : vector<16x96xf32> to vector<16x8xf32>
    %235 = vector.shape_cast %234 : vector<16x8xf32> to vector<2x8x8xf32>
    "tpu.trace_start"() <{level = 10 : i32, message = "bqd,bkd->bqk"}> : () -> ()
    %cst_98 = arith.constant dense<0.000000e+00> : vector<2x8x8xf32>
    %236 = tpu.matmul %231, %233, %cst_98 {dimension_numbers = #tpu.dot_dimension_numbers<[2], [2], [1], [1], [0, 0, 0, 1, 1, 1], [0], [0]>} : vector<2x8x8xf32>, vector<2x8x8xf32>, vector<2x8x8xf32> -> vector<2x8x8xf32>
    "tpu.trace_stop"() : () -> ()
    %cst_99 = arith.constant 0.353553385 : f32
    %237 = vector.broadcast %cst_99 : f32 to vector<2x8x8xf32>
    %238 = arith.mulf %236, %237 : vector<2x8x8xf32>
    %239 = vector.broadcast %2 : vector<2x1x8xf32> to vector<2x8x8xf32>
    %240 = arith.addf %238, %239 : vector<2x8x8xf32>
    %cst_100 = arith.constant dense<0xFF800000> : vector<2x8xf32>
    %241 = vector.multi_reduction <maximumf>, %240, %cst_100 [2] : vector<2x8x8xf32> to vector<2x8xf32>
    %242 = vector.shape_cast %241 : vector<2x8xf32> to vector<2x8x1xf32>
    %243 = vector.broadcast %242 : vector<2x8x1xf32> to vector<2x8x8xf32>
    %244 = arith.subf %240, %243 : vector<2x8x8xf32>
    %245 = math.exp %244 : vector<2x8x8xf32>
    %cst_101 = arith.constant dense<0.000000e+00> : vector<2x8xf32>
    %246 = vector.multi_reduction <add>, %245, %cst_101 [2] : vector<2x8x8xf32> to vector<2x8xf32>
    %247 = vector.shape_cast %246 : vector<2x8xf32> to vector<2x8x1xf32>
    %248 = tpu.reciprocal %247 {approx = true} : vector<2x8x1xf32> -> vector<2x8x1xf32>
    %249 = vector.broadcast %248 : vector<2x8x1xf32> to vector<2x8x8xf32>
    %250 = arith.mulf %245, %249 : vector<2x8x8xf32>
    "tpu.trace_start"() <{level = 10 : i32, message = "bqk,bkd->bqd"}> : () -> ()
    %cst_102 = arith.constant dense<0.000000e+00> : vector<2x8x8xf32>
    %251 = tpu.matmul %250, %235, %cst_102 {dimension_numbers = #tpu.dot_dimension_numbers<[2], [1], [1], [2], [0, 0, 0, 1, 1, 2], [0], [0]>} : vector<2x8x8xf32>, vector<2x8x8xf32>, vector<2x8x8xf32> -> vector<2x8x8xf32>
    "tpu.trace_stop"() : () -> ()
    %252 = vector.shape_cast %251 : vector<2x8x8xf32> to vector<16x8xf32>
    %253 = vector.extract_strided_slice %229 {offsets = [0, 0], sizes = [8, 32], strides = [1, 1]} : vector<32x32xf32> to vector<8x32xf32>
    %cst_103 = arith.constant dense<0.000000e+00> : vector<16x32xf32>
    %254 = tpu.matmul %252, %253, %cst_103 {dimension_numbers = #tpu.dot_dimension_numbers<[1], [0], [0], [1], [0, 0, 1, 1], [], []>} : vector<16x8xf32>, vector<8x32xf32>, vector<16x32xf32> -> vector<16x32xf32>
    %255 = vector.extract_strided_slice %227 {offsets = [0, 8], sizes = [16, 8], strides = [1, 1]} : vector<16x96xf32> to vector<16x8xf32>
    %256 = vector.shape_cast %255 : vector<16x8xf32> to vector<2x8x8xf32>
    %257 = vector.extract_strided_slice %227 {offsets = [0, 40], sizes = [16, 8], strides = [1, 1]} : vector<16x96xf32> to vector<16x8xf32>
    %258 = vector.shape_cast %257 : vector<16x8xf32> to vector<2x8x8xf32>
    %259 = vector.extract_strided_slice %227 {offsets = [0, 72], sizes = [16, 8], strides = [1, 1]} : vector<16x96xf32> to vector<16x8xf32>
    %260 = vector.shape_cast %259 : vector<16x8xf32> to vector<2x8x8xf32>
    "tpu.trace_start"() <{level = 10 : i32, message = "bqd,bkd->bqk"}> : () -> ()
    %cst_104 = arith.constant dense<0.000000e+00> : vector<2x8x8xf32>
    %261 = tpu.matmul %256, %258, %cst_104 {dimension_numbers = #tpu.dot_dimension_numbers<[2], [2], [1], [1], [0, 0, 0, 1, 1, 1], [0], [0]>} : vector<2x8x8xf32>, vector<2x8x8xf32>, vector<2x8x8xf32> -> vector<2x8x8xf32>
    "tpu.trace_stop"() : () -> ()
    %cst_105 = arith.constant 0.353553385 : f32
    %262 = vector.broadcast %cst_105 : f32 to vector<2x8x8xf32>
    %263 = arith.mulf %261, %262 : vector<2x8x8xf32>
    %264 = vector.broadcast %2 : vector<2x1x8xf32> to vector<2x8x8xf32>
    %265 = arith.addf %263, %264 : vector<2x8x8xf32>
    %cst_106 = arith.constant dense<0xFF800000> : vector<2x8xf32>
    %266 = vector.multi_reduction <maximumf>, %265, %cst_106 [2] : vector<2x8x8xf32> to vector<2x8xf32>
    %267 = vector.shape_cast %266 : vector<2x8xf32> to vector<2x8x1xf32>
    %268 = vector.broadcast %267 : vector<2x8x1xf32> to vector<2x8x8xf32>
    %269 = arith.subf %265, %268 : vector<2x8x8xf32>
    %270 = math.exp %269 : vector<2x8x8xf32>
    %cst_107 = arith.constant dense<0.000000e+00> : vector<2x8xf32>
    %271 = vector.multi_reduction <add>, %270, %cst_107 [2] : vector<2x8x8xf32> to vector<2x8xf32>
    %272 = vector.shape_cast %271 : vector<2x8xf32> to vector<2x8x1xf32>
    %273 = tpu.reciprocal %272 {approx = true} : vector<2x8x1xf32> -> vector<2x8x1xf32>
    %274 = vector.broadcast %273 : vector<2x8x1xf32> to vector<2x8x8xf32>
    %275 = arith.mulf %270, %274 : vector<2x8x8xf32>
    "tpu.trace_start"() <{level = 10 : i32, message = "bqk,bkd->bqd"}> : () -> ()
    %cst_108 = arith.constant dense<0.000000e+00> : vector<2x8x8xf32>
    %276 = tpu.matmul %275, %260, %cst_108 {dimension_numbers = #tpu.dot_dimension_numbers<[2], [1], [1], [2], [0, 0, 0, 1, 1, 2], [0], [0]>} : vector<2x8x8xf32>, vector<2x8x8xf32>, vector<2x8x8xf32> -> vector<2x8x8xf32>
    "tpu.trace_stop"() : () -> ()
    %277 = vector.shape_cast %276 : vector<2x8x8xf32> to vector<16x8xf32>
    %278 = vector.extract_strided_slice %229 {offsets = [8, 0], sizes = [8, 32], strides = [1, 1]} : vector<32x32xf32> to vector<8x32xf32>
    %cst_109 = arith.constant dense<0.000000e+00> : vector<16x32xf32>
    %279 = tpu.matmul %277, %278, %cst_109 {dimension_numbers = #tpu.dot_dimension_numbers<[1], [0], [0], [1], [0, 0, 1, 1], [], []>} : vector<16x8xf32>, vector<8x32xf32>, vector<16x32xf32> -> vector<16x32xf32>
    %280 = arith.addf %254, %279 : vector<16x32xf32>
    %281 = vector.extract_strided_slice %227 {offsets = [0, 16], sizes = [16, 8], strides = [1, 1]} : vector<16x96xf32> to vector<16x8xf32>
    %282 = vector.shape_cast %281 : vector<16x8xf32> to vector<2x8x8xf32>
    %283 = vector.extract_strided_slice %227 {offsets = [0, 48], sizes = [16, 8], strides = [1, 1]} : vector<16x96xf32> to vector<16x8xf32>
    %284 = vector.shape_cast %283 : vector<16x8xf32> to vector<2x8x8xf32>
    %285 = vector.extract_strided_slice %227 {offsets = [0, 80], sizes = [16, 8], strides = [1, 1]} : vector<16x96xf32> to vector<16x8xf32>
    %286 = vector.shape_cast %285 : vector<16x8xf32> to vector<2x8x8xf32>
    "tpu.trace_start"() <{level = 10 : i32, message = "bqd,bkd->bqk"}> : () -> ()
    %cst_110 = arith.constant dense<0.000000e+00> : vector<2x8x8xf32>
    %287 = tpu.matmul %282, %284, %cst_110 {dimension_numbers = #tpu.dot_dimension_numbers<[2], [2], [1], [1], [0, 0, 0, 1, 1, 1], [0], [0]>} : vector<2x8x8xf32>, vector<2x8x8xf32>, vector<2x8x8xf32> -> vector<2x8x8xf32>
    "tpu.trace_stop"() : () -> ()
    %cst_111 = arith.constant 0.353553385 : f32
    %288 = vector.broadcast %cst_111 : f32 to vector<2x8x8xf32>
    %289 = arith.mulf %287, %288 : vector<2x8x8xf32>
    %290 = vector.broadcast %2 : vector<2x1x8xf32> to vector<2x8x8xf32>
    %291 = arith.addf %289, %290 : vector<2x8x8xf32>
    %cst_112 = arith.constant dense<0xFF800000> : vector<2x8xf32>
    %292 = vector.multi_reduction <maximumf>, %291, %cst_112 [2] : vector<2x8x8xf32> to vector<2x8xf32>
    %293 = vector.shape_cast %292 : vector<2x8xf32> to vector<2x8x1xf32>
    %294 = vector.broadcast %293 : vector<2x8x1xf32> to vector<2x8x8xf32>
    %295 = arith.subf %291, %294 : vector<2x8x8xf32>
    %296 = math.exp %295 : vector<2x8x8xf32>
    %cst_113 = arith.constant dense<0.000000e+00> : vector<2x8xf32>
    %297 = vector.multi_reduction <add>, %296, %cst_113 [2] : vector<2x8x8xf32> to vector<2x8xf32>
    %298 = vector.shape_cast %297 : vector<2x8xf32> to vector<2x8x1xf32>
    %299 = tpu.reciprocal %298 {approx = true} : vector<2x8x1xf32> -> vector<2x8x1xf32>
    %300 = vector.broadcast %299 : vector<2x8x1xf32> to vector<2x8x8xf32>
    %301 = arith.mulf %296, %300 : vector<2x8x8xf32>
    "tpu.trace_start"() <{level = 10 : i32, message = "bqk,bkd->bqd"}> : () -> ()
    %cst_114 = arith.constant dense<0.000000e+00> : vector<2x8x8xf32>
    %302 = tpu.matmul %301, %286, %cst_114 {dimension_numbers = #tpu.dot_dimension_numbers<[2], [1], [1], [2], [0, 0, 0, 1, 1, 2], [0], [0]>} : vector<2x8x8xf32>, vector<2x8x8xf32>, vector<2x8x8xf32> -> vector<2x8x8xf32>
    "tpu.trace_stop"() : () -> ()
    %303 = vector.shape_cast %302 : vector<2x8x8xf32> to vector<16x8xf32>
    %304 = vector.extract_strided_slice %229 {offsets = [16, 0], sizes = [8, 32], strides = [1, 1]} : vector<32x32xf32> to vector<8x32xf32>
    %cst_115 = arith.constant dense<0.000000e+00> : vector<16x32xf32>
    %305 = tpu.matmul %303, %304, %cst_115 {dimension_numbers = #tpu.dot_dimension_numbers<[1], [0], [0], [1], [0, 0, 1, 1], [], []>} : vector<16x8xf32>, vector<8x32xf32>, vector<16x32xf32> -> vector<16x32xf32>
    %306 = arith.addf %280, %305 : vector<16x32xf32>
    %307 = vector.extract_strided_slice %227 {offsets = [0, 24], sizes = [16, 8], strides = [1, 1]} : vector<16x96xf32> to vector<16x8xf32>
    %308 = vector.shape_cast %307 : vector<16x8xf32> to vector<2x8x8xf32>
    %309 = vector.extract_strided_slice %227 {offsets = [0, 56], sizes = [16, 8], strides = [1, 1]} : vector<16x96xf32> to vector<16x8xf32>
    %310 = vector.shape_cast %309 : vector<16x8xf32> to vector<2x8x8xf32>
    %311 = vector.extract_strided_slice %227 {offsets = [0, 88], sizes = [16, 8], strides = [1, 1]} : vector<16x96xf32> to vector<16x8xf32>
    %312 = vector.shape_cast %311 : vector<16x8xf32> to vector<2x8x8xf32>
    "tpu.trace_start"() <{level = 10 : i32, message = "bqd,bkd->bqk"}> : () -> ()
    %cst_116 = arith.constant dense<0.000000e+00> : vector<2x8x8xf32>
    %313 = tpu.matmul %308, %310, %cst_116 {dimension_numbers = #tpu.dot_dimension_numbers<[2], [2], [1], [1], [0, 0, 0, 1, 1, 1], [0], [0]>} : vector<2x8x8xf32>, vector<2x8x8xf32>, vector<2x8x8xf32> -> vector<2x8x8xf32>
    "tpu.trace_stop"() : () -> ()
    %cst_117 = arith.constant 0.353553385 : f32
    %314 = vector.broadcast %cst_117 : f32 to vector<2x8x8xf32>
    %315 = arith.mulf %313, %314 : vector<2x8x8xf32>
    %316 = vector.broadcast %2 : vector<2x1x8xf32> to vector<2x8x8xf32>
    %317 = arith.addf %315, %316 : vector<2x8x8xf32>
    %cst_118 = arith.constant dense<0xFF800000> : vector<2x8xf32>
    %318 = vector.multi_reduction <maximumf>, %317, %cst_118 [2] : vector<2x8x8xf32> to vector<2x8xf32>
    %319 = vector.shape_cast %318 : vector<2x8xf32> to vector<2x8x1xf32>
    %320 = vector.broadcast %319 : vector<2x8x1xf32> to vector<2x8x8xf32>
    %321 = arith.subf %317, %320 : vector<2x8x8xf32>
    %322 = math.exp %321 : vector<2x8x8xf32>
    %cst_119 = arith.constant dense<0.000000e+00> : vector<2x8xf32>
    %323 = vector.multi_reduction <add>, %322, %cst_119 [2] : vector<2x8x8xf32> to vector<2x8xf32>
    %324 = vector.shape_cast %323 : vector<2x8xf32> to vector<2x8x1xf32>
    %325 = tpu.reciprocal %324 {approx = true} : vector<2x8x1xf32> -> vector<2x8x1xf32>
    %326 = vector.broadcast %325 : vector<2x8x1xf32> to vector<2x8x8xf32>
    %327 = arith.mulf %322, %326 : vector<2x8x8xf32>
    "tpu.trace_start"() <{level = 10 : i32, message = "bqk,bkd->bqd"}> : () -> ()
    %cst_120 = arith.constant dense<0.000000e+00> : vector<2x8x8xf32>
    %328 = tpu.matmul %327, %312, %cst_120 {dimension_numbers = #tpu.dot_dimension_numbers<[2], [1], [1], [2], [0, 0, 0, 1, 1, 2], [0], [0]>} : vector<2x8x8xf32>, vector<2x8x8xf32>, vector<2x8x8xf32> -> vector<2x8x8xf32>
    "tpu.trace_stop"() : () -> ()
    %329 = vector.shape_cast %328 : vector<2x8x8xf32> to vector<16x8xf32>
    %330 = vector.extract_strided_slice %229 {offsets = [24, 0], sizes = [8, 32], strides = [1, 1]} : vector<32x32xf32> to vector<8x32xf32>
    %cst_121 = arith.constant dense<0.000000e+00> : vector<16x32xf32>
    %331 = tpu.matmul %329, %330, %cst_121 {dimension_numbers = #tpu.dot_dimension_numbers<[1], [0], [0], [1], [0, 0, 1, 1], [], []>} : vector<16x8xf32>, vector<8x32xf32>, vector<16x32xf32> -> vector<16x32xf32>
    %332 = arith.addf %306, %331 : vector<16x32xf32>
    %c1_122 = arith.constant 1 : index
    %c0_123 = arith.constant 0 : index
    %c0_124 = arith.constant 0 : index
    %333 = vector.load %arg8[%c1_122, %c0_123, %c0_124] : memref<2x1x32xf32, #tpu.memory_space<vmem>>, vector<1x1x32xf32>
    %334 = vector.shape_cast %333 : vector<1x1x32xf32> to vector<1x32xf32>
    %335 = vector.broadcast %334 : vector<1x32xf32> to vector<16x32xf32>
    %336 = arith.addf %332, %335 : vector<16x32xf32>
    %337 = arith.addf %336, %194 : vector<16x32xf32>
    %c1_125 = arith.constant 1 : index
    %c0_126 = arith.constant 0 : index
    %c0_127 = arith.constant 0 : index
    %338 = vector.load %arg9[%c1_125, %c0_126, %c0_127] : memref<2x1x32xf32, #tpu.memory_space<vmem>>, vector<1x1x32xf32>
    %339 = vector.shape_cast %338 : vector<1x1x32xf32> to vector<1x32xf32>
    %c1_128 = arith.constant 1 : index
    %c0_129 = arith.constant 0 : index
    %c0_130 = arith.constant 0 : index
    %340 = vector.load %arg10[%c1_128, %c0_129, %c0_130] : memref<2x1x32xf32, #tpu.memory_space<vmem>>, vector<1x1x32xf32>
    %341 = vector.shape_cast %340 : vector<1x1x32xf32> to vector<1x32xf32>
    %cst_131 = arith.constant dense<0.000000e+00> : vector<16xf32>
    %342 = vector.multi_reduction <add>, %337, %cst_131 [1] : vector<16x32xf32> to vector<16xf32>
    %343 = vector.shape_cast %342 : vector<16xf32> to vector<16x1xf32>
    %cst_132 = arith.constant 3.200000e+01 : f32
    %344 = vector.broadcast %cst_132 : f32 to vector<16x1xf32>
    %345 = arith.divf %343, %344 : vector<16x1xf32>
    %346 = vector.broadcast %345 : vector<16x1xf32> to vector<16x32xf32>
    %347 = arith.subf %337, %346 : vector<16x32xf32>
    %348 = arith.mulf %347, %347 : vector<16x32xf32>
    %cst_133 = arith.constant dense<0.000000e+00> : vector<16xf32>
    %349 = vector.multi_reduction <add>, %348, %cst_133 [1] : vector<16x32xf32> to vector<16xf32>
    %350 = vector.shape_cast %349 : vector<16xf32> to vector<16x1xf32>
    %cst_134 = arith.constant 3.200000e+01 : f32
    %351 = vector.broadcast %cst_134 : f32 to vector<16x1xf32>
    %352 = arith.divf %350, %351 : vector<16x1xf32>
    %353 = vector.broadcast %345 : vector<16x1xf32> to vector<16x32xf32>
    %354 = arith.subf %337, %353 : vector<16x32xf32>
    %cst_135 = arith.constant 9.99999996E-13 : f32
    %355 = vector.broadcast %cst_135 : f32 to vector<16x1xf32>
    %356 = arith.addf %352, %355 : vector<16x1xf32>
    %357 = math.rsqrt %356 : vector<16x1xf32>
    %358 = vector.broadcast %357 : vector<16x1xf32> to vector<16x32xf32>
    %359 = arith.mulf %354, %358 : vector<16x32xf32>
    %360 = vector.broadcast %339 : vector<1x32xf32> to vector<16x32xf32>
    %361 = arith.mulf %359, %360 : vector<16x32xf32>
    %362 = vector.broadcast %341 : vector<1x32xf32> to vector<16x32xf32>
    %363 = arith.addf %361, %362 : vector<16x32xf32>
    %c1_136 = arith.constant 1 : index
    %c0_137 = arith.constant 0 : index
    %c0_138 = arith.constant 0 : index
    %364 = vector.load %arg11[%c1_136, %c0_137, %c0_138] : memref<2x32x64xf32, #tpu.memory_space<vmem>>, vector<1x32x64xf32>
    %365 = vector.shape_cast %364 : vector<1x32x64xf32> to vector<32x64xf32>
    %cst_139 = arith.constant dense<0.000000e+00> : vector<16x64xf32>
    %366 = tpu.matmul %363, %365, %cst_139 {dimension_numbers = #tpu.dot_dimension_numbers<[1], [0], [0], [1], [0, 0, 1, 1], [], []>} : vector<16x32xf32>, vector<32x64xf32>, vector<16x64xf32> -> vector<16x64xf32>
    %c1_140 = arith.constant 1 : index
    %c0_141 = arith.constant 0 : index
    %c0_142 = arith.constant 0 : index
    %367 = vector.load %arg12[%c1_140, %c0_141, %c0_142] : memref<2x1x64xf32, #tpu.memory_space<vmem>>, vector<1x1x64xf32>
    %368 = vector.shape_cast %367 : vector<1x1x64xf32> to vector<1x64xf32>
    %369 = vector.broadcast %368 : vector<1x64xf32> to vector<16x64xf32>
    %370 = arith.addf %366, %369 : vector<16x64xf32>
    %cst_143 = arith.constant 5.000000e-01 : f32
    %371 = vector.broadcast %cst_143 : f32 to vector<16x64xf32>
    %372 = arith.mulf %371, %370 : vector<16x64xf32>
    %cst_144 = arith.constant 0.707106769 : f32
    %373 = vector.broadcast %cst_144 : f32 to vector<16x64xf32>
    %374 = arith.mulf %370, %373 : vector<16x64xf32>
    %375 = math.erf %374 : vector<16x64xf32>
    %cst_145 = arith.constant 1.000000e+00 : f32
    %376 = vector.broadcast %cst_145 : f32 to vector<16x64xf32>
    %377 = arith.addf %376, %375 : vector<16x64xf32>
    %378 = arith.mulf %372, %377 : vector<16x64xf32>
    %c1_146 = arith.constant 1 : index
    %c0_147 = arith.constant 0 : index
    %c0_148 = arith.constant 0 : index
    %379 = vector.load %arg13[%c1_146, %c0_147, %c0_148] : memref<2x64x32xf32, #tpu.memory_space<vmem>>, vector<1x64x32xf32>
    %380 = vector.shape_cast %379 : vector<1x64x32xf32> to vector<64x32xf32>
    %cst_149 = arith.constant dense<0.000000e+00> : vector<16x32xf32>
    %381 = tpu.matmul %378, %380, %cst_149 {dimension_numbers = #tpu.dot_dimension_numbers<[1], [0], [0], [1], [0, 0, 1, 1], [], []>} : vector<16x64xf32>, vector<64x32xf32>, vector<16x32xf32> -> vector<16x32xf32>
    %c1_150 = arith.constant 1 : index
    %c0_151 = arith.constant 0 : index
    %c0_152 = arith.constant 0 : index
    %382 = vector.load %arg14[%c1_150, %c0_151, %c0_152] : memref<2x1x32xf32, #tpu.memory_space<vmem>>, vector<1x1x32xf32>
    %383 = vector.shape_cast %382 : vector<1x1x32xf32> to vector<1x32xf32>
    %384 = vector.broadcast %383 : vector<1x32xf32> to vector<16x32xf32>
    %385 = arith.addf %381, %384 : vector<16x32xf32>
    %386 = arith.addf %385, %337 : vector<16x32xf32>
    %c0_153 = arith.constant 0 : index
    %c0_154 = arith.constant 0 : index
    %387 = vector.load %arg15[%c0_153, %c0_154] : memref<1x32xf32, #tpu.memory_space<vmem>>, vector<1x32xf32>
    %c0_155 = arith.constant 0 : index
    %c0_156 = arith.constant 0 : index
    %388 = vector.load %arg16[%c0_155, %c0_156] : memref<1x32xf32, #tpu.memory_space<vmem>>, vector<1x32xf32>
    %cst_157 = arith.constant dense<0.000000e+00> : vector<16xf32>
    %389 = vector.multi_reduction <add>, %386, %cst_157 [1] : vector<16x32xf32> to vector<16xf32>
    %390 = vector.shape_cast %389 : vector<16xf32> to vector<16x1xf32>
    %cst_158 = arith.constant 3.200000e+01 : f32
    %391 = vector.broadcast %cst_158 : f32 to vector<16x1xf32>
    %392 = arith.divf %390, %391 : vector<16x1xf32>
    %393 = vector.broadcast %392 : vector<16x1xf32> to vector<16x32xf32>
    %394 = arith.subf %386, %393 : vector<16x32xf32>
    %395 = arith.mulf %394, %394 : vector<16x32xf32>
    %cst_159 = arith.constant dense<0.000000e+00> : vector<16xf32>
    %396 = vector.multi_reduction <add>, %395, %cst_159 [1] : vector<16x32xf32> to vector<16xf32>
    %397 = vector.shape_cast %396 : vector<16xf32> to vector<16x1xf32>
    %cst_160 = arith.constant 3.200000e+01 : f32
    %398 = vector.broadcast %cst_160 : f32 to vector<16x1xf32>
    %399 = arith.divf %397, %398 : vector<16x1xf32>
    %400 = vector.broadcast %392 : vector<16x1xf32> to vector<16x32xf32>
    %401 = arith.subf %386, %400 : vector<16x32xf32>
    %cst_161 = arith.constant 9.99999996E-13 : f32
    %402 = vector.broadcast %cst_161 : f32 to vector<16x1xf32>
    %403 = arith.addf %399, %402 : vector<16x1xf32>
    %404 = math.rsqrt %403 : vector<16x1xf32>
    %405 = vector.broadcast %404 : vector<16x1xf32> to vector<16x32xf32>
    %406 = arith.mulf %401, %405 : vector<16x32xf32>
    %407 = vector.broadcast %387 : vector<1x32xf32> to vector<16x32xf32>
    %408 = arith.mulf %406, %407 : vector<16x32xf32>
    %409 = vector.broadcast %388 : vector<1x32xf32> to vector<16x32xf32>
    %410 = arith.addf %408, %409 : vector<16x32xf32>
    %411 = vector.shape_cast %410 : vector<16x32xf32> to vector<2x8x32xf32>
    %c0_162 = arith.constant 0 : index
    %c0_163 = arith.constant 0 : index
    %412 = vector.load %arg17[%c0_162, %c0_163] : memref<1x32xf32, #tpu.memory_space<vmem>>, vector<1x32xf32>
    %413 = vector.shape_cast %412 : vector<1x32xf32> to vector<1x1x32xf32>
    %414 = vector.broadcast %413 : vector<1x1x32xf32> to vector<2x8x32xf32>
    %415 = arith.mulf %411, %414 : vector<2x8x32xf32>
    %cst_164 = arith.constant dense<0.000000e+00> : vector<2x8xf32>
    %416 = vector.multi_reduction <add>, %415, %cst_164 [2] : vector<2x8x32xf32> to vector<2x8xf32>
    %c0_165 = arith.constant 0 : index
    %c0_166 = arith.constant 0 : index
    %417 = vector.load %arg18[%c0_165, %c0_166] : memref<1x1xf32, #tpu.memory_space<vmem>>, vector<1x1xf32>
    %418 = vector.broadcast %417 : vector<1x1xf32> to vector<2x8xf32>
    %419 = arith.addf %416, %418 : vector<2x8xf32>
    %cst_167 = arith.constant dense<0xFF800000> : vector<2xf32>
    %420 = vector.multi_reduction <maximumf>, %419, %cst_167 [1] : vector<2x8xf32> to vector<2xf32>
    %421 = vector.shape_cast %420 : vector<2xf32> to vector<2x1xf32>
    %422 = vector.broadcast %421 : vector<2x1xf32> to vector<2x8xf32>
    %423 = arith.subf %419, %422 : vector<2x8xf32>
    %424 = math.exp %423 : vector<2x8xf32>
    %cst_168 = arith.constant dense<0.000000e+00> : vector<2xf32>
    %425 = vector.multi_reduction <add>, %424, %cst_168 [1] : vector<2x8xf32> to vector<2xf32>
    %426 = vector.shape_cast %425 : vector<2xf32> to vector<2x1xf32>
    %427 = tpu.reciprocal %426 {approx = true} : vector<2x1xf32> -> vector<2x1xf32>
    %428 = vector.broadcast %427 : vector<2x1xf32> to vector<2x8xf32>
    %429 = arith.mulf %424, %428 : vector<2x8xf32>
    %430 = vector.shape_cast %429 : vector<2x8xf32> to vector<2x8x1xf32>
    %431 = vector.broadcast %430 : vector<2x8x1xf32> to vector<2x8x32xf32>
    %432 = arith.mulf %431, %411 : vector<2x8x32xf32>
    %cst_169 = arith.constant dense<0.000000e+00> : vector<2x32xf32>
    %433 = vector.multi_reduction <add>, %432, %cst_169 [1] : vector<2x8x32xf32> to vector<2x32xf32>
    %c0_170 = arith.constant 0 : index
    %c0_171 = arith.constant 0 : index
    %434 = vector.load %arg19[%c0_170, %c0_171] : memref<32x2xf32, #tpu.memory_space<vmem>>, vector<32x2xf32>
    %cst_172 = arith.constant dense<0.000000e+00> : vector<2x2xf32>
    %435 = tpu.matmul %433, %434, %cst_172 {dimension_numbers = #tpu.dot_dimension_numbers<[1], [0], [0], [1], [0, 0, 1, 1], [], []>} : vector<2x32xf32>, vector<32x2xf32>, vector<2x2xf32> -> vector<2x2xf32>
    %c0_173 = arith.constant 0 : index
    %c0_174 = arith.constant 0 : index
    %436 = vector.load %arg20[%c0_173, %c0_174] : memref<1x2xf32, #tpu.memory_space<vmem>>, vector<1x2xf32>
    %437 = vector.broadcast %436 : vector<1x2xf32> to vector<2x2xf32>
    %438 = arith.addf %435, %437 : vector<2x2xf32>
    %c0_175 = arith.constant 0 : index
    %c0_176 = arith.constant 0 : index
    %439 = vector.load %arg21[%c0_175, %c0_176] : memref<2x2xf32, #tpu.memory_space<vmem>>, vector<2x2xf32>
    tpu.vector_store %arg21[%c0_175, %c0_176], %438 {strides = array<i32>} : memref<2x2xf32, #tpu.memory_space<vmem>>, vector<2x2xf32>,
    return
  }
  func.func @transform_0(%arg0: i32) -> (i32, i32) {
    %c0_i32 = arith.constant 0 : i32
    %c0_i32_0 = arith.constant 0 : i32
    %c0_i32_1 = arith.constant 0 : i32
    return %c0_i32, %c0_i32_0 : i32, i32
  }
  func.func @transform_1(%arg0: i32) -> (i32, i32) {
    %c0_i32 = arith.constant 0 : i32
    %c0_i32_0 = arith.constant 0 : i32
    %c0_i32_1 = arith.constant 0 : i32
    return %c0_i32, %c0_i32_0 : i32, i32
  }
  func.func @transform_2(%arg0: i32) -> (i32, i32, i32) {
    %c0_i32 = arith.constant 0 : i32
    %c0_i32_0 = arith.constant 0 : i32
    %c0_i32_1 = arith.constant 0 : i32
    %c0_i32_2 = arith.constant 0 : i32
    return %c0_i32, %c0_i32_0, %c0_i32_1 : i32, i32, i32
  }
  func.func @transform_3(%arg0: i32) -> (i32, i32, i32) {
    %c0_i32 = arith.constant 0 : i32
    %c0_i32_0 = arith.constant 0 : i32
    %c0_i32_1 = arith.constant 0 : i32
    %c0_i32_2 = arith.constant 0 : i32
    return %c0_i32, %c0_i32_0, %c0_i32_1 : i32, i32, i32
  }
  func.func @transform_4(%arg0: i32) -> (i32, i32, i32) {
    %c0_i32 = arith.constant 0 : i32
    %c0_i32_0 = arith.constant 0 : i32
    %c0_i32_1 = arith.constant 0 : i32
    %c0_i32_2 = arith.constant 0 : i32
    return %c0_i32, %c0_i32_0, %c0_i32_1 : i32, i32, i32
  }
  func.func @transform_5(%arg0: i32) -> (i32, i32, i32) {
    %c0_i32 = arith.constant 0 : i32
    %c0_i32_0 = arith.constant 0 : i32
    %c0_i32_1 = arith.constant 0 : i32
    %c0_i32_2 = arith.constant 0 : i32
    return %c0_i32, %c0_i32_0, %c0_i32_1 : i32, i32, i32
  }
  func.func @transform_6(%arg0: i32) -> (i32, i32, i32) {
    %c0_i32 = arith.constant 0 : i32
    %c0_i32_0 = arith.constant 0 : i32
    %c0_i32_1 = arith.constant 0 : i32
    %c0_i32_2 = arith.constant 0 : i32
    return %c0_i32, %c0_i32_0, %c0_i32_1 : i32, i32, i32
  }
  func.func @transform_7(%arg0: i32) -> (i32, i32, i32) {
    %c0_i32 = arith.constant 0 : i32
    %c0_i32_0 = arith.constant 0 : i32
    %c0_i32_1 = arith.constant 0 : i32
    %c0_i32_2 = arith.constant 0 : i32
    return %c0_i32, %c0_i32_0, %c0_i32_1 : i32, i32, i32
  }
  func.func @transform_8(%arg0: i32) -> (i32, i32, i32) {
    %c0_i32 = arith.constant 0 : i32
    %c0_i32_0 = arith.constant 0 : i32
    %c0_i32_1 = arith.constant 0 : i32
    %c0_i32_2 = arith.constant 0 : i32
    return %c0_i32, %c0_i32_0, %c0_i32_1 : i32, i32, i32
  }
  func.func @transform_9(%arg0: i32) -> (i32, i32, i32) {
    %c0_i32 = arith.constant 0 : i32
    %c0_i32_0 = arith.constant 0 : i32
    %c0_i32_1 = arith.constant 0 : i32
    %c0_i32_2 = arith.constant 0 : i32
    return %c0_i32, %c0_i32_0, %c0_i32_1 : i32, i32, i32
  }
  func.func @transform_10(%arg0: i32) -> (i32, i32, i32) {
    %c0_i32 = arith.constant 0 : i32
    %c0_i32_0 = arith.constant 0 : i32
    %c0_i32_1 = arith.constant 0 : i32
    %c0_i32_2 = arith.constant 0 : i32
    return %c0_i32, %c0_i32_0, %c0_i32_1 : i32, i32, i32
  }
  func.func @transform_11(%arg0: i32) -> (i32, i32, i32) {
    %c0_i32 = arith.constant 0 : i32
    %c0_i32_0 = arith.constant 0 : i32
    %c0_i32_1 = arith.constant 0 : i32
    %c0_i32_2 = arith.constant 0 : i32
    return %c0_i32, %c0_i32_0, %c0_i32_1 : i32, i32, i32
  }
  func.func @transform_12(%arg0: i32) -> (i32, i32, i32) {
    %c0_i32 = arith.constant 0 : i32
    %c0_i32_0 = arith.constant 0 : i32
    %c0_i32_1 = arith.constant 0 : i32
    %c0_i32_2 = arith.constant 0 : i32
    return %c0_i32, %c0_i32_0, %c0_i32_1 : i32, i32, i32
  }
  func.func @transform_13(%arg0: i32) -> (i32, i32, i32) {
    %c0_i32 = arith.constant 0 : i32
    %c0_i32_0 = arith.constant 0 : i32
    %c0_i32_1 = arith.constant 0 : i32
    %c0_i32_2 = arith.constant 0 : i32
    return %c0_i32, %c0_i32_0, %c0_i32_1 : i32, i32, i32
  }
  func.func @transform_14(%arg0: i32) -> (i32, i32) {
    %c0_i32 = arith.constant 0 : i32
    %c0_i32_0 = arith.constant 0 : i32
    %c0_i32_1 = arith.constant 0 : i32
    return %c0_i32, %c0_i32_0 : i32, i32
  }
  func.func @transform_15(%arg0: i32) -> (i32, i32) {
    %c0_i32 = arith.constant 0 : i32
    %c0_i32_0 = arith.constant 0 : i32
    %c0_i32_1 = arith.constant 0 : i32
    return %c0_i32, %c0_i32_0 : i32, i32
  }
  func.func @transform_16(%arg0: i32) -> (i32, i32) {
    %c0_i32 = arith.constant 0 : i32
    %c0_i32_0 = arith.constant 0 : i32
    %c0_i32_1 = arith.constant 0 : i32
    return %c0_i32, %c0_i32_0 : i32, i32
  }
  func.func @transform_17(%arg0: i32) -> (i32, i32) {
    %c0_i32 = arith.constant 0 : i32
    %c0_i32_0 = arith.constant 0 : i32
    %c0_i32_1 = arith.constant 0 : i32
    return %c0_i32, %c0_i32_0 : i32, i32
  }
  func.func @transform_18(%arg0: i32) -> (i32, i32) {
    %c0_i32 = arith.constant 0 : i32
    %c0_i32_0 = arith.constant 0 : i32
    %c0_i32_1 = arith.constant 0 : i32
    return %c0_i32, %c0_i32_0 : i32, i32
  }
  func.func @transform_19(%arg0: i32) -> (i32, i32) {
    %c0_i32 = arith.constant 0 : i32
    %c0_i32_0 = arith.constant 0 : i32
    %c0_i32_1 = arith.constant 0 : i32
    return %c0_i32, %c0_i32_0 : i32, i32
  }
  func.func @transform_20(%arg0: i32) -> (i32, i32) {
    %c0_i32 = arith.constant 0 : i32
    %c0_i32_0 = arith.constant 0 : i32
    %c0_i32_1 = arith.constant 0 : i32
    return %c0_i32, %c0_i32_0 : i32, i32
  }
}

</mosaic_0001>

<llo_original>
// kernel: tpu_custom_call.1
$region0: #{tpu_custom_call.1}
  #allocation0 [shape = 'u32[]', space=smem, size = 0x4, offset = 0x4, fixed_abs, tag = 'smem constant byte address 0x4 - core index']
  #allocation1 [shape = 'u32[144,128]{1,0:T(1,128)}', space=vmem, size = 0x12000, scoped, tag = 'internal scratch']
  #allocation2 [shape = 'f32[1,1]{1,0:T(1,128)S(1)}', space=vmem, size = 0x200, scoped, tag = 'scoped memory for tpu_custom_call.1']
  %s0 = inlined_call_operand.vmem [shape: f32[16,32], index: 0, kind: input, shape index: {}]
  %s1 = inlined_call_operand.vmem [shape: f32[2,8], index: 1, kind: input, shape index: {}]
  %s2 = inlined_call_operand.hbm [shape: f32[2,1,32], index: 2, kind: input, shape index: {}]
  %s3 = inlined_call_operand.hbm [shape: f32[2,1,32], index: 3, kind: input, shape index: {}]
  %s4 = inlined_call_operand.vmem [shape: f32[2,32,96], index: 4, kind: input, shape index: {}]
  %s5 = inlined_call_operand.hbm [shape: f32[2,1,96], index: 5, kind: input, shape index: {}]
  %s6 = inlined_call_operand.vmem [shape: f32[2,32,32], index: 6, kind: input, shape index: {}]
  %s7 = inlined_call_operand.hbm [shape: f32[2,1,32], index: 7, kind: input, shape index: {}]
  %s8 = inlined_call_operand.hbm [shape: f32[2,1,32], index: 8, kind: input, shape index: {}]
  %s9 = inlined_call_operand.hbm [shape: f32[2,1,32], index: 9, kind: input, shape index: {}]
  %s10 = inlined_call_operand.vmem [shape: f32[2,32,64], index: 10, kind: input, shape index: {}]
  %s11 = inlined_call_operand.hbm [shape: f32[2,1,64], index: 11, kind: input, shape index: {}]
  %s12 = inlined_call_operand.vmem [shape: f32[2,64,32], index: 12, kind: input, shape index: {}]
  %s13 = inlined_call_operand.vmem [shape: f32[2,1,32], index: 13, kind: input, shape index: {}]
  %s14 = inlined_call_operand.vmem [shape: f32[1,32], index: 14, kind: input, shape index: {}]
  %s15 = inlined_call_operand.vmem [shape: f32[1,32], index: 15, kind: input, shape index: {}]
  %s16 = inlined_call_operand.vmem [shape: f32[1,32], index: 16, kind: input, shape index: {}]
  %s17 = inlined_call_operand.<no memory space> [shape: f32[1,1], index: 17, kind: input, shape index: {}]
  %s18 = inlined_call_operand.vmem [shape: f32[32,2], index: 18, kind: input, shape index: {}]
  %s19 = inlined_call_operand.vmem [shape: f32[1,2], index: 19, kind: input, shape index: {}]
  %s20 = inlined_call_operand.hbm [shape: f32[2,2], index: 20, kind: output, shape index: {}]
  %s21 = sld [smem:[#allocation0]]
  $region118: #{tpu_custom_call.1} parent=0
    _
  %s23 = ssub.s32 1, %s21
  %s24 = scalar_select 0, %s23, %s21
  %v25 = vstv %s17
  %26 = vst [vmem:[#allocation2] sm:$0x1] %v25
  $region1: #{tpu_custom_call.1} parent=0
    #allocation3 [shape = 'u8[1024]{0}', space=vmem, size = 0x400, scoped, tag = 'input window, operand 2, single buffered']
    #allocation4 [shape = 's32[1]{0}', space=sflag, size = 0x4, scoped, tag = 'scoped memory for tpu_custom_call.1']
    #allocation5 [shape = 's32[1]{0}', space=sflag, size = 0x4, scoped, tag = 'scoped memory for tpu_custom_call.1']
    #allocation6 [shape = 'u8[1024]{0}', space=vmem, size = 0x400, scoped, tag = 'input window, operand 3, single buffered']
    #allocation7 [shape = 's32[1]{0}', space=sflag, size = 0x4, scoped, tag = 'scoped memory for tpu_custom_call.1']
    #allocation8 [shape = 'u8[1024]{0}', space=vmem, size = 0x400, scoped, tag = 'input window, operand 5, single buffered']
    #allocation9 [shape = 'u8[1024]{0}', space=vmem, size = 0x400, scoped, tag = 'input window, operand 7, single buffered']
    #allocation10 [shape = 's32[1]{0}', space=sflag, size = 0x4, scoped, tag = 'scoped memory for tpu_custom_call.1']
    #allocation11 [shape = 'u8[1024]{0}', space=vmem, size = 0x400, scoped, tag = 'input window, operand 8, single buffered']
    #allocation12 [shape = 'u8[1024]{0}', space=vmem, size = 0x400, scoped, tag = 'input window, operand 9, single buffered']
    #allocation13 [shape = 's32[1]{0}', space=sflag, size = 0x4, scoped, tag = 'scoped memory for tpu_custom_call.1']
    #allocation14 [shape = 'u8[1024]{0}', space=vmem, size = 0x400, scoped, tag = 'input window, operand 11, single buffered']
    #allocation15 [shape = 'u8[1024]{0}', space=vmem, size = 0x400, scoped, tag = 'output window, operand 0, single buffered']
    %27 = vsyncpa [#allocation4], 0
    %28 = vsyncpa [#allocation7], 0
    %29 = vsyncpa [#allocation10], 0
    %30 = vsyncpa [#allocation13], 0
    %31 = vsyncpa [#allocation5], 0
    // Predicated region
    $region2: #{tpu_custom_call.1} parent=1 // pred_check
      _
    $region3: #{tpu_custom_call.1} parent=1 // pred_check_branch
      %33 = sbr.rel (0) target = $region5
    $region4: #{tpu_custom_call.1} parent=1 // pred_region
      _
    $region5: #{tpu_custom_call.1} parent=1 // pred_fallthru
      _
    // Predicated region
    $region6: #{tpu_custom_call.1} parent=1 // pred_check
      _
    $region7: #{tpu_custom_call.1} parent=1 // pred_check_branch
      %35 = sbr.rel (0) target = $region9
    $region8: #{tpu_custom_call.1} parent=1 // pred_region
      _
    $region9: #{tpu_custom_call.1} parent=1 // pred_fallthru
      _
    // Predicated region
    $region10: #{tpu_custom_call.1} parent=1 // pred_check
      _
    $region11: #{tpu_custom_call.1} parent=1 // pred_check_branch
      %37 = sbr.rel (0) target = $region13
    $region12: #{tpu_custom_call.1} parent=1 // pred_region
      %s39 = ssub.s32 32, 32
      %40 = vsyncadd [#allocation4], %s39
      %s41 = sshll.u32 [#allocation3], 4
      %s42 = int_to_ptr.vmem [resolvable:$true] %s41
      %47 = dma.hbm_to_vmem [thread:$0]  %s2, 32, %s42, [#allocation4], 16, 16, 1
    $region13: #{tpu_custom_call.1} parent=1 // pred_fallthru
      _
    // Predicated region
    $region14: #{tpu_custom_call.1} parent=1 // pred_check
      _
    $region15: #{tpu_custom_call.1} parent=1 // pred_check_branch
      %49 = sbr.rel (0) target = $region17
    $region16: #{tpu_custom_call.1} parent=1 // pred_region
      %s51 = ssub.s32 32, 32
      %52 = vsyncadd [#allocation7], %s51
      %s53 = sshll.u32 [#allocation6], 4
      %s54 = int_to_ptr.vmem [resolvable:$true] %s53
      %59 = dma.hbm_to_vmem [thread:$0]  %s3, 32, %s54, [#allocation7], 16, 16, 1
    $region17: #{tpu_custom_call.1} parent=1 // pred_fallthru
      _
    // Predicated region
    $region18: #{tpu_custom_call.1} parent=1 // pred_check
      _
    $region19: #{tpu_custom_call.1} parent=1 // pred_check_branch
      %61 = sbr.rel (0) target = $region21
    $region20: #{tpu_custom_call.1} parent=1 // pred_region
      _
    $region21: #{tpu_custom_call.1} parent=1 // pred_fallthru
      _
    // Predicated region
    $region22: #{tpu_custom_call.1} parent=1 // pred_check
      _
    $region23: #{tpu_custom_call.1} parent=1 // pred_check_branch
      %63 = sbr.rel (0) target = $region25
    $region24: #{tpu_custom_call.1} parent=1 // pred_region
      %s65 = ssub.s32 32, 32
      %66 = vsyncadd [#allocation7], %s65
      %s67 = sshll.u32 [#allocation8], 4
      %s68 = int_to_ptr.vmem [resolvable:$true] %s67
      %73 = dma.hbm_to_vmem [thread:$0]  %s5, 32, %s68, [#allocation7], 16, 16, 1
    $region25: #{tpu_custom_call.1} parent=1 // pred_fallthru
      _
    // Predicated region
    $region26: #{tpu_custom_call.1} parent=1 // pred_check
      _
    $region27: #{tpu_custom_call.1} parent=1 // pred_check_branch
      %75 = sbr.rel (0) target = $region29
    $region28: #{tpu_custom_call.1} parent=1 // pred_region
      _
    $region29: #{tpu_custom_call.1} parent=1 // pred_fallthru
      _
    // Predicated region
    $region30: #{tpu_custom_call.1} parent=1 // pred_check
      _
    $region31: #{tpu_custom_call.1} parent=1 // pred_check_branch
      %77 = sbr.rel (0) target = $region33
    $region32: #{tpu_custom_call.1} parent=1 // pred_region
      %s79 = ssub.s32 32, 32
      %80 = vsyncadd [#allocation10], %s79
      %s81 = sshll.u32 [#allocation9], 4
      %s82 = int_to_ptr.vmem [resolvable:$true] %s81
      %87 = dma.hbm_to_vmem [thread:$0]  %s7, 32, %s82, [#allocation10], 16, 16, 1
    $region33: #{tpu_custom_call.1} parent=1 // pred_fallthru
      _
    // Predicated region
    $region34: #{tpu_custom_call.1} parent=1 // pred_check
      _
    $region35: #{tpu_custom_call.1} parent=1 // pred_check_branch
      %89 = sbr.rel (0) target = $region37
    $region36: #{tpu_custom_call.1} parent=1 // pred_region
      %s91 = ssub.s32 32, 32
      %92 = vsyncadd [#allocation10], %s91
      %s93 = sshll.u32 [#allocation11], 4
      %s94 = int_to_ptr.vmem [resolvable:$true] %s93
      %99 = dma.hbm_to_vmem [thread:$0]  %s8, 32, %s94, [#allocation10], 16, 16, 1
    $region37: #{tpu_custom_call.1} parent=1 // pred_fallthru
      _
    // Predicated region
    $region38: #{tpu_custom_call.1} parent=1 // pred_check
      _
    $region39: #{tpu_custom_call.1} parent=1 // pred_check_branch
      %101 = sbr.rel (0) target = $region41
    $region40: #{tpu_custom_call.1} parent=1 // pred_region
      %s103 = ssub.s32 32, 32
      %104 = vsyncadd [#allocation13], %s103
      %s105 = sshll.u32 [#allocation12], 4
      %s106 = int_to_ptr.vmem [resolvable:$true] %s105
      %111 = dma.hbm_to_vmem [thread:$0]  %s9, 32, %s106, [#allocation13], 16, 16, 1
    $region41: #{tpu_custom_call.1} parent=1 // pred_fallthru
      _
    // Predicated region
    $region42: #{tpu_custom_call.1} parent=1 // pred_check
      _
    $region43: #{tpu_custom_call.1} parent=1 // pred_check_branch
      %113 = sbr.rel (0) target = $region45
    $region44: #{tpu_custom_call.1} parent=1 // pred_region
      _
    $region45: #{tpu_custom_call.1} parent=1 // pred_fallthru
      _
    // Predicated region
    $region46: #{tpu_custom_call.1} parent=1 // pred_check
      _
    $region47: #{tpu_custom_call.1} parent=1 // pred_check_branch
      %115 = sbr.rel (0) target = $region49
    $region48: #{tpu_custom_call.1} parent=1 // pred_region
      %s117 = ssub.s32 32, 32
      %118 = vsyncadd [#allocation13], %s117
      %s119 = sshll.u32 [#allocation14], 4
      %s120 = int_to_ptr.vmem [resolvable:$true] %s119
      %125 = dma.hbm_to_vmem [thread:$0]  %s11, 32, %s120, [#allocation13], 16, 16, 1
    $region49: #{tpu_custom_call.1} parent=1 // pred_fallthru
      _
    // Predicated region
    $region50: #{tpu_custom_call.1} parent=1 // pred_check
      _
    $region51: #{tpu_custom_call.1} parent=1 // pred_check_branch
      %127 = sbr.rel (0) target = $region53
    $region52: #{tpu_custom_call.1} parent=1 // pred_region
      _
    $region53: #{tpu_custom_call.1} parent=1 // pred_fallthru
      _
    // Predicated region
    $region54: #{tpu_custom_call.1} parent=1 // pred_check
      _
    $region55: #{tpu_custom_call.1} parent=1 // pred_check_branch
      %129 = sbr.rel (0) target = $region57
    $region56: #{tpu_custom_call.1} parent=1 // pred_region
      _
    $region57: #{tpu_custom_call.1} parent=1 // pred_fallthru
      _
    // Predicated region
    $region58: #{tpu_custom_call.1} parent=1 // pred_check
      _
    $region59: #{tpu_custom_call.1} parent=1 // pred_check_branch
      %131 = sbr.rel (0) target = $region61
    $region60: #{tpu_custom_call.1} parent=1 // pred_region
      _
    $region61: #{tpu_custom_call.1} parent=1 // pred_fallthru
      _
    // Predicated region
    $region62: #{tpu_custom_call.1} parent=1 // pred_check
      _
    $region63: #{tpu_custom_call.1} parent=1 // pred_check_branch
      %133 = sbr.rel (0) target = $region65
    $region64: #{tpu_custom_call.1} parent=1 // pred_region
      _
    $region65: #{tpu_custom_call.1} parent=1 // pred_fallthru
      _
    // Predicated region
    $region66: #{tpu_custom_call.1} parent=1 // pred_check
      _
    $region67: #{tpu_custom_call.1} parent=1 // pred_check_branch
      %135 = sbr.rel (0) target = $region69
    $region68: #{tpu_custom_call.1} parent=1 // pred_region
      _
    $region69: #{tpu_custom_call.1} parent=1 // pred_fallthru
      _
    // Predicated region
    $region70: #{tpu_custom_call.1} parent=1 // pred_check
      _
    $region71: #{tpu_custom_call.1} parent=1 // pred_check_branch
      %137 = sbr.rel (0) target = $region73
    $region72: #{tpu_custom_call.1} parent=1 // pred_region
      _
    $region73: #{tpu_custom_call.1} parent=1 // pred_fallthru
      _
    // Predicated region
    $region74: #{tpu_custom_call.1} parent=1 // pred_check
      _
    $region75: #{tpu_custom_call.1} parent=1 // pred_check_branch
      %139 = sbr.rel (0) target = $region77
    $region76: #{tpu_custom_call.1} parent=1 // pred_region
      _
    $region77: #{tpu_custom_call.1} parent=1 // pred_fallthru
      _
    // Predicated region
    $region78: #{tpu_custom_call.1} parent=1 // pred_check
      _
    $region79: #{tpu_custom_call.1} parent=1 // pred_check_branch
      %141 = sbr.rel (0) target = $region81
    $region80: #{tpu_custom_call.1} parent=1 // pred_region
      _
    $region81: #{tpu_custom_call.1} parent=1 // pred_fallthru
      _
    // Predicated region
    $region82: #{tpu_custom_call.1} parent=1 // pred_check
      _
    $region83: #{tpu_custom_call.1} parent=1 // pred_check_branch
      %143 = sbr.rel (0) target = $region85
    $region84: #{tpu_custom_call.1} parent=1 // pred_region
      %144 = dma.done [#allocation4], 32
    $region85: #{tpu_custom_call.1} parent=1 // pred_fallthru
      _
    // Predicated region
    $region86: #{tpu_custom_call.1} parent=1 // pred_check
      _
    $region87: #{tpu_custom_call.1} parent=1 // pred_check_branch
      %146 = sbr.rel (0) target = $region89
    $region88: #{tpu_custom_call.1} parent=1 // pred_region
      %147 = dma.done [#allocation7], 32
    $region89: #{tpu_custom_call.1} parent=1 // pred_fallthru
      _
    // Predicated region
    $region90: #{tpu_custom_call.1} parent=1 // pred_check
      _
    $region91: #{tpu_custom_call.1} parent=1 // pred_check_branch
      %149 = sbr.rel (0) target = $region93
    $region92: #{tpu_custom_call.1} parent=1 // pred_region
      %150 = dma.done [#allocation7], 32
    $region93: #{tpu_custom_call.1} parent=1 // pred_fallthru
      _
    // Predicated region
    $region94: #{tpu_custom_call.1} parent=1 // pred_check
      _
    $region95: #{tpu_custom_call.1} parent=1 // pred_check_branch
      %152 = sbr.rel (0) target = $region97
    $region96: #{tpu_custom_call.1} parent=1 // pred_region
      %153 = dma.done [#allocation10], 32
    $region97: #{tpu_custom_call.1} parent=1 // pred_fallthru
      _
    // Predicated region
    $region98: #{tpu_custom_call.1} parent=1 // pred_check
      _
    $region99: #{tpu_custom_call.1} parent=1 // pred_check_branch
      %155 = sbr.rel (0) target = $region101
    $region100: #{tpu_custom_call.1} parent=1 // pred_region
      %156 = dma.done [#allocation10], 32
    $region101: #{tpu_custom_call.1} parent=1 // pred_fallthru
      _
    // Predicated region
    $region102: #{tpu_custom_call.1} parent=1 // pred_check
      _
    $region103: #{tpu_custom_call.1} parent=1 // pred_check_branch
      %158 = sbr.rel (0) target = $region105
    $region104: #{tpu_custom_call.1} parent=1 // pred_region
      %159 = dma.done [#allocation13], 32
    $region105: #{tpu_custom_call.1} parent=1 // pred_fallthru
      _
    // Predicated region
    $region106: #{tpu_custom_call.1} parent=1 // pred_check
      _
    $region107: #{tpu_custom_call.1} parent=1 // pred_check_branch
      %161 = sbr.rel (0) target = $region109
    $region108: #{tpu_custom_call.1} parent=1 // pred_region
      %162 = dma.done [#allocation13], 32
    $region109: #{tpu_custom_call.1} parent=1 // pred_fallthru
      _
    %v163 = vld [vmem:[%s0] sm:$0xff]
    %v164 = vld [vmem:[%s0 + $0x8] sm:$0xff]
    %v165 = vld [vmem:[%s1] sm:$0x3]
    %v168 = vunpack.c.l.s4 1966171168
    %v169 = vunpack.c.0.s8 %v168
    %v170 = vlaneseq
    %v171 = vshrl.u32 %v170, 7
    %v172 = vsub.s32 %v169, %v171
    %v173 = vrot.slane %v165, %v172
    %v174 = vcombine.high %v173, %v173
    %v176 = vunpack.c.l.s4 1966171168
    %v177 = vunpack.c.0.s8 %v176
    %v178 = vlaneseq
    %v179 = vshrl.u32 %v178, 7
    %v180 = vsub.s32 %v177, %v179
    %v181 = vrot.slane %v173, %v180
    %v183 = vunpack.c.l.s4 1966171168
    %v184 = vunpack.c.0.s8 %v183
    %v185 = vlaneseq
    %v186 = vshrl.u32 %v185, 7
    %v187 = vsub.s32 %v184, %v186
    %v188 = vrot.slane %v174, %v187
    %v189 = vld [vmem:[#allocation3] sm:$0x1]
    %v190 = vld [vmem:[#allocation6] sm:$0x1]
    %vm191 = vcmask 261120
    %v192 = vsel %vm191, %v163, 0.0
    %193 = vadd.xlane.f32.xlu0 %v192
    %v194 = vpop.xlane.xlu0 %193
    %v195 = vsel %vm191, %v164, 0.0
    %196 = vadd.xlane.f32.xlu0 %v195
    %v197 = vpop.xlane.xlu0 %196
    %v198 = vrcp.pop 32.0
    %v199 = vmul.f32 %v194, %v198
    %v200 = vmul.f32 %v197, %v198
    %v201 = vsub.f32 %v163, %v199
    %v202 = vsub.f32 %v164, %v200
    %v203 = vmul.f32 %v201, %v201
    %v204 = vmul.f32 %v202, %v202
    %v205 = vsel %vm191, %v203, 0.0
    %206 = vadd.xlane.f32.xlu0 %v205
    %v207 = vpop.xlane.xlu0 %206
    %v208 = vsel %vm191, %v204, 0.0
    %209 = vadd.xlane.f32.xlu0 %v208
    %v210 = vpop.xlane.xlu0 %209
    %v211 = vmul.f32 %v207, %v198
    %v212 = vmul.f32 %v210, %v198
    %v213 = vadd.f32 %v211, 1e-12
    %v214 = vadd.f32 %v212, 1e-12
    %v215 = vrsqrt.pop %v213
    %v216 = vrsqrt.pop %v214
    %v217 = vmul.f32 %v201, %v215
    %v218 = vmul.f32 %v202, %v216
    %v220 = vlaneseq
    %v221 = vshrl.u32 %v220, 7
    %v222 = vsub.s32 0, %v221
    %v223 = vrot.slane %v189, %v222
    %v225 = vmul.f32 %v217, %v223
    %v226 = vmul.f32 %v218, %v223
    %v228 = vlaneseq
    %v229 = vshrl.u32 %v228, 7
    %v230 = vsub.s32 0, %v229
    %v231 = vrot.slane %v190, %v230
    %v233 = vadd.f32 %v225, %v231
    %v234 = vadd.f32 %v226, %v231
    %v235 = vld [vmem:[%s4] sm:$0xff]
    %v236 = vld [vmem:[%s4 + $0x8] sm:$0xff]
    %v237 = vld [vmem:[%s4 + $0x10] sm:$0xff]
    %v238 = vld [vmem:[%s4 + $0x18] sm:$0xff]
    %v239 = vld [vmem:[#allocation8] sm:$0x1]
    %v241 = vlaneseq
    %v242 = vshrl.u32 %v241, 7
    %v243 = vsub.s32 0, %v242
    %v244 = vrot.slane %v239, %v243
    %v247 = vsel %vm191, %v233, 0
    %v250 = vsel %vm191, %v234, 0
    %252 = vmatprep.subr.mxu0 0.0
    %253 = vmatpush1.msra.mxu0 %v235
    %254 = vmatprep.subr.mxu0 0.0
    %255 = vmatpush1.msra.mxu0 %v236
    %256 = vmatprep.subr.mxu0 0.0
    %257 = vmatpush1.msra.mxu0 %v237
    %258 = vmatprep.subr.mxu0 0.0
    %259 = vmatpush1.msra.mxu0 %v238
    %260 = vmatprep.subr.mxu0 0.0
    %261 = vmatpush1.msra.mxu0 0.0
    %262 = vmatprep.subr.mxu0 0.0
    %263 = vmatpush1.msra.mxu0 0.0
    %264 = vmatprep.subr.mxu0 0.0
    %265 = vmatpush1.msra.mxu0 0.0
    %266 = vmatprep.subr.mxu0 0.0
    %267 = vmatpush1.msra.mxu0 0.0
    %268 = vmatprep.subr.mxu0 0.0
    %269 = vmatpush1.msra.mxu0 0.0
    %270 = vmatprep.subr.mxu0 0.0
    %271 = vmatpush1.msra.mxu0 0.0
    %272 = vmatprep.subr.mxu0 0.0
    %273 = vmatpush1.msra.mxu0 0.0
    %274 = vmatprep.subr.mxu0 0.0
    %275 = vmatpush1.msra.mxu0 0.0
    %276 = vmatprep.subr.mxu0 0.0
    %277 = vmatpush1.msra.mxu0 0.0
    %278 = vmatprep.subr.mxu0 0.0
    %279 = vmatpush1.msra.mxu0 0.0
    %280 = vmatprep.subr.mxu0 0.0
    %281 = vmatpush1.msra.mxu0 0.0
    %282 = vmatprep.subr.mxu0 0.0
    %283 = vmatpush1.msra.mxu0 0.0
    %284 = vmatprep.subr.mxu0 0.0
    %285 = vmatpush1.msra.mxu0 0.0
    %286 = vmatprep.subr.mxu0 0.0
    %287 = vmatpush1.msra.mxu0 0.0
    %288 = vmatprep.subr.mxu0 0.0
    %289 = vmatpush1.msra.mxu0 0.0
    %290 = vmatprep.subr.mxu0 0.0
    %291 = vmatpush1.msra.mxu0 0.0
    %292 = vmatprep.subr.mxu0 0.0
    %293 = vmatpush1.msra.mxu0 0.0
    %294 = vmatprep.subr.mxu0 0.0
    %295 = vmatpush1.msra.mxu0 0.0
    %296 = vmatprep.subr.mxu0 0.0
    %297 = vmatpush1.msra.mxu0 0.0
    %298 = vmatprep.subr.mxu0 0.0
    %299 = vmatpush1.msra.mxu0 0.0
    %300 = vmatprep.subr.mxu0 0.0
    %301 = vmatpush1.msra.mxu0 0.0
    %302 = vmatprep.subr.mxu0 0.0
    %303 = vmatpush1.msra.mxu0 0.0
    %304 = vmatprep.subr.mxu0 0.0
    %305 = vmatpush1.msra.mxu0 0.0
    %306 = vmatprep.subr.mxu0 0.0
    %307 = vmatpush1.msra.mxu0 0.0
    %308 = vmatprep.subr.mxu0 0.0
    %309 = vmatpush1.msra.mxu0 0.0
    %310 = vmatprep.subr.mxu0 0.0
    %311 = vmatpush1.msra.mxu0 0.0
    %312 = vmatprep.subr.mxu0 0.0
    %313 = vmatpush1.msra.mxu0 0.0
    %314 = vmatprep.subr.mxu0 0.0
    %315 = vmatpush1.msra.mxu0 0.0
    %316 = vmatprep.mubr.f32.mxu0 0.0
    %317 = vmatmul.mubr.f32.gmra.mrb[0].mxu0 %v247
    %v318 = vpop.f32.mrb[0].mxu0
    %v319 = vadd.f32 %v244, %v318
    %v320 = vpop.f32.mrb[0].mxu0
    %321 = vmatprep.mubr.f32.mxu0 0.0
    %322 = vmatmul.mubr.f32.gmra.mrb[0].mxu0 %v250
    %v323 = vpop.f32.mrb[0].mxu0
    %v324 = vadd.f32 %v244, %v323
    %v325 = vpop.f32.mrb[0].mxu0
    %326 = vdwg.mxu0
    %v327 = vld [vmem:[%s6] sm:$0xff]
    %v328 = vld [vmem:[%s6 + $0x8] sm:$0xff]
    %v329 = vld [vmem:[%s6 + $0x10] sm:$0xff]
    %v330 = vld [vmem:[%s6 + $0x18] sm:$0xff]
    %332 = vrot.lane.b32.xlu0 %v319, 96
    %v333 = vpop.permute.xlu0 %332
    %vm334 = vcmask 64512
    %v335 = vsel %vm334, %v319, 0
    %v337 = vsel %vm334, %v333, 0
    %339 = vmatprep.subr.mxu0 0.0
    %340 = vmatpush1.xpose.msra.mxu0 %v337
    %341 = vmatprep.subr.mxu0 0.0
    %342 = vmatpush1.xpose.msra.mxu0 0.0
    %343 = vmatprep.subr.mxu0 0.0
    %344 = vmatpush1.xpose.msra.mxu0 0.0
    %345 = vmatprep.subr.mxu0 0.0
    %346 = vmatpush1.xpose.msra.mxu0 0.0
    %347 = vmatprep.subr.mxu0 0.0
    %348 = vmatpush1.xpose.msra.mxu0 0.0
    %349 = vmatprep.subr.mxu0 0.0
    %350 = vmatpush1.xpose.msra.mxu0 0.0
    %351 = vmatprep.subr.mxu0 0.0
    %352 = vmatpush1.xpose.msra.mxu0 0.0
    %353 = vmatprep.subr.mxu0 0.0
    %354 = vmatpush1.xpose.msra.mxu0 0.0
    %355 = vmatprep.subr.mxu0 0.0
    %356 = vmatpush1.xpose.msra.mxu0 0.0
    %357 = vmatprep.subr.mxu0 0.0
    %358 = vmatpush1.xpose.msra.mxu0 0.0
    %359 = vmatprep.subr.mxu0 0.0
    %360 = vmatpush1.xpose.msra.mxu0 0.0
    %361 = vmatprep.subr.mxu0 0.0
    %362 = vmatpush1.xpose.msra.mxu0 0.0
    %363 = vmatprep.subr.mxu0 0.0
    %364 = vmatpush1.xpose.msra.mxu0 0.0
    %365 = vmatprep.subr.mxu0 0.0
    %366 = vmatpush1.xpose.msra.mxu0 0.0
    %367 = vmatprep.subr.mxu0 0.0
    %368 = vmatpush1.xpose.msra.mxu0 0.0
    %369 = vmatprep.subr.mxu0 0.0
    %370 = vmatpush1.xpose.msra.mxu0 0.0
    %371 = vmatprep.subr.mxu0 0.0
    %372 = vmatpush1.xpose.msra.mxu0 0.0
    %373 = vmatprep.subr.mxu0 0.0
    %374 = vmatpush1.xpose.msra.mxu0 0.0
    %375 = vmatprep.subr.mxu0 0.0
    %376 = vmatpush1.xpose.msra.mxu0 0.0
    %377 = vmatprep.subr.mxu0 0.0
    %378 = vmatpush1.xpose.msra.mxu0 0.0
    %379 = vmatprep.subr.mxu0 0.0
    %380 = vmatpush1.xpose.msra.mxu0 0.0
    %381 = vmatprep.subr.mxu0 0.0
    %382 = vmatpush1.xpose.msra.mxu0 0.0
    %383 = vmatprep.subr.mxu0 0.0
    %384 = vmatpush1.xpose.msra.mxu0 0.0
    %385 = vmatprep.subr.mxu0 0.0
    %386 = vmatpush1.xpose.msra.mxu0 0.0
    %387 = vmatprep.subr.mxu0 0.0
    %388 = vmatpush1.xpose.msra.mxu0 0.0
    %389 = vmatprep.subr.mxu0 0.0
    %390 = vmatpush1.xpose.msra.mxu0 0.0
    %391 = vmatprep.subr.mxu0 0.0
    %392 = vmatpush1.xpose.msra.mxu0 0.0
    %393 = vmatprep.subr.mxu0 0.0
    %394 = vmatpush1.xpose.msra.mxu0 0.0
    %395 = vmatprep.subr.mxu0 0.0
    %396 = vmatpush1.xpose.msra.mxu0 0.0
    %397 = vmatprep.subr.mxu0 0.0
    %398 = vmatpush1.xpose.msra.mxu0 0.0
    %399 = vmatprep.subr.mxu0 0.0
    %400 = vmatpush1.xpose.msra.mxu0 0.0
    %401 = vmatprep.subr.mxu0 0.0
    %402 = vmatpush1.xpose.msra.mxu0 0.0
    %403 = vmatprep.mubr.f32.mxu0 0.0
    %404 = vmatmul.mubr.f32.gmra.mrb[0].mxu0 %v335
    %v405 = vpop.f32.mrb[0].mxu0
    %v406 = vadd.f32 0.0, %v405
    %v407 = vpop.f32.mrb[0].mxu0
    %408 = vdwg.mxu0
    %410 = vrot.lane.b32.xlu0 %v324, 96
    %v411 = vpop.permute.xlu0 %410
    %v412 = vsel %vm334, %v324, 0
    %v414 = vsel %vm334, %v411, 0
    %416 = vmatprep.subr.mxu0 0.0
    %417 = vmatpush1.xpose.msra.mxu0 %v414
    %418 = vmatprep.subr.mxu0 0.0
    %419 = vmatpush1.xpose.msra.mxu0 0.0
    %420 = vmatprep.subr.mxu0 0.0
    %421 = vmatpush1.xpose.msra.mxu0 0.0
    %422 = vmatprep.subr.mxu0 0.0
    %423 = vmatpush1.xpose.msra.mxu0 0.0
    %424 = vmatprep.subr.mxu0 0.0
    %425 = vmatpush1.xpose.msra.mxu0 0.0
    %426 = vmatprep.subr.mxu0 0.0
    %427 = vmatpush1.xpose.msra.mxu0 0.0
    %428 = vmatprep.subr.mxu0 0.0
    %429 = vmatpush1.xpose.msra.mxu0 0.0
    %430 = vmatprep.subr.mxu0 0.0
    %431 = vmatpush1.xpose.msra.mxu0 0.0
    %432 = vmatprep.subr.mxu0 0.0
    %433 = vmatpush1.xpose.msra.mxu0 0.0
    %434 = vmatprep.subr.mxu0 0.0
    %435 = vmatpush1.xpose.msra.mxu0 0.0
    %436 = vmatprep.subr.mxu0 0.0
    %437 = vmatpush1.xpose.msra.mxu0 0.0
    %438 = vmatprep.subr.mxu0 0.0
    %439 = vmatpush1.xpose.msra.mxu0 0.0
    %440 = vmatprep.subr.mxu0 0.0
    %441 = vmatpush1.xpose.msra.mxu0 0.0
    %442 = vmatprep.subr.mxu0 0.0
    %443 = vmatpush1.xpose.msra.mxu0 0.0
    %444 = vmatprep.subr.mxu0 0.0
    %445 = vmatpush1.xpose.msra.mxu0 0.0
    %446 = vmatprep.subr.mxu0 0.0
    %447 = vmatpush1.xpose.msra.mxu0 0.0
    %448 = vmatprep.subr.mxu0 0.0
    %449 = vmatpush1.xpose.msra.mxu0 0.0
    %450 = vmatprep.subr.mxu0 0.0
    %451 = vmatpush1.xpose.msra.mxu0 0.0
    %452 = vmatprep.subr.mxu0 0.0
    %453 = vmatpush1.xpose.msra.mxu0 0.0
    %454 = vmatprep.subr.mxu0 0.0
    %455 = vmatpush1.xpose.msra.mxu0 0.0
    %456 = vmatprep.subr.mxu0 0.0
    %457 = vmatpush1.xpose.msra.mxu0 0.0
    %458 = vmatprep.subr.mxu0 0.0
    %459 = vmatpush1.xpose.msra.mxu0 0.0
    %460 = vmatprep.subr.mxu0 0.0
    %461 = vmatpush1.xpose.msra.mxu0 0.0
    %462 = vmatprep.subr.mxu0 0.0
    %463 = vmatpush1.xpose.msra.mxu0 0.0
    %464 = vmatprep.subr.mxu0 0.0
    %465 = vmatpush1.xpose.msra.mxu0 0.0
    %466 = vmatprep.subr.mxu0 0.0
    %467 = vmatpush1.xpose.msra.mxu0 0.0
    %468 = vmatprep.subr.mxu0 0.0
    %469 = vmatpush1.xpose.msra.mxu0 0.0
    %470 = vmatprep.subr.mxu0 0.0
    %471 = vmatpush1.xpose.msra.mxu0 0.0
    %472 = vmatprep.subr.mxu0 0.0
    %473 = vmatpush1.xpose.msra.mxu0 0.0
    %474 = vmatprep.subr.mxu0 0.0
    %475 = vmatpush1.xpose.msra.mxu0 0.0
    %476 = vmatprep.subr.mxu0 0.0
    %477 = vmatpush1.xpose.msra.mxu0 0.0
    %478 = vmatprep.subr.mxu0 0.0
    %479 = vmatpush1.xpose.msra.mxu0 0.0
    %480 = vmatprep.mubr.f32.mxu0 0.0
    %481 = vmatmul.mubr.f32.gmra.mrb[0].mxu0 %v412
    %v482 = vpop.f32.mrb[0].mxu0
    %v483 = vadd.f32 0.0, %v482
    %v484 = vpop.f32.mrb[0].mxu0
    %485 = vdwg.mxu0
    %v486 = vmul.f32 %v406, 0.35355338
    %v487 = vmul.f32 %v483, 0.35355338
    %v488 = vlaneseq
    %v489 = vshrl.u32 %v488, 7
    %v490 = vsub.s32 0, %v489
    %v491 = vrot.slane %v181, %v490
    %v492 = vlaneseq
    %v493 = vshrl.u32 %v492, 7
    %v494 = vsub.s32 0, %v493
    %v495 = vrot.slane %v188, %v494
    %v498 = vadd.f32 %v486, %v491
    %v499 = vadd.f32 %v487, %v495
    %v500 = vsel %vm334, %v498, -inf
    %501 = vmax.xlane.f32.xlu0 %v500
    %v502 = vpop.xlane.xlu0 %501
    %v503 = vsel %vm334, %v499, -inf
    %504 = vmax.xlane.f32.xlu0 %v503
    %v505 = vpop.xlane.xlu0 %504
    %v506 = vsub.f32 %v498, %v502
    %v507 = vsub.f32 %v499, %v505
    %v508 = vmul.f32 %v506, 1.442695
    %v509 = vpow.pop %v508
    %v510 = vmul.f32 %v507, 1.442695
    %v511 = vpow.pop %v510
    %v512 = vsel %vm334, %v509, 0.0
    %513 = vadd.xlane.f32.xlu0 %v512
    %v514 = vpop.xlane.xlu0 %513
    %v515 = vsel %vm334, %v511, 0.0
    %516 = vadd.xlane.f32.xlu0 %v515
    %v517 = vpop.xlane.xlu0 %516
    %v518 = vrcp.pop %v514
    %v519 = vrcp.pop %v517
    %v520 = vmul.f32 %v509, %v518
    %v521 = vmul.f32 %v511, %v519
    %522 = vrot.lane.b32.xlu0 %v319, 64
    %v523 = vpop.permute.xlu0 %522
    %v526 = vsel %vm334, %v520, 0
    %528 = vmatprep.subr.mxu0 0.0
    %529 = vmatpush1.msra.mxu0 %v523
    %530 = vmatprep.subr.mxu0 0.0
    %531 = vmatpush1.msra.mxu0 0.0
    %532 = vmatprep.subr.mxu0 0.0
    %533 = vmatpush1.msra.mxu0 0.0
    %534 = vmatprep.subr.mxu0 0.0
    %535 = vmatpush1.msra.mxu0 0.0
    %536 = vmatprep.subr.mxu0 0.0
    %537 = vmatpush1.msra.mxu0 0.0
    %538 = vmatprep.subr.mxu0 0.0
    %539 = vmatpush1.msra.mxu0 0.0
    %540 = vmatprep.subr.mxu0 0.0
    %541 = vmatpush1.msra.mxu0 0.0
    %542 = vmatprep.subr.mxu0 0.0
    %543 = vmatpush1.msra.mxu0 0.0
    %544 = vmatprep.subr.mxu0 0.0
    %545 = vmatpush1.msra.mxu0 0.0
    %546 = vmatprep.subr.mxu0 0.0
    %547 = vmatpush1.msra.mxu0 0.0
    %548 = vmatprep.subr.mxu0 0.0
    %549 = vmatpush1.msra.mxu0 0.0
    %550 = vmatprep.subr.mxu0 0.0
    %551 = vmatpush1.msra.mxu0 0.0
    %552 = vmatprep.subr.mxu0 0.0
    %553 = vmatpush1.msra.mxu0 0.0
    %554 = vmatprep.subr.mxu0 0.0
    %555 = vmatpush1.msra.mxu0 0.0
    %556 = vmatprep.subr.mxu0 0.0
    %557 = vmatpush1.msra.mxu0 0.0
    %558 = vmatprep.subr.mxu0 0.0
    %559 = vmatpush1.msra.mxu0 0.0
    %560 = vmatprep.subr.mxu0 0.0
    %561 = vmatpush1.msra.mxu0 0.0
    %562 = vmatprep.subr.mxu0 0.0
    %563 = vmatpush1.msra.mxu0 0.0
    %564 = vmatprep.subr.mxu0 0.0
    %565 = vmatpush1.msra.mxu0 0.0
    %566 = vmatprep.subr.mxu0 0.0
    %567 = vmatpush1.msra.mxu0 0.0
    %568 = vmatprep.subr.mxu0 0.0
    %569 = vmatpush1.msra.mxu0 0.0
    %570 = vmatprep.subr.mxu0 0.0
    %571 = vmatpush1.msra.mxu0 0.0
    %572 = vmatprep.subr.mxu0 0.0
    %573 = vmatpush1.msra.mxu0 0.0
    %574 = vmatprep.subr.mxu0 0.0
    %575 = vmatpush1.msra.mxu0 0.0
    %576 = vmatprep.subr.mxu0 0.0
    %577 = vmatpush1.msra.mxu0 0.0
    %578 = vmatprep.subr.mxu0 0.0
    %579 = vmatpush1.msra.mxu0 0.0
    %580 = vmatprep.subr.mxu0 0.0
    %581 = vmatpush1.msra.mxu0 0.0
    %582 = vmatprep.subr.mxu0 0.0
    %583 = vmatpush1.msra.mxu0 0.0
    %584 = vmatprep.subr.mxu0 0.0
    %585 = vmatpush1.msra.mxu0 0.0
    %586 = vmatprep.subr.mxu0 0.0
    %587 = vmatpush1.msra.mxu0 0.0
    %588 = vmatprep.subr.mxu0 0.0
    %589 = vmatpush1.msra.mxu0 0.0
    %590 = vmatprep.subr.mxu0 0.0
    %591 = vmatpush1.msra.mxu0 0.0
    %592 = vmatprep.mubr.f32.mxu0 0.0
    %593 = vmatmul.mubr.f32.gmra.mrb[0].mxu0 %v526
    %v594 = vpop.f32.mrb[0].mxu0
    %v595 = vadd.f32 0.0, %v594
    %v596 = vpop.f32.mrb[0].mxu0
    %597 = vdwg.mxu0
    %598 = vrot.lane.b32.xlu0 %v324, 64
    %v599 = vpop.permute.xlu0 %598
    %v602 = vsel %vm334, %v521, 0
    %604 = vmatprep.subr.mxu0 0.0
    %605 = vmatpush1.msra.mxu0 %v599
    %606 = vmatprep.subr.mxu0 0.0
    %607 = vmatpush1.msra.mxu0 0.0
    %608 = vmatprep.subr.mxu0 0.0
    %609 = vmatpush1.msra.mxu0 0.0
    %610 = vmatprep.subr.mxu0 0.0
    %611 = vmatpush1.msra.mxu0 0.0
    %612 = vmatprep.subr.mxu0 0.0
    %613 = vmatpush1.msra.mxu0 0.0
    %614 = vmatprep.subr.mxu0 0.0
    %615 = vmatpush1.msra.mxu0 0.0
    %616 = vmatprep.subr.mxu0 0.0
    %617 = vmatpush1.msra.mxu0 0.0
    %618 = vmatprep.subr.mxu0 0.0
    %619 = vmatpush1.msra.mxu0 0.0
    %620 = vmatprep.subr.mxu0 0.0
    %621 = vmatpush1.msra.mxu0 0.0
    %622 = vmatprep.subr.mxu0 0.0
    %623 = vmatpush1.msra.mxu0 0.0
    %624 = vmatprep.subr.mxu0 0.0
    %625 = vmatpush1.msra.mxu0 0.0
    %626 = vmatprep.subr.mxu0 0.0
    %627 = vmatpush1.msra.mxu0 0.0
    %628 = vmatprep.subr.mxu0 0.0
    %629 = vmatpush1.msra.mxu0 0.0
    %630 = vmatprep.subr.mxu0 0.0
    %631 = vmatpush1.msra.mxu0 0.0
    %632 = vmatprep.subr.mxu0 0.0
    %633 = vmatpush1.msra.mxu0 0.0
    %634 = vmatprep.subr.mxu0 0.0
    %635 = vmatpush1.msra.mxu0 0.0
    %636 = vmatprep.subr.mxu0 0.0
    %637 = vmatpush1.msra.mxu0 0.0
    %638 = vmatprep.subr.mxu0 0.0
    %639 = vmatpush1.msra.mxu0 0.0
    %640 = vmatprep.subr.mxu0 0.0
    %641 = vmatpush1.msra.mxu0 0.0
    %642 = vmatprep.subr.mxu0 0.0
    %643 = vmatpush1.msra.mxu0 0.0
    %644 = vmatprep.subr.mxu0 0.0
    %645 = vmatpush1.msra.mxu0 0.0
    %646 = vmatprep.subr.mxu0 0.0
    %647 = vmatpush1.msra.mxu0 0.0
    %648 = vmatprep.subr.mxu0 0.0
    %649 = vmatpush1.msra.mxu0 0.0
    %650 = vmatprep.subr.mxu0 0.0
    %651 = vmatpush1.msra.mxu0 0.0
    %652 = vmatprep.subr.mxu0 0.0
    %653 = vmatpush1.msra.mxu0 0.0
    %654 = vmatprep.subr.mxu0 0.0
    %655 = vmatpush1.msra.mxu0 0.0
    %656 = vmatprep.subr.mxu0 0.0
    %657 = vmatpush1.msra.mxu0 0.0
    %658 = vmatprep.subr.mxu0 0.0
    %659 = vmatpush1.msra.mxu0 0.0
    %660 = vmatprep.subr.mxu0 0.0
    %661 = vmatpush1.msra.mxu0 0.0
    %662 = vmatprep.subr.mxu0 0.0
    %663 = vmatpush1.msra.mxu0 0.0
    %664 = vmatprep.subr.mxu0 0.0
    %665 = vmatpush1.msra.mxu0 0.0
    %666 = vmatprep.subr.mxu0 0.0
    %667 = vmatpush1.msra.mxu0 0.0
    %668 = vmatprep.mubr.f32.mxu0 0.0
    %669 = vmatmul.mubr.f32.gmra.mrb[0].mxu0 %v602
    %v670 = vpop.f32.mrb[0].mxu0
    %v671 = vadd.f32 0.0, %v670
    %v672 = vpop.f32.mrb[0].mxu0
    %673 = vdwg.mxu0
    %674 = vrot.lane.b32.xlu0 %v319, 120
    %v675 = vpop.permute.xlu0 %674
    %676 = vrot.lane.b32.xlu0 %v319, 88
    %v677 = vpop.permute.xlu0 %676
    %v678 = vsel %vm334, %v675, 0
    %v680 = vsel %vm334, %v677, 0
    %682 = vmatprep.subr.mxu0 0.0
    %683 = vmatpush1.xpose.msra.mxu0 %v680
    %684 = vmatprep.subr.mxu0 0.0
    %685 = vmatpush1.xpose.msra.mxu0 0.0
    %686 = vmatprep.subr.mxu0 0.0
    %687 = vmatpush1.xpose.msra.mxu0 0.0
    %688 = vmatprep.subr.mxu0 0.0
    %689 = vmatpush1.xpose.msra.mxu0 0.0
    %690 = vmatprep.subr.mxu0 0.0
    %691 = vmatpush1.xpose.msra.mxu0 0.0
    %692 = vmatprep.subr.mxu0 0.0
    %693 = vmatpush1.xpose.msra.mxu0 0.0
    %694 = vmatprep.subr.mxu0 0.0
    %695 = vmatpush1.xpose.msra.mxu0 0.0
    %696 = vmatprep.subr.mxu0 0.0
    %697 = vmatpush1.xpose.msra.mxu0 0.0
    %698 = vmatprep.subr.mxu0 0.0
    %699 = vmatpush1.xpose.msra.mxu0 0.0
    %700 = vmatprep.subr.mxu0 0.0
    %701 = vmatpush1.xpose.msra.mxu0 0.0
    %702 = vmatprep.subr.mxu0 0.0
    %703 = vmatpush1.xpose.msra.mxu0 0.0
    %704 = vmatprep.subr.mxu0 0.0
    %705 = vmatpush1.xpose.msra.mxu0 0.0
    %706 = vmatprep.subr.mxu0 0.0
    %707 = vmatpush1.xpose.msra.mxu0 0.0
    %708 = vmatprep.subr.mxu0 0.0
    %709 = vmatpush1.xpose.msra.mxu0 0.0
    %710 = vmatprep.subr.mxu0 0.0
    %711 = vmatpush1.xpose.msra.mxu0 0.0
    %712 = vmatprep.subr.mxu0 0.0
    %713 = vmatpush1.xpose.msra.mxu0 0.0
    %714 = vmatprep.subr.mxu0 0.0
    %715 = vmatpush1.xpose.msra.mxu0 0.0
    %716 = vmatprep.subr.mxu0 0.0
    %717 = vmatpush1.xpose.msra.mxu0 0.0
    %718 = vmatprep.subr.mxu0 0.0
    %719 = vmatpush1.xpose.msra.mxu0 0.0
    %720 = vmatprep.subr.mxu0 0.0
    %721 = vmatpush1.xpose.msra.mxu0 0.0
    %722 = vmatprep.subr.mxu0 0.0
    %723 = vmatpush1.xpose.msra.mxu0 0.0
    %724 = vmatprep.subr.mxu0 0.0
    %725 = vmatpush1.xpose.msra.mxu0 0.0
    %726 = vmatprep.subr.mxu0 0.0
    %727 = vmatpush1.xpose.msra.mxu0 0.0
    %728 = vmatprep.subr.mxu0 0.0
    %729 = vmatpush1.xpose.msra.mxu0 0.0
    %730 = vmatprep.subr.mxu0 0.0
    %731 = vmatpush1.xpose.msra.mxu0 0.0
    %732 = vmatprep.subr.mxu0 0.0
    %733 = vmatpush1.xpose.msra.mxu0 0.0
    %734 = vmatprep.subr.mxu0 0.0
    %735 = vmatpush1.xpose.msra.mxu0 0.0
    %736 = vmatprep.subr.mxu0 0.0
    %737 = vmatpush1.xpose.msra.mxu0 0.0
    %738 = vmatprep.subr.mxu0 0.0
    %739 = vmatpush1.xpose.msra.mxu0 0.0
    %740 = vmatprep.subr.mxu0 0.0
    %741 = vmatpush1.xpose.msra.mxu0 0.0
    %742 = vmatprep.subr.mxu0 0.0
    %743 = vmatpush1.xpose.msra.mxu0 0.0
    %744 = vmatprep.subr.mxu0 0.0
    %745 = vmatpush1.xpose.msra.mxu0 0.0
    %746 = vmatprep.mubr.f32.mxu0 0.0
    %747 = vmatmul.mubr.f32.gmra.mrb[0].mxu0 %v678
    %v748 = vpop.f32.mrb[0].mxu0
    %v749 = vadd.f32 0.0, %v748
    %v750 = vpop.f32.mrb[0].mxu0
    %751 = vdwg.mxu0
    %752 = vrot.lane.b32.xlu0 %v324, 120
    %v753 = vpop.permute.xlu0 %752
    %754 = vrot.lane.b32.xlu0 %v324, 88
    %v755 = vpop.permute.xlu0 %754
    %v756 = vsel %vm334, %v753, 0
    %v758 = vsel %vm334, %v755, 0
    %760 = vmatprep.subr.mxu0 0.0
    %761 = vmatpush1.xpose.msra.mxu0 %v758
    %762 = vmatprep.subr.mxu0 0.0
    %763 = vmatpush1.xpose.msra.mxu0 0.0
    %764 = vmatprep.subr.mxu0 0.0
    %765 = vmatpush1.xpose.msra.mxu0 0.0
    %766 = vmatprep.subr.mxu0 0.0
    %767 = vmatpush1.xpose.msra.mxu0 0.0
    %768 = vmatprep.subr.mxu0 0.0
    %769 = vmatpush1.xpose.msra.mxu0 0.0
    %770 = vmatprep.subr.mxu0 0.0
    %771 = vmatpush1.xpose.msra.mxu0 0.0
    %772 = vmatprep.subr.mxu0 0.0
    %773 = vmatpush1.xpose.msra.mxu0 0.0
    %774 = vmatprep.subr.mxu0 0.0
    %775 = vmatpush1.xpose.msra.mxu0 0.0
    %776 = vmatprep.subr.mxu0 0.0
    %777 = vmatpush1.xpose.msra.mxu0 0.0
    %778 = vmatprep.subr.mxu0 0.0
    %779 = vmatpush1.xpose.msra.mxu0 0.0
    %780 = vmatprep.subr.mxu0 0.0
    %781 = vmatpush1.xpose.msra.mxu0 0.0
    %782 = vmatprep.subr.mxu0 0.0
    %783 = vmatpush1.xpose.msra.mxu0 0.0
    %784 = vmatprep.subr.mxu0 0.0
    %785 = vmatpush1.xpose.msra.mxu0 0.0
    %786 = vmatprep.subr.mxu0 0.0
    %787 = vmatpush1.xpose.msra.mxu0 0.0
    %788 = vmatprep.subr.mxu0 0.0
    %789 = vmatpush1.xpose.msra.mxu0 0.0
    %790 = vmatprep.subr.mxu0 0.0
    %791 = vmatpush1.xpose.msra.mxu0 0.0
    %792 = vmatprep.subr.mxu0 0.0
    %793 = vmatpush1.xpose.msra.mxu0 0.0
    %794 = vmatprep.subr.mxu0 0.0
    %795 = vmatpush1.xpose.msra.mxu0 0.0
    %796 = vmatprep.subr.mxu0 0.0
    %797 = vmatpush1.xpose.msra.mxu0 0.0
    %798 = vmatprep.subr.mxu0 0.0
    %799 = vmatpush1.xpose.msra.mxu0 0.0
    %800 = vmatprep.subr.mxu0 0.0
    %801 = vmatpush1.xpose.msra.mxu0 0.0
    %802 = vmatprep.subr.mxu0 0.0
    %803 = vmatpush1.xpose.msra.mxu0 0.0
    %804 = vmatprep.subr.mxu0 0.0
    %805 = vmatpush1.xpose.msra.mxu0 0.0
    %806 = vmatprep.subr.mxu0 0.0
    %807 = vmatpush1.xpose.msra.mxu0 0.0
    %808 = vmatprep.subr.mxu0 0.0
    %809 = vmatpush1.xpose.msra.mxu0 0.0
    %810 = vmatprep.subr.mxu0 0.0
    %811 = vmatpush1.xpose.msra.mxu0 0.0
    %812 = vmatprep.subr.mxu0 0.0
    %813 = vmatpush1.xpose.msra.mxu0 0.0
    %814 = vmatprep.subr.mxu0 0.0
    %815 = vmatpush1.xpose.msra.mxu0 0.0
    %816 = vmatprep.subr.mxu0 0.0
    %817 = vmatpush1.xpose.msra.mxu0 0.0
    %818 = vmatprep.subr.mxu0 0.0
    %819 = vmatpush1.xpose.msra.mxu0 0.0
    %820 = vmatprep.subr.mxu0 0.0
    %821 = vmatpush1.xpose.msra.mxu0 0.0
    %822 = vmatprep.subr.mxu0 0.0
    %823 = vmatpush1.xpose.msra.mxu0 0.0
    %824 = vmatprep.mubr.f32.mxu0 0.0
    %825 = vmatmul.mubr.f32.gmra.mrb[0].mxu0 %v756
    %v826 = vpop.f32.mrb[0].mxu0
    %v827 = vadd.f32 0.0, %v826
    %v828 = vpop.f32.mrb[0].mxu0
    %829 = vdwg.mxu0
    %v830 = vmul.f32 %v749, 0.35355338
    %v831 = vmul.f32 %v827, 0.35355338
    %v832 = vadd.f32 %v830, %v491
    %v833 = vadd.f32 %v831, %v495
    %v834 = vsel %vm334, %v832, -inf
    %835 = vmax.xlane.f32.xlu0 %v834
    %v836 = vpop.xlane.xlu0 %835
    %v837 = vsel %vm334, %v833, -inf
    %838 = vmax.xlane.f32.xlu0 %v837
    %v839 = vpop.xlane.xlu0 %838
    %v840 = vsub.f32 %v832, %v836
    %v841 = vsub.f32 %v833, %v839
    %v842 = vmul.f32 %v840, 1.442695
    %v843 = vpow.pop %v842
    %v844 = vmul.f32 %v841, 1.442695
    %v845 = vpow.pop %v844
    %v846 = vsel %vm334, %v843, 0.0
    %847 = vadd.xlane.f32.xlu0 %v846
    %v848 = vpop.xlane.xlu0 %847
    %v849 = vsel %vm334, %v845, 0.0
    %850 = vadd.xlane.f32.xlu0 %v849
    %v851 = vpop.xlane.xlu0 %850
    %v852 = vrcp.pop %v848
    %v853 = vrcp.pop %v851
    %v854 = vmul.f32 %v843, %v852
    %v855 = vmul.f32 %v845, %v853
    %856 = vrot.lane.b32.xlu0 %v319, 56
    %v857 = vpop.permute.xlu0 %856
    %v860 = vsel %vm334, %v854, 0
    %862 = vmatprep.subr.mxu0 0.0
    %863 = vmatpush1.msra.mxu0 %v857
    %864 = vmatprep.subr.mxu0 0.0
    %865 = vmatpush1.msra.mxu0 0.0
    %866 = vmatprep.subr.mxu0 0.0
    %867 = vmatpush1.msra.mxu0 0.0
    %868 = vmatprep.subr.mxu0 0.0
    %869 = vmatpush1.msra.mxu0 0.0
    %870 = vmatprep.subr.mxu0 0.0
    %871 = vmatpush1.msra.mxu0 0.0
    %872 = vmatprep.subr.mxu0 0.0
    %873 = vmatpush1.msra.mxu0 0.0
    %874 = vmatprep.subr.mxu0 0.0
    %875 = vmatpush1.msra.mxu0 0.0
    %876 = vmatprep.subr.mxu0 0.0
    %877 = vmatpush1.msra.mxu0 0.0
    %878 = vmatprep.subr.mxu0 0.0
    %879 = vmatpush1.msra.mxu0 0.0
    %880 = vmatprep.subr.mxu0 0.0
    %881 = vmatpush1.msra.mxu0 0.0
    %882 = vmatprep.subr.mxu0 0.0
    %883 = vmatpush1.msra.mxu0 0.0
    %884 = vmatprep.subr.mxu0 0.0
    %885 = vmatpush1.msra.mxu0 0.0
    %886 = vmatprep.subr.mxu0 0.0
    %887 = vmatpush1.msra.mxu0 0.0
    %888 = vmatprep.subr.mxu0 0.0
    %889 = vmatpush1.msra.mxu0 0.0
    %890 = vmatprep.subr.mxu0 0.0
    %891 = vmatpush1.msra.mxu0 0.0
    %892 = vmatprep.subr.mxu0 0.0
    %893 = vmatpush1.msra.mxu0 0.0
    %894 = vmatprep.subr.mxu0 0.0
    %895 = vmatpush1.msra.mxu0 0.0
    %896 = vmatprep.subr.mxu0 0.0
    %897 = vmatpush1.msra.mxu0 0.0
    %898 = vmatprep.subr.mxu0 0.0
    %899 = vmatpush1.msra.mxu0 0.0
    %900 = vmatprep.subr.mxu0 0.0
    %901 = vmatpush1.msra.mxu0 0.0
    %902 = vmatprep.subr.mxu0 0.0
    %903 = vmatpush1.msra.mxu0 0.0
    %904 = vmatprep.subr.mxu0 0.0
    %905 = vmatpush1.msra.mxu0 0.0
    %906 = vmatprep.subr.mxu0 0.0
    %907 = vmatpush1.msra.mxu0 0.0
    %908 = vmatprep.subr.mxu0 0.0
    %909 = vmatpush1.msra.mxu0 0.0
    %910 = vmatprep.subr.mxu0 0.0
    %911 = vmatpush1.msra.mxu0 0.0
    %912 = vmatprep.subr.mxu0 0.0
    %913 = vmatpush1.msra.mxu0 0.0
    %914 = vmatprep.subr.mxu0 0.0
    %915 = vmatpush1.msra.mxu0 0.0
    %916 = vmatprep.subr.mxu0 0.0
    %917 = vmatpush1.msra.mxu0 0.0
    %918 = vmatprep.subr.mxu0 0.0
    %919 = vmatpush1.msra.mxu0 0.0
    %920 = vmatprep.subr.mxu0 0.0
    %921 = vmatpush1.msra.mxu0 0.0
    %922 = vmatprep.subr.mxu0 0.0
    %923 = vmatpush1.msra.mxu0 0.0
    %924 = vmatprep.subr.mxu0 0.0
    %925 = vmatpush1.msra.mxu0 0.0
    %926 = vmatprep.mubr.f32.mxu0 0.0
    %927 = vmatmul.mubr.f32.gmra.mrb[0].mxu0 %v860
    %v928 = vpop.f32.mrb[0].mxu0
    %v929 = vadd.f32 0.0, %v928
    %v930 = vpop.f32.mrb[0].mxu0
    %931 = vdwg.mxu0
    %932 = vrot.lane.b32.xlu0 %v324, 56
    %v933 = vpop.permute.xlu0 %932
    %v936 = vsel %vm334, %v855, 0
    %938 = vmatprep.subr.mxu0 0.0
    %939 = vmatpush1.msra.mxu0 %v933
    %940 = vmatprep.subr.mxu0 0.0
    %941 = vmatpush1.msra.mxu0 0.0
    %942 = vmatprep.subr.mxu0 0.0
    %943 = vmatpush1.msra.mxu0 0.0
    %944 = vmatprep.subr.mxu0 0.0
    %945 = vmatpush1.msra.mxu0 0.0
    %946 = vmatprep.subr.mxu0 0.0
    %947 = vmatpush1.msra.mxu0 0.0
    %948 = vmatprep.subr.mxu0 0.0
    %949 = vmatpush1.msra.mxu0 0.0
    %950 = vmatprep.subr.mxu0 0.0
    %951 = vmatpush1.msra.mxu0 0.0
    %952 = vmatprep.subr.mxu0 0.0
    %953 = vmatpush1.msra.mxu0 0.0
    %954 = vmatprep.subr.mxu0 0.0
    %955 = vmatpush1.msra.mxu0 0.0
    %956 = vmatprep.subr.mxu0 0.0
    %957 = vmatpush1.msra.mxu0 0.0
    %958 = vmatprep.subr.mxu0 0.0
    %959 = vmatpush1.msra.mxu0 0.0
    %960 = vmatprep.subr.mxu0 0.0
    %961 = vmatpush1.msra.mxu0 0.0
    %962 = vmatprep.subr.mxu0 0.0
    %963 = vmatpush1.msra.mxu0 0.0
    %964 = vmatprep.subr.mxu0 0.0
    %965 = vmatpush1.msra.mxu0 0.0
    %966 = vmatprep.subr.mxu0 0.0
    %967 = vmatpush1.msra.mxu0 0.0
    %968 = vmatprep.subr.mxu0 0.0
    %969 = vmatpush1.msra.mxu0 0.0
    %970 = vmatprep.subr.mxu0 0.0
    %971 = vmatpush1.msra.mxu0 0.0
    %972 = vmatprep.subr.mxu0 0.0
    %973 = vmatpush1.msra.mxu0 0.0
    %974 = vmatprep.subr.mxu0 0.0
    %975 = vmatpush1.msra.mxu0 0.0
    %976 = vmatprep.subr.mxu0 0.0
    %977 = vmatpush1.msra.mxu0 0.0
    %978 = vmatprep.subr.mxu0 0.0
    %979 = vmatpush1.msra.mxu0 0.0
    %980 = vmatprep.subr.mxu0 0.0
    %981 = vmatpush1.msra.mxu0 0.0
    %982 = vmatprep.subr.mxu0 0.0
    %983 = vmatpush1.msra.mxu0 0.0
    %984 = vmatprep.subr.mxu0 0.0
    %985 = vmatpush1.msra.mxu0 0.0
    %986 = vmatprep.subr.mxu0 0.0
    %987 = vmatpush1.msra.mxu0 0.0
    %988 = vmatprep.subr.mxu0 0.0
    %989 = vmatpush1.msra.mxu0 0.0
    %990 = vmatprep.subr.mxu0 0.0
    %991 = vmatpush1.msra.mxu0 0.0
    %992 = vmatprep.subr.mxu0 0.0
    %993 = vmatpush1.msra.mxu0 0.0
    %994 = vmatprep.subr.mxu0 0.0
    %995 = vmatpush1.msra.mxu0 0.0
    %996 = vmatprep.subr.mxu0 0.0
    %997 = vmatpush1.msra.mxu0 0.0
    %998 = vmatprep.subr.mxu0 0.0
    %999 = vmatpush1.msra.mxu0 0.0
    %1000 = vmatprep.subr.mxu0 0.0
    %1001 = vmatpush1.msra.mxu0 0.0
    %1002 = vmatprep.mubr.f32.mxu0 0.0
    %1003 = vmatmul.mubr.f32.gmra.mrb[0].mxu0 %v936
    %v1004 = vpop.f32.mrb[0].mxu0
    %v1005 = vadd.f32 0.0, %v1004
    %v1006 = vpop.f32.mrb[0].mxu0
    %1007 = vdwg.mxu0
    %v1009 = vsel %vm334, %v929, 0
    %v1012 = vsel %vm334, %v1005, 0
    %1014 = vmatprep.subr.mxu0 0.0
    %1015 = vmatpush1.msra.mxu0 %v328
    %1016 = vmatprep.subr.mxu0 0.0
    %1017 = vmatpush1.msra.mxu0 0.0
    %1018 = vmatprep.subr.mxu0 0.0
    %1019 = vmatpush1.msra.mxu0 0.0
    %1020 = vmatprep.subr.mxu0 0.0
    %1021 = vmatpush1.msra.mxu0 0.0
    %1022 = vmatprep.subr.mxu0 0.0
    %1023 = vmatpush1.msra.mxu0 0.0
    %1024 = vmatprep.subr.mxu0 0.0
    %1025 = vmatpush1.msra.mxu0 0.0
    %1026 = vmatprep.subr.mxu0 0.0
    %1027 = vmatpush1.msra.mxu0 0.0
    %1028 = vmatprep.subr.mxu0 0.0
    %1029 = vmatpush1.msra.mxu0 0.0
    %1030 = vmatprep.subr.mxu0 0.0
    %1031 = vmatpush1.msra.mxu0 0.0
    %1032 = vmatprep.subr.mxu0 0.0
    %1033 = vmatpush1.msra.mxu0 0.0
    %1034 = vmatprep.subr.mxu0 0.0
    %1035 = vmatpush1.msra.mxu0 0.0
    %1036 = vmatprep.subr.mxu0 0.0
    %1037 = vmatpush1.msra.mxu0 0.0
    %1038 = vmatprep.subr.mxu0 0.0
    %1039 = vmatpush1.msra.mxu0 0.0
    %1040 = vmatprep.subr.mxu0 0.0
    %1041 = vmatpush1.msra.mxu0 0.0
    %1042 = vmatprep.subr.mxu0 0.0
    %1043 = vmatpush1.msra.mxu0 0.0
    %1044 = vmatprep.subr.mxu0 0.0
    %1045 = vmatpush1.msra.mxu0 0.0
    %1046 = vmatprep.subr.mxu0 0.0
    %1047 = vmatpush1.msra.mxu0 0.0
    %1048 = vmatprep.subr.mxu0 0.0
    %1049 = vmatpush1.msra.mxu0 0.0
    %1050 = vmatprep.subr.mxu0 0.0
    %1051 = vmatpush1.msra.mxu0 0.0
    %1052 = vmatprep.subr.mxu0 0.0
    %1053 = vmatpush1.msra.mxu0 0.0
    %1054 = vmatprep.subr.mxu0 0.0
    %1055 = vmatpush1.msra.mxu0 0.0
    %1056 = vmatprep.subr.mxu0 0.0
    %1057 = vmatpush1.msra.mxu0 0.0
    %1058 = vmatprep.subr.mxu0 0.0
    %1059 = vmatpush1.msra.mxu0 0.0
    %1060 = vmatprep.subr.mxu0 0.0
    %1061 = vmatpush1.msra.mxu0 0.0
    %1062 = vmatprep.subr.mxu0 0.0
    %1063 = vmatpush1.msra.mxu0 0.0
    %1064 = vmatprep.subr.mxu0 0.0
    %1065 = vmatpush1.msra.mxu0 0.0
    %1066 = vmatprep.subr.mxu0 0.0
    %1067 = vmatpush1.msra.mxu0 0.0
    %1068 = vmatprep.subr.mxu0 0.0
    %1069 = vmatpush1.msra.mxu0 0.0
    %1070 = vmatprep.subr.mxu0 0.0
    %1071 = vmatpush1.msra.mxu0 0.0
    %1072 = vmatprep.subr.mxu0 0.0
    %1073 = vmatpush1.msra.mxu0 0.0
    %1074 = vmatprep.subr.mxu0 0.0
    %1075 = vmatpush1.msra.mxu0 0.0
    %1076 = vmatprep.subr.mxu0 0.0
    %1077 = vmatpush1.msra.mxu0 0.0
    %1078 = vmatprep.mubr.f32.mxu0 0.0
    %1079 = vmatmul.mubr.f32.gmra.mrb[0].mxu0 %v1009
    %v1080 = vpop.f32.mrb[0].mxu0
    %v1081 = vadd.f32 0.0, %v1080
    %v1082 = vpop.f32.mrb[0].mxu0
    %1083 = vmatprep.mubr.f32.mxu0 0.0
    %1084 = vmatmul.mubr.f32.gmra.mrb[0].mxu0 %v1012
    %v1085 = vpop.f32.mrb[0].mxu0
    %v1086 = vadd.f32 0.0, %v1085
    %v1087 = vpop.f32.mrb[0].mxu0
    %1088 = vdwg.mxu0
    %v1090 = vsel %vm334, %v595, 0
    %v1093 = vsel %vm334, %v671, 0
    %1095 = vmatprep.subr.mxu0 0.0
    %1096 = vmatpush1.msra.mxu0 %v327
    %1097 = vmatprep.subr.mxu0 0.0
    %1098 = vmatpush1.msra.mxu0 0.0
    %1099 = vmatprep.subr.mxu0 0.0
    %1100 = vmatpush1.msra.mxu0 0.0
    %1101 = vmatprep.subr.mxu0 0.0
    %1102 = vmatpush1.msra.mxu0 0.0
    %1103 = vmatprep.subr.mxu0 0.0
    %1104 = vmatpush1.msra.mxu0 0.0
    %1105 = vmatprep.subr.mxu0 0.0
    %1106 = vmatpush1.msra.mxu0 0.0
    %1107 = vmatprep.subr.mxu0 0.0
    %1108 = vmatpush1.msra.mxu0 0.0
    %1109 = vmatprep.subr.mxu0 0.0
    %1110 = vmatpush1.msra.mxu0 0.0
    %1111 = vmatprep.subr.mxu0 0.0
    %1112 = vmatpush1.msra.mxu0 0.0
    %1113 = vmatprep.subr.mxu0 0.0
    %1114 = vmatpush1.msra.mxu0 0.0
    %1115 = vmatprep.subr.mxu0 0.0
    %1116 = vmatpush1.msra.mxu0 0.0
    %1117 = vmatprep.subr.mxu0 0.0
    %1118 = vmatpush1.msra.mxu0 0.0
    %1119 = vmatprep.subr.mxu0 0.0
    %1120 = vmatpush1.msra.mxu0 0.0
    %1121 = vmatprep.subr.mxu0 0.0
    %1122 = vmatpush1.msra.mxu0 0.0
    %1123 = vmatprep.subr.mxu0 0.0
    %1124 = vmatpush1.msra.mxu0 0.0
    %1125 = vmatprep.subr.mxu0 0.0
    %1126 = vmatpush1.msra.mxu0 0.0
    %1127 = vmatprep.subr.mxu0 0.0
    %1128 = vmatpush1.msra.mxu0 0.0
    %1129 = vmatprep.subr.mxu0 0.0
    %1130 = vmatpush1.msra.mxu0 0.0
    %1131 = vmatprep.subr.mxu0 0.0
    %1132 = vmatpush1.msra.mxu0 0.0
    %1133 = vmatprep.subr.mxu0 0.0
    %1134 = vmatpush1.msra.mxu0 0.0
    %1135 = vmatprep.subr.mxu0 0.0
    %1136 = vmatpush1.msra.mxu0 0.0
    %1137 = vmatprep.subr.mxu0 0.0
    %1138 = vmatpush1.msra.mxu0 0.0
    %1139 = vmatprep.subr.mxu0 0.0
    %1140 = vmatpush1.msra.mxu0 0.0
    %1141 = vmatprep.subr.mxu0 0.0
    %1142 = vmatpush1.msra.mxu0 0.0
    %1143 = vmatprep.subr.mxu0 0.0
    %1144 = vmatpush1.msra.mxu0 0.0
    %1145 = vmatprep.subr.mxu0 0.0
    %1146 = vmatpush1.msra.mxu0 0.0
    %1147 = vmatprep.subr.mxu0 0.0
    %1148 = vmatpush1.msra.mxu0 0.0
    %1149 = vmatprep.subr.mxu0 0.0
    %1150 = vmatpush1.msra.mxu0 0.0
    %1151 = vmatprep.subr.mxu0 0.0
    %1152 = vmatpush1.msra.mxu0 0.0
    %1153 = vmatprep.subr.mxu0 0.0
    %1154 = vmatpush1.msra.mxu0 0.0
    %1155 = vmatprep.subr.mxu0 0.0
    %1156 = vmatpush1.msra.mxu0 0.0
    %1157 = vmatprep.subr.mxu0 0.0
    %1158 = vmatpush1.msra.mxu0 0.0
    %1159 = vmatprep.mubr.f32.mxu0 0.0
    %1160 = vmatmul.mubr.f32.gmra.mrb[0].mxu0 %v1090
    %v1161 = vpop.f32.mrb[0].mxu0
    %v1162 = vadd.f32 %v1081, %v1161
    %v1163 = vpop.f32.mrb[0].mxu0
    %1164 = vmatprep.mubr.f32.mxu0 0.0
    %1165 = vmatmul.mubr.f32.gmra.mrb[0].mxu0 %v1093
    %v1166 = vpop.f32.mrb[0].mxu0
    %v1167 = vadd.f32 %v1086, %v1166
    %v1168 = vpop.f32.mrb[0].mxu0
    %1169 = vdwg.mxu0
    %1170 = vrot.lane.b32.xlu0 %v319, 112
    %v1171 = vpop.permute.xlu0 %1170
    %1172 = vrot.lane.b32.xlu0 %v319, 80
    %v1173 = vpop.permute.xlu0 %1172
    %v1174 = vsel %vm334, %v1171, 0
    %v1176 = vsel %vm334, %v1173, 0
    %1178 = vmatprep.subr.mxu0 0.0
    %1179 = vmatpush1.xpose.msra.mxu0 %v1176
    %1180 = vmatprep.subr.mxu0 0.0
    %1181 = vmatpush1.xpose.msra.mxu0 0.0
    %1182 = vmatprep.subr.mxu0 0.0
    %1183 = vmatpush1.xpose.msra.mxu0 0.0
    %1184 = vmatprep.subr.mxu0 0.0
    %1185 = vmatpush1.xpose.msra.mxu0 0.0
    %1186 = vmatprep.subr.mxu0 0.0
    %1187 = vmatpush1.xpose.msra.mxu0 0.0
    %1188 = vmatprep.subr.mxu0 0.0
    %1189 = vmatpush1.xpose.msra.mxu0 0.0
    %1190 = vmatprep.subr.mxu0 0.0
    %1191 = vmatpush1.xpose.msra.mxu0 0.0
    %1192 = vmatprep.subr.mxu0 0.0
    %1193 = vmatpush1.xpose.msra.mxu0 0.0
    %1194 = vmatprep.subr.mxu0 0.0
    %1195 = vmatpush1.xpose.msra.mxu0 0.0
    %1196 = vmatprep.subr.mxu0 0.0
    %1197 = vmatpush1.xpose.msra.mxu0 0.0
    %1198 = vmatprep.subr.mxu0 0.0
    %1199 = vmatpush1.xpose.msra.mxu0 0.0
    %1200 = vmatprep.subr.mxu0 0.0
    %1201 = vmatpush1.xpose.msra.mxu0 0.0
    %1202 = vmatprep.subr.mxu0 0.0
    %1203 = vmatpush1.xpose.msra.mxu0 0.0
    %1204 = vmatprep.subr.mxu0 0.0
    %1205 = vmatpush1.xpose.msra.mxu0 0.0
    %1206 = vmatprep.subr.mxu0 0.0
    %1207 = vmatpush1.xpose.msra.mxu0 0.0
    %1208 = vmatprep.subr.mxu0 0.0
    %1209 = vmatpush1.xpose.msra.mxu0 0.0
    %1210 = vmatprep.subr.mxu0 0.0
    %1211 = vmatpush1.xpose.msra.mxu0 0.0
    %1212 = vmatprep.subr.mxu0 0.0
    %1213 = vmatpush1.xpose.msra.mxu0 0.0
    %1214 = vmatprep.subr.mxu0 0.0
    %1215 = vmatpush1.xpose.msra.mxu0 0.0
    %1216 = vmatprep.subr.mxu0 0.0
    %1217 = vmatpush1.xpose.msra.mxu0 0.0
    %1218 = vmatprep.subr.mxu0 0.0
    %1219 = vmatpush1.xpose.msra.mxu0 0.0
    %1220 = vmatprep.subr.mxu0 0.0
    %1221 = vmatpush1.xpose.msra.mxu0 0.0
    %1222 = vmatprep.subr.mxu0 0.0
    %1223 = vmatpush1.xpose.msra.mxu0 0.0
    %1224 = vmatprep.subr.mxu0 0.0
    %1225 = vmatpush1.xpose.msra.mxu0 0.0
    %1226 = vmatprep.subr.mxu0 0.0
    %1227 = vmatpush1.xpose.msra.mxu0 0.0
    %1228 = vmatprep.subr.mxu0 0.0
    %1229 = vmatpush1.xpose.msra.mxu0 0.0
    %1230 = vmatprep.subr.mxu0 0.0
    %1231 = vmatpush1.xpose.msra.mxu0 0.0
    %1232 = vmatprep.subr.mxu0 0.0
    %1233 = vmatpush1.xpose.msra.mxu0 0.0
    %1234 = vmatprep.subr.mxu0 0.0
    %1235 = vmatpush1.xpose.msra.mxu0 0.0
    %1236 = vmatprep.subr.mxu0 0.0
    %1237 = vmatpush1.xpose.msra.mxu0 0.0
    %1238 = vmatprep.subr.mxu0 0.0
    %1239 = vmatpush1.xpose.msra.mxu0 0.0
    %1240 = vmatprep.subr.mxu0 0.0
    %1241 = vmatpush1.xpose.msra.mxu0 0.0
    %1242 = vmatprep.mubr.f32.mxu0 0.0
    %1243 = vmatmul.mubr.f32.gmra.mrb[0].mxu0 %v1174
    %v1244 = vpop.f32.mrb[0].mxu0
    %v1245 = vadd.f32 0.0, %v1244
    %v1246 = vpop.f32.mrb[0].mxu0
    %1247 = vdwg.mxu0
    %1248 = vrot.lane.b32.xlu0 %v324, 112
    %v1249 = vpop.permute.xlu0 %1248
    %1250 = vrot.lane.b32.xlu0 %v324, 80
    %v1251 = vpop.permute.xlu0 %1250
    %v1252 = vsel %vm334, %v1249, 0
    %v1254 = vsel %vm334, %v1251, 0
    %1256 = vmatprep.subr.mxu0 0.0
    %1257 = vmatpush1.xpose.msra.mxu0 %v1254
    %1258 = vmatprep.subr.mxu0 0.0
    %1259 = vmatpush1.xpose.msra.mxu0 0.0
    %1260 = vmatprep.subr.mxu0 0.0
    %1261 = vmatpush1.xpose.msra.mxu0 0.0
    %1262 = vmatprep.subr.mxu0 0.0
    %1263 = vmatpush1.xpose.msra.mxu0 0.0
    %1264 = vmatprep.subr.mxu0 0.0
    %1265 = vmatpush1.xpose.msra.mxu0 0.0
    %1266 = vmatprep.subr.mxu0 0.0
    %1267 = vmatpush1.xpose.msra.mxu0 0.0
    %1268 = vmatprep.subr.mxu0 0.0
    %1269 = vmatpush1.xpose.msra.mxu0 0.0
    %1270 = vmatprep.subr.mxu0 0.0
    %1271 = vmatpush1.xpose.msra.mxu0 0.0
    %1272 = vmatprep.subr.mxu0 0.0
    %1273 = vmatpush1.xpose.msra.mxu0 0.0
    %1274 = vmatprep.subr.mxu0 0.0
    %1275 = vmatpush1.xpose.msra.mxu0 0.0
    %1276 = vmatprep.subr.mxu0 0.0
    %1277 = vmatpush1.xpose.msra.mxu0 0.0
    %1278 = vmatprep.subr.mxu0 0.0
    %1279 = vmatpush1.xpose.msra.mxu0 0.0
    %1280 = vmatprep.subr.mxu0 0.0
    %1281 = vmatpush1.xpose.msra.mxu0 0.0
    %1282 = vmatprep.subr.mxu0 0.0
    %1283 = vmatpush1.xpose.msra.mxu0 0.0
    %1284 = vmatprep.subr.mxu0 0.0
    %1285 = vmatpush1.xpose.msra.mxu0 0.0
    %1286 = vmatprep.subr.mxu0 0.0
    %1287 = vmatpush1.xpose.msra.mxu0 0.0
    %1288 = vmatprep.subr.mxu0 0.0
    %1289 = vmatpush1.xpose.msra.mxu0 0.0
    %1290 = vmatprep.subr.mxu0 0.0
    %1291 = vmatpush1.xpose.msra.mxu0 0.0
    %1292 = vmatprep.subr.mxu0 0.0
    %1293 = vmatpush1.xpose.msra.mxu0 0.0
    %1294 = vmatprep.subr.mxu0 0.0
    %1295 = vmatpush1.xpose.msra.mxu0 0.0
    %1296 = vmatprep.subr.mxu0 0.0
    %1297 = vmatpush1.xpose.msra.mxu0 0.0
    %1298 = vmatprep.subr.mxu0 0.0
    %1299 = vmatpush1.xpose.msra.mxu0 0.0
    %1300 = vmatprep.subr.mxu0 0.0
    %1301 = vmatpush1.xpose.msra.mxu0 0.0
    %1302 = vmatprep.subr.mxu0 0.0
    %1303 = vmatpush1.xpose.msra.mxu0 0.0
    %1304 = vmatprep.subr.mxu0 0.0
    %1305 = vmatpush1.xpose.msra.mxu0 0.0
    %1306 = vmatprep.subr.mxu0 0.0
    %1307 = vmatpush1.xpose.msra.mxu0 0.0
    %1308 = vmatprep.subr.mxu0 0.0
    %1309 = vmatpush1.xpose.msra.mxu0 0.0
    %1310 = vmatprep.subr.mxu0 0.0
    %1311 = vmatpush1.xpose.msra.mxu0 0.0
    %1312 = vmatprep.subr.mxu0 0.0
    %1313 = vmatpush1.xpose.msra.mxu0 0.0
    %1314 = vmatprep.subr.mxu0 0.0
    %1315 = vmatpush1.xpose.msra.mxu0 0.0
    %1316 = vmatprep.subr.mxu0 0.0
    %1317 = vmatpush1.xpose.msra.mxu0 0.0
    %1318 = vmatprep.subr.mxu0 0.0
    %1319 = vmatpush1.xpose.msra.mxu0 0.0
    %1320 = vmatprep.mubr.f32.mxu0 0.0
    %1321 = vmatmul.mubr.f32.gmra.mrb[0].mxu0 %v1252
    %v1322 = vpop.f32.mrb[0].mxu0
    %v1323 = vadd.f32 0.0, %v1322
    %v1324 = vpop.f32.mrb[0].mxu0
    %1325 = vdwg.mxu0
    %v1326 = vmul.f32 %v1245, 0.35355338
    %v1327 = vmul.f32 %v1323, 0.35355338
    %v1328 = vadd.f32 %v1326, %v491
    %v1329 = vadd.f32 %v1327, %v495
    %v1330 = vsel %vm334, %v1328, -inf
    %1331 = vmax.xlane.f32.xlu0 %v1330
    %v1332 = vpop.xlane.xlu0 %1331
    %v1333 = vsel %vm334, %v1329, -inf
    %1334 = vmax.xlane.f32.xlu0 %v1333
    %v1335 = vpop.xlane.xlu0 %1334
    %v1336 = vsub.f32 %v1328, %v1332
    %v1337 = vsub.f32 %v1329, %v1335
    %v1338 = vmul.f32 %v1336, 1.442695
    %v1339 = vpow.pop %v1338
    %v1340 = vmul.f32 %v1337, 1.442695
    %v1341 = vpow.pop %v1340
    %v1342 = vsel %vm334, %v1339, 0.0
    %1343 = vadd.xlane.f32.xlu0 %v1342
    %v1344 = vpop.xlane.xlu0 %1343
    %v1345 = vsel %vm334, %v1341, 0.0
    %1346 = vadd.xlane.f32.xlu0 %v1345
    %v1347 = vpop.xlane.xlu0 %1346
    %v1348 = vrcp.pop %v1344
    %v1349 = vrcp.pop %v1347
    %v1350 = vmul.f32 %v1339, %v1348
    %v1351 = vmul.f32 %v1341, %v1349
    %1352 = vrot.lane.b32.xlu0 %v319, 48
    %v1353 = vpop.permute.xlu0 %1352
    %v1356 = vsel %vm334, %v1350, 0
    %1358 = vmatprep.subr.mxu0 0.0
    %1359 = vmatpush1.msra.mxu0 %v1353
    %1360 = vmatprep.subr.mxu0 0.0
    %1361 = vmatpush1.msra.mxu0 0.0
    %1362 = vmatprep.subr.mxu0 0.0
    %1363 = vmatpush1.msra.mxu0 0.0
    %1364 = vmatprep.subr.mxu0 0.0
    %1365 = vmatpush1.msra.mxu0 0.0
    %1366 = vmatprep.subr.mxu0 0.0
    %1367 = vmatpush1.msra.mxu0 0.0
    %1368 = vmatprep.subr.mxu0 0.0
    %1369 = vmatpush1.msra.mxu0 0.0
    %1370 = vmatprep.subr.mxu0 0.0
    %1371 = vmatpush1.msra.mxu0 0.0
    %1372 = vmatprep.subr.mxu0 0.0
    %1373 = vmatpush1.msra.mxu0 0.0
    %1374 = vmatprep.subr.mxu0 0.0
    %1375 = vmatpush1.msra.mxu0 0.0
    %1376 = vmatprep.subr.mxu0 0.0
    %1377 = vmatpush1.msra.mxu0 0.0
    %1378 = vmatprep.subr.mxu0 0.0
    %1379 = vmatpush1.msra.mxu0 0.0
    %1380 = vmatprep.subr.mxu0 0.0
    %1381 = vmatpush1.msra.mxu0 0.0
    %1382 = vmatprep.subr.mxu0 0.0
    %1383 = vmatpush1.msra.mxu0 0.0
    %1384 = vmatprep.subr.mxu0 0.0
    %1385 = vmatpush1.msra.mxu0 0.0
    %1386 = vmatprep.subr.mxu0 0.0
    %1387 = vmatpush1.msra.mxu0 0.0
    %1388 = vmatprep.subr.mxu0 0.0
    %1389 = vmatpush1.msra.mxu0 0.0
    %1390 = vmatprep.subr.mxu0 0.0
    %1391 = vmatpush1.msra.mxu0 0.0
    %1392 = vmatprep.subr.mxu0 0.0
    %1393 = vmatpush1.msra.mxu0 0.0
    %1394 = vmatprep.subr.mxu0 0.0
    %1395 = vmatpush1.msra.mxu0 0.0
    %1396 = vmatprep.subr.mxu0 0.0
    %1397 = vmatpush1.msra.mxu0 0.0
    %1398 = vmatprep.subr.mxu0 0.0
    %1399 = vmatpush1.msra.mxu0 0.0
    %1400 = vmatprep.subr.mxu0 0.0
    %1401 = vmatpush1.msra.mxu0 0.0
    %1402 = vmatprep.subr.mxu0 0.0
    %1403 = vmatpush1.msra.mxu0 0.0
    %1404 = vmatprep.subr.mxu0 0.0
    %1405 = vmatpush1.msra.mxu0 0.0
    %1406 = vmatprep.subr.mxu0 0.0
    %1407 = vmatpush1.msra.mxu0 0.0
    %1408 = vmatprep.subr.mxu0 0.0
    %1409 = vmatpush1.msra.mxu0 0.0
    %1410 = vmatprep.subr.mxu0 0.0
    %1411 = vmatpush1.msra.mxu0 0.0
    %1412 = vmatprep.subr.mxu0 0.0
    %1413 = vmatpush1.msra.mxu0 0.0
    %1414 = vmatprep.subr.mxu0 0.0
    %1415 = vmatpush1.msra.mxu0 0.0
    %1416 = vmatprep.subr.mxu0 0.0
    %1417 = vmatpush1.msra.mxu0 0.0
    %1418 = vmatprep.subr.mxu0 0.0
    %1419 = vmatpush1.msra.mxu0 0.0
    %1420 = vmatprep.subr.mxu0 0.0
    %1421 = vmatpush1.msra.mxu0 0.0
    %1422 = vmatprep.mubr.f32.mxu0 0.0
    %1423 = vmatmul.mubr.f32.gmra.mrb[0].mxu0 %v1356
    %v1424 = vpop.f32.mrb[0].mxu0
    %v1425 = vadd.f32 0.0, %v1424
    %v1426 = vpop.f32.mrb[0].mxu0
    %1427 = vdwg.mxu0
    %1428 = vrot.lane.b32.xlu0 %v324, 48
    %v1429 = vpop.permute.xlu0 %1428
    %v1432 = vsel %vm334, %v1351, 0
    %1434 = vmatprep.subr.mxu0 0.0
    %1435 = vmatpush1.msra.mxu0 %v1429
    %1436 = vmatprep.subr.mxu0 0.0
    %1437 = vmatpush1.msra.mxu0 0.0
    %1438 = vmatprep.subr.mxu0 0.0
    %1439 = vmatpush1.msra.mxu0 0.0
    %1440 = vmatprep.subr.mxu0 0.0
    %1441 = vmatpush1.msra.mxu0 0.0
    %1442 = vmatprep.subr.mxu0 0.0
    %1443 = vmatpush1.msra.mxu0 0.0
    %1444 = vmatprep.subr.mxu0 0.0
    %1445 = vmatpush1.msra.mxu0 0.0
    %1446 = vmatprep.subr.mxu0 0.0
    %1447 = vmatpush1.msra.mxu0 0.0
    %1448 = vmatprep.subr.mxu0 0.0
    %1449 = vmatpush1.msra.mxu0 0.0
    %1450 = vmatprep.subr.mxu0 0.0
    %1451 = vmatpush1.msra.mxu0 0.0
    %1452 = vmatprep.subr.mxu0 0.0
    %1453 = vmatpush1.msra.mxu0 0.0
    %1454 = vmatprep.subr.mxu0 0.0
    %1455 = vmatpush1.msra.mxu0 0.0
    %1456 = vmatprep.subr.mxu0 0.0
    %1457 = vmatpush1.msra.mxu0 0.0
    %1458 = vmatprep.subr.mxu0 0.0
    %1459 = vmatpush1.msra.mxu0 0.0
    %1460 = vmatprep.subr.mxu0 0.0
    %1461 = vmatpush1.msra.mxu0 0.0
    %1462 = vmatprep.subr.mxu0 0.0
    %1463 = vmatpush1.msra.mxu0 0.0
    %1464 = vmatprep.subr.mxu0 0.0
    %1465 = vmatpush1.msra.mxu0 0.0
    %1466 = vmatprep.subr.mxu0 0.0
    %1467 = vmatpush1.msra.mxu0 0.0
    %1468 = vmatprep.subr.mxu0 0.0
    %1469 = vmatpush1.msra.mxu0 0.0
    %1470 = vmatprep.subr.mxu0 0.0
    %1471 = vmatpush1.msra.mxu0 0.0
    %1472 = vmatprep.subr.mxu0 0.0
    %1473 = vmatpush1.msra.mxu0 0.0
    %1474 = vmatprep.subr.mxu0 0.0
    %1475 = vmatpush1.msra.mxu0 0.0
    %1476 = vmatprep.subr.mxu0 0.0
    %1477 = vmatpush1.msra.mxu0 0.0
    %1478 = vmatprep.subr.mxu0 0.0
    %1479 = vmatpush1.msra.mxu0 0.0
    %1480 = vmatprep.subr.mxu0 0.0
    %1481 = vmatpush1.msra.mxu0 0.0
    %1482 = vmatprep.subr.mxu0 0.0
    %1483 = vmatpush1.msra.mxu0 0.0
    %1484 = vmatprep.subr.mxu0 0.0
    %1485 = vmatpush1.msra.mxu0 0.0
    %1486 = vmatprep.subr.mxu0 0.0
    %1487 = vmatpush1.msra.mxu0 0.0
    %1488 = vmatprep.subr.mxu0 0.0
    %1489 = vmatpush1.msra.mxu0 0.0
    %1490 = vmatprep.subr.mxu0 0.0
    %1491 = vmatpush1.msra.mxu0 0.0
    %1492 = vmatprep.subr.mxu0 0.0
    %1493 = vmatpush1.msra.mxu0 0.0
    %1494 = vmatprep.subr.mxu0 0.0
    %1495 = vmatpush1.msra.mxu0 0.0
    %1496 = vmatprep.subr.mxu0 0.0
    %1497 = vmatpush1.msra.mxu0 0.0
    %1498 = vmatprep.mubr.f32.mxu0 0.0
    %1499 = vmatmul.mubr.f32.gmra.mrb[0].mxu0 %v1432
    %v1500 = vpop.f32.mrb[0].mxu0
    %v1501 = vadd.f32 0.0, %v1500
    %v1502 = vpop.f32.mrb[0].mxu0
    %1503 = vdwg.mxu0
    %v1505 = vsel %vm334, %v1425, 0
    %v1508 = vsel %vm334, %v1501, 0
    %1510 = vmatprep.subr.mxu0 0.0
    %1511 = vmatpush1.msra.mxu0 %v329
    %1512 = vmatprep.subr.mxu0 0.0
    %1513 = vmatpush1.msra.mxu0 0.0
    %1514 = vmatprep.subr.mxu0 0.0
    %1515 = vmatpush1.msra.mxu0 0.0
    %1516 = vmatprep.subr.mxu0 0.0
    %1517 = vmatpush1.msra.mxu0 0.0
    %1518 = vmatprep.subr.mxu0 0.0
    %1519 = vmatpush1.msra.mxu0 0.0
    %1520 = vmatprep.subr.mxu0 0.0
    %1521 = vmatpush1.msra.mxu0 0.0
    %1522 = vmatprep.subr.mxu0 0.0
    %1523 = vmatpush1.msra.mxu0 0.0
    %1524 = vmatprep.subr.mxu0 0.0
    %1525 = vmatpush1.msra.mxu0 0.0
    %1526 = vmatprep.subr.mxu0 0.0
    %1527 = vmatpush1.msra.mxu0 0.0
    %1528 = vmatprep.subr.mxu0 0.0
    %1529 = vmatpush1.msra.mxu0 0.0
    %1530 = vmatprep.subr.mxu0 0.0
    %1531 = vmatpush1.msra.mxu0 0.0
    %1532 = vmatprep.subr.mxu0 0.0
    %1533 = vmatpush1.msra.mxu0 0.0
    %1534 = vmatprep.subr.mxu0 0.0
    %1535 = vmatpush1.msra.mxu0 0.0
    %1536 = vmatprep.subr.mxu0 0.0
    %1537 = vmatpush1.msra.mxu0 0.0
    %1538 = vmatprep.subr.mxu0 0.0
    %1539 = vmatpush1.msra.mxu0 0.0
    %1540 = vmatprep.subr.mxu0 0.0
    %1541 = vmatpush1.msra.mxu0 0.0
    %1542 = vmatprep.subr.mxu0 0.0
    %1543 = vmatpush1.msra.mxu0 0.0
    %1544 = vmatprep.subr.mxu0 0.0
    %1545 = vmatpush1.msra.mxu0 0.0
    %1546 = vmatprep.subr.mxu0 0.0
    %1547 = vmatpush1.msra.mxu0 0.0
    %1548 = vmatprep.subr.mxu0 0.0
    %1549 = vmatpush1.msra.mxu0 0.0
    %1550 = vmatprep.subr.mxu0 0.0
    %1551 = vmatpush1.msra.mxu0 0.0
    %1552 = vmatprep.subr.mxu0 0.0
    %1553 = vmatpush1.msra.mxu0 0.0
    %1554 = vmatprep.subr.mxu0 0.0
    %1555 = vmatpush1.msra.mxu0 0.0
    %1556 = vmatprep.subr.mxu0 0.0
    %1557 = vmatpush1.msra.mxu0 0.0
    %1558 = vmatprep.subr.mxu0 0.0
    %1559 = vmatpush1.msra.mxu0 0.0
    %1560 = vmatprep.subr.mxu0 0.0
    %1561 = vmatpush1.msra.mxu0 0.0
    %1562 = vmatprep.subr.mxu0 0.0
    %1563 = vmatpush1.msra.mxu0 0.0
    %1564 = vmatprep.subr.mxu0 0.0
    %1565 = vmatpush1.msra.mxu0 0.0
    %1566 = vmatprep.subr.mxu0 0.0
    %1567 = vmatpush1.msra.mxu0 0.0
    %1568 = vmatprep.subr.mxu0 0.0
    %1569 = vmatpush1.msra.mxu0 0.0
    %1570 = vmatprep.subr.mxu0 0.0
    %1571 = vmatpush1.msra.mxu0 0.0
    %1572 = vmatprep.subr.mxu0 0.0
    %1573 = vmatpush1.msra.mxu0 0.0
    %1574 = vmatprep.mubr.f32.mxu0 0.0
    %1575 = vmatmul.mubr.f32.gmra.mrb[0].mxu0 %v1505
    %v1576 = vpop.f32.mrb[0].mxu0
    %v1577 = vadd.f32 0.0, %v1576
    %v1578 = vpop.f32.mrb[0].mxu0
    %1579 = vmatprep.mubr.f32.mxu0 0.0
    %1580 = vmatmul.mubr.f32.gmra.mrb[0].mxu0 %v1508
    %v1581 = vpop.f32.mrb[0].mxu0
    %v1582 = vadd.f32 0.0, %v1581
    %v1583 = vpop.f32.mrb[0].mxu0
    %1584 = vdwg.mxu0
    %v1585 = vadd.f32 %v1162, %v1577
    %v1586 = vadd.f32 %v1167, %v1582
    %1587 = vrot.lane.b32.xlu0 %v319, 104
    %v1588 = vpop.permute.xlu0 %1587
    %1589 = vrot.lane.b32.xlu0 %v319, 72
    %v1590 = vpop.permute.xlu0 %1589
    %v1591 = vsel %vm334, %v1588, 0
    %v1593 = vsel %vm334, %v1590, 0
    %1595 = vmatprep.subr.mxu0 0.0
    %1596 = vmatpush1.xpose.msra.mxu0 %v1593
    %1597 = vmatprep.subr.mxu0 0.0
    %1598 = vmatpush1.xpose.msra.mxu0 0.0
    %1599 = vmatprep.subr.mxu0 0.0
    %1600 = vmatpush1.xpose.msra.mxu0 0.0
    %1601 = vmatprep.subr.mxu0 0.0
    %1602 = vmatpush1.xpose.msra.mxu0 0.0
    %1603 = vmatprep.subr.mxu0 0.0
    %1604 = vmatpush1.xpose.msra.mxu0 0.0
    %1605 = vmatprep.subr.mxu0 0.0
    %1606 = vmatpush1.xpose.msra.mxu0 0.0
    %1607 = vmatprep.subr.mxu0 0.0
    %1608 = vmatpush1.xpose.msra.mxu0 0.0
    %1609 = vmatprep.subr.mxu0 0.0
    %1610 = vmatpush1.xpose.msra.mxu0 0.0
    %1611 = vmatprep.subr.mxu0 0.0
    %1612 = vmatpush1.xpose.msra.mxu0 0.0
    %1613 = vmatprep.subr.mxu0 0.0
    %1614 = vmatpush1.xpose.msra.mxu0 0.0
    %1615 = vmatprep.subr.mxu0 0.0
    %1616 = vmatpush1.xpose.msra.mxu0 0.0
    %1617 = vmatprep.subr.mxu0 0.0
    %1618 = vmatpush1.xpose.msra.mxu0 0.0
    %1619 = vmatprep.subr.mxu0 0.0
    %1620 = vmatpush1.xpose.msra.mxu0 0.0
    %1621 = vmatprep.subr.mxu0 0.0
    %1622 = vmatpush1.xpose.msra.mxu0 0.0
    %1623 = vmatprep.subr.mxu0 0.0
    %1624 = vmatpush1.xpose.msra.mxu0 0.0
    %1625 = vmatprep.subr.mxu0 0.0
    %1626 = vmatpush1.xpose.msra.mxu0 0.0
    %1627 = vmatprep.subr.mxu0 0.0
    %1628 = vmatpush1.xpose.msra.mxu0 0.0
    %1629 = vmatprep.subr.mxu0 0.0
    %1630 = vmatpush1.xpose.msra.mxu0 0.0
    %1631 = vmatprep.subr.mxu0 0.0
    %1632 = vmatpush1.xpose.msra.mxu0 0.0
    %1633 = vmatprep.subr.mxu0 0.0
    %1634 = vmatpush1.xpose.msra.mxu0 0.0
    %1635 = vmatprep.subr.mxu0 0.0
    %1636 = vmatpush1.xpose.msra.mxu0 0.0
    %1637 = vmatprep.subr.mxu0 0.0
    %1638 = vmatpush1.xpose.msra.mxu0 0.0
    %1639 = vmatprep.subr.mxu0 0.0
    %1640 = vmatpush1.xpose.msra.mxu0 0.0
    %1641 = vmatprep.subr.mxu0 0.0
    %1642 = vmatpush1.xpose.msra.mxu0 0.0
    %1643 = vmatprep.subr.mxu0 0.0
    %1644 = vmatpush1.xpose.msra.mxu0 0.0
    %1645 = vmatprep.subr.mxu0 0.0
    %1646 = vmatpush1.xpose.msra.mxu0 0.0
    %1647 = vmatprep.subr.mxu0 0.0
    %1648 = vmatpush1.xpose.msra.mxu0 0.0
    %1649 = vmatprep.subr.mxu0 0.0
    %1650 = vmatpush1.xpose.msra.mxu0 0.0
    %1651 = vmatprep.subr.mxu0 0.0
    %1652 = vmatpush1.xpose.msra.mxu0 0.0
    %1653 = vmatprep.subr.mxu0 0.0
    %1654 = vmatpush1.xpose.msra.mxu0 0.0
    %1655 = vmatprep.subr.mxu0 0.0
    %1656 = vmatpush1.xpose.msra.mxu0 0.0
    %1657 = vmatprep.subr.mxu0 0.0
    %1658 = vmatpush1.xpose.msra.mxu0 0.0
    %1659 = vmatprep.mubr.f32.mxu0 0.0
    %1660 = vmatmul.mubr.f32.gmra.mrb[0].mxu0 %v1591
    %v1661 = vpop.f32.mrb[0].mxu0
    %v1662 = vadd.f32 0.0, %v1661
    %v1663 = vpop.f32.mrb[0].mxu0
    %1664 = vdwg.mxu0
    %1665 = vrot.lane.b32.xlu0 %v324, 104
    %v1666 = vpop.permute.xlu0 %1665
    %1667 = vrot.lane.b32.xlu0 %v324, 72
    %v1668 = vpop.permute.xlu0 %1667
    %v1669 = vsel %vm334, %v1666, 0
    %v1671 = vsel %vm334, %v1668, 0
    %1673 = vmatprep.subr.mxu0 0.0
    %1674 = vmatpush1.xpose.msra.mxu0 %v1671
    %1675 = vmatprep.subr.mxu0 0.0
    %1676 = vmatpush1.xpose.msra.mxu0 0.0
    %1677 = vmatprep.subr.mxu0 0.0
    %1678 = vmatpush1.xpose.msra.mxu0 0.0
    %1679 = vmatprep.subr.mxu0 0.0
    %1680 = vmatpush1.xpose.msra.mxu0 0.0
    %1681 = vmatprep.subr.mxu0 0.0
    %1682 = vmatpush1.xpose.msra.mxu0 0.0
    %1683 = vmatprep.subr.mxu0 0.0
    %1684 = vmatpush1.xpose.msra.mxu0 0.0
    %1685 = vmatprep.subr.mxu0 0.0
    %1686 = vmatpush1.xpose.msra.mxu0 0.0
    %1687 = vmatprep.subr.mxu0 0.0
    %1688 = vmatpush1.xpose.msra.mxu0 0.0
    %1689 = vmatprep.subr.mxu0 0.0
    %1690 = vmatpush1.xpose.msra.mxu0 0.0
    %1691 = vmatprep.subr.mxu0 0.0
    %1692 = vmatpush1.xpose.msra.mxu0 0.0
    %1693 = vmatprep.subr.mxu0 0.0
    %1694 = vmatpush1.xpose.msra.mxu0 0.0
    %1695 = vmatprep.subr.mxu0 0.0
    %1696 = vmatpush1.xpose.msra.mxu0 0.0
    %1697 = vmatprep.subr.mxu0 0.0
    %1698 = vmatpush1.xpose.msra.mxu0 0.0
    %1699 = vmatprep.subr.mxu0 0.0
    %1700 = vmatpush1.xpose.msra.mxu0 0.0
    %1701 = vmatprep.subr.mxu0 0.0
    %1702 = vmatpush1.xpose.msra.mxu0 0.0
    %1703 = vmatprep.subr.mxu0 0.0
    %1704 = vmatpush1.xpose.msra.mxu0 0.0
    %1705 = vmatprep.subr.mxu0 0.0
    %1706 = vmatpush1.xpose.msra.mxu0 0.0
    %1707 = vmatprep.subr.mxu0 0.0
    %1708 = vmatpush1.xpose.msra.mxu0 0.0
    %1709 = vmatprep.subr.mxu0 0.0
    %1710 = vmatpush1.xpose.msra.mxu0 0.0
    %1711 = vmatprep.subr.mxu0 0.0
    %1712 = vmatpush1.xpose.msra.mxu0 0.0
    %1713 = vmatprep.subr.mxu0 0.0
    %1714 = vmatpush1.xpose.msra.mxu0 0.0
    %1715 = vmatprep.subr.mxu0 0.0
    %1716 = vmatpush1.xpose.msra.mxu0 0.0
    %1717 = vmatprep.subr.mxu0 0.0
    %1718 = vmatpush1.xpose.msra.mxu0 0.0
    %1719 = vmatprep.subr.mxu0 0.0
    %1720 = vmatpush1.xpose.msra.mxu0 0.0
    %1721 = vmatprep.subr.mxu0 0.0
    %1722 = vmatpush1.xpose.msra.mxu0 0.0
    %1723 = vmatprep.subr.mxu0 0.0
    %1724 = vmatpush1.xpose.msra.mxu0 0.0
    %1725 = vmatprep.subr.mxu0 0.0
    %1726 = vmatpush1.xpose.msra.mxu0 0.0
    %1727 = vmatprep.subr.mxu0 0.0
    %1728 = vmatpush1.xpose.msra.mxu0 0.0
    %1729 = vmatprep.subr.mxu0 0.0
    %1730 = vmatpush1.xpose.msra.mxu0 0.0
    %1731 = vmatprep.subr.mxu0 0.0
    %1732 = vmatpush1.xpose.msra.mxu0 0.0
    %1733 = vmatprep.subr.mxu0 0.0
    %1734 = vmatpush1.xpose.msra.mxu0 0.0
    %1735 = vmatprep.subr.mxu0 0.0
    %1736 = vmatpush1.xpose.msra.mxu0 0.0
    %1737 = vmatprep.mubr.f32.mxu0 0.0
    %1738 = vmatmul.mubr.f32.gmra.mrb[0].mxu0 %v1669
    %v1739 = vpop.f32.mrb[0].mxu0
    %v1740 = vadd.f32 0.0, %v1739
    %v1741 = vpop.f32.mrb[0].mxu0
    %1742 = vdwg.mxu0
    %v1743 = vmul.f32 %v1662, 0.35355338
    %v1744 = vmul.f32 %v1740, 0.35355338
    %v1745 = vadd.f32 %v1743, %v491
    %v1746 = vadd.f32 %v1744, %v495
    %v1747 = vsel %vm334, %v1745, -inf
    %1748 = vmax.xlane.f32.xlu0 %v1747
    %v1749 = vpop.xlane.xlu0 %1748
    %v1750 = vsel %vm334, %v1746, -inf
    %1751 = vmax.xlane.f32.xlu0 %v1750
    %v1752 = vpop.xlane.xlu0 %1751
    %v1753 = vsub.f32 %v1745, %v1749
    %v1754 = vsub.f32 %v1746, %v1752
    %v1755 = vmul.f32 %v1753, 1.442695
    %v1756 = vpow.pop %v1755
    %v1757 = vmul.f32 %v1754, 1.442695
    %v1758 = vpow.pop %v1757
    %v1759 = vsel %vm334, %v1756, 0.0
    %1760 = vadd.xlane.f32.xlu0 %v1759
    %v1761 = vpop.xlane.xlu0 %1760
    %v1762 = vsel %vm334, %v1758, 0.0
    %1763 = vadd.xlane.f32.xlu0 %v1762
    %v1764 = vpop.xlane.xlu0 %1763
    %v1765 = vrcp.pop %v1761
    %v1766 = vrcp.pop %v1764
    %v1767 = vmul.f32 %v1756, %v1765
    %v1768 = vmul.f32 %v1758, %v1766
    %1769 = vrot.lane.b32.xlu0 %v319, 40
    %v1770 = vpop.permute.xlu0 %1769
    %v1773 = vsel %vm334, %v1767, 0
    %1775 = vmatprep.subr.mxu0 0.0
    %1776 = vmatpush1.msra.mxu0 %v1770
    %1777 = vmatprep.subr.mxu0 0.0
    %1778 = vmatpush1.msra.mxu0 0.0
    %1779 = vmatprep.subr.mxu0 0.0
    %1780 = vmatpush1.msra.mxu0 0.0
    %1781 = vmatprep.subr.mxu0 0.0
    %1782 = vmatpush1.msra.mxu0 0.0
    %1783 = vmatprep.subr.mxu0 0.0
    %1784 = vmatpush1.msra.mxu0 0.0
    %1785 = vmatprep.subr.mxu0 0.0
    %1786 = vmatpush1.msra.mxu0 0.0
    %1787 = vmatprep.subr.mxu0 0.0
    %1788 = vmatpush1.msra.mxu0 0.0
    %1789 = vmatprep.subr.mxu0 0.0
    %1790 = vmatpush1.msra.mxu0 0.0
    %1791 = vmatprep.subr.mxu0 0.0
    %1792 = vmatpush1.msra.mxu0 0.0
    %1793 = vmatprep.subr.mxu0 0.0
    %1794 = vmatpush1.msra.mxu0 0.0
    %1795 = vmatprep.subr.mxu0 0.0
    %1796 = vmatpush1.msra.mxu0 0.0
    %1797 = vmatprep.subr.mxu0 0.0
    %1798 = vmatpush1.msra.mxu0 0.0
    %1799 = vmatprep.subr.mxu0 0.0
    %1800 = vmatpush1.msra.mxu0 0.0
    %1801 = vmatprep.subr.mxu0 0.0
    %1802 = vmatpush1.msra.mxu0 0.0
    %1803 = vmatprep.subr.mxu0 0.0
    %1804 = vmatpush1.msra.mxu0 0.0
    %1805 = vmatprep.subr.mxu0 0.0
    %1806 = vmatpush1.msra.mxu0 0.0
    %1807 = vmatprep.subr.mxu0 0.0
    %1808 = vmatpush1.msra.mxu0 0.0
    %1809 = vmatprep.subr.mxu0 0.0
    %1810 = vmatpush1.msra.mxu0 0.0
    %1811 = vmatprep.subr.mxu0 0.0
    %1812 = vmatpush1.msra.mxu0 0.0
    %1813 = vmatprep.subr.mxu0 0.0
    %1814 = vmatpush1.msra.mxu0 0.0
    %1815 = vmatprep.subr.mxu0 0.0
    %1816 = vmatpush1.msra.mxu0 0.0
    %1817 = vmatprep.subr.mxu0 0.0
    %1818 = vmatpush1.msra.mxu0 0.0
    %1819 = vmatprep.subr.mxu0 0.0
    %1820 = vmatpush1.msra.mxu0 0.0
    %1821 = vmatprep.subr.mxu0 0.0
    %1822 = vmatpush1.msra.mxu0 0.0
    %1823 = vmatprep.subr.mxu0 0.0
    %1824 = vmatpush1.msra.mxu0 0.0
    %1825 = vmatprep.subr.mxu0 0.0
    %1826 = vmatpush1.msra.mxu0 0.0
    %1827 = vmatprep.subr.mxu0 0.0
    %1828 = vmatpush1.msra.mxu0 0.0
    %1829 = vmatprep.subr.mxu0 0.0
    %1830 = vmatpush1.msra.mxu0 0.0
    %1831 = vmatprep.subr.mxu0 0.0
    %1832 = vmatpush1.msra.mxu0 0.0
    %1833 = vmatprep.subr.mxu0 0.0
    %1834 = vmatpush1.msra.mxu0 0.0
    %1835 = vmatprep.subr.mxu0 0.0
    %1836 = vmatpush1.msra.mxu0 0.0
    %1837 = vmatprep.subr.mxu0 0.0
    %1838 = vmatpush1.msra.mxu0 0.0
    %1839 = vmatprep.mubr.f32.mxu0 0.0
    %1840 = vmatmul.mubr.f32.gmra.mrb[0].mxu0 %v1773
    %v1841 = vpop.f32.mrb[0].mxu0
    %v1842 = vadd.f32 0.0, %v1841
    %v1843 = vpop.f32.mrb[0].mxu0
    %1844 = vdwg.mxu0
    %1845 = vrot.lane.b32.xlu0 %v324, 40
    %v1846 = vpop.permute.xlu0 %1845
    %v1849 = vsel %vm334, %v1768, 0
    %1851 = vmatprep.subr.mxu0 0.0
    %1852 = vmatpush1.msra.mxu0 %v1846
    %1853 = vmatprep.subr.mxu0 0.0
    %1854 = vmatpush1.msra.mxu0 0.0
    %1855 = vmatprep.subr.mxu0 0.0
    %1856 = vmatpush1.msra.mxu0 0.0
    %1857 = vmatprep.subr.mxu0 0.0
    %1858 = vmatpush1.msra.mxu0 0.0
    %1859 = vmatprep.subr.mxu0 0.0
    %1860 = vmatpush1.msra.mxu0 0.0
    %1861 = vmatprep.subr.mxu0 0.0
    %1862 = vmatpush1.msra.mxu0 0.0
    %1863 = vmatprep.subr.mxu0 0.0
    %1864 = vmatpush1.msra.mxu0 0.0
    %1865 = vmatprep.subr.mxu0 0.0
    %1866 = vmatpush1.msra.mxu0 0.0
    %1867 = vmatprep.subr.mxu0 0.0
    %1868 = vmatpush1.msra.mxu0 0.0
    %1869 = vmatprep.subr.mxu0 0.0
    %1870 = vmatpush1.msra.mxu0 0.0
    %1871 = vmatprep.subr.mxu0 0.0
    %1872 = vmatpush1.msra.mxu0 0.0
    %1873 = vmatprep.subr.mxu0 0.0
    %1874 = vmatpush1.msra.mxu0 0.0
    %1875 = vmatprep.subr.mxu0 0.0
    %1876 = vmatpush1.msra.mxu0 0.0
    %1877 = vmatprep.subr.mxu0 0.0
    %1878 = vmatpush1.msra.mxu0 0.0
    %1879 = vmatprep.subr.mxu0 0.0
    %1880 = vmatpush1.msra.mxu0 0.0
    %1881 = vmatprep.subr.mxu0 0.0
    %1882 = vmatpush1.msra.mxu0 0.0
    %1883 = vmatprep.subr.mxu0 0.0
    %1884 = vmatpush1.msra.mxu0 0.0
    %1885 = vmatprep.subr.mxu0 0.0
    %1886 = vmatpush1.msra.mxu0 0.0
    %1887 = vmatprep.subr.mxu0 0.0
    %1888 = vmatpush1.msra.mxu0 0.0
    %1889 = vmatprep.subr.mxu0 0.0
    %1890 = vmatpush1.msra.mxu0 0.0
    %1891 = vmatprep.subr.mxu0 0.0
    %1892 = vmatpush1.msra.mxu0 0.0
    %1893 = vmatprep.subr.mxu0 0.0
    %1894 = vmatpush1.msra.mxu0 0.0
    %1895 = vmatprep.subr.mxu0 0.0
    %1896 = vmatpush1.msra.mxu0 0.0
    %1897 = vmatprep.subr.mxu0 0.0
    %1898 = vmatpush1.msra.mxu0 0.0
    %1899 = vmatprep.subr.mxu0 0.0
    %1900 = vmatpush1.msra.mxu0 0.0
    %1901 = vmatprep.subr.mxu0 0.0
    %1902 = vmatpush1.msra.mxu0 0.0
    %1903 = vmatprep.subr.mxu0 0.0
    %1904 = vmatpush1.msra.mxu0 0.0
    %1905 = vmatprep.subr.mxu0 0.0
    %1906 = vmatpush1.msra.mxu0 0.0
    %1907 = vmatprep.subr.mxu0 0.0
    %1908 = vmatpush1.msra.mxu0 0.0
    %1909 = vmatprep.subr.mxu0 0.0
    %1910 = vmatpush1.msra.mxu0 0.0
    %1911 = vmatprep.subr.mxu0 0.0
    %1912 = vmatpush1.msra.mxu0 0.0
    %1913 = vmatprep.subr.mxu0 0.0
    %1914 = vmatpush1.msra.mxu0 0.0
    %1915 = vmatprep.mubr.f32.mxu0 0.0
    %1916 = vmatmul.mubr.f32.gmra.mrb[0].mxu0 %v1849
    %v1917 = vpop.f32.mrb[0].mxu0
    %v1918 = vadd.f32 0.0, %v1917
    %v1919 = vpop.f32.mrb[0].mxu0
    %1920 = vdwg.mxu0
    %v1922 = vsel %vm334, %v1842, 0
    %v1925 = vsel %vm334, %v1918, 0
    %1927 = vmatprep.subr.mxu0 0.0
    %1928 = vmatpush1.msra.mxu0 %v330
    %1929 = vmatprep.subr.mxu0 0.0
    %1930 = vmatpush1.msra.mxu0 0.0
    %1931 = vmatprep.subr.mxu0 0.0
    %1932 = vmatpush1.msra.mxu0 0.0
    %1933 = vmatprep.subr.mxu0 0.0
    %1934 = vmatpush1.msra.mxu0 0.0
    %1935 = vmatprep.subr.mxu0 0.0
    %1936 = vmatpush1.msra.mxu0 0.0
    %1937 = vmatprep.subr.mxu0 0.0
    %1938 = vmatpush1.msra.mxu0 0.0
    %1939 = vmatprep.subr.mxu0 0.0
    %1940 = vmatpush1.msra.mxu0 0.0
    %1941 = vmatprep.subr.mxu0 0.0
    %1942 = vmatpush1.msra.mxu0 0.0
    %1943 = vmatprep.subr.mxu0 0.0
    %1944 = vmatpush1.msra.mxu0 0.0
    %1945 = vmatprep.subr.mxu0 0.0
    %1946 = vmatpush1.msra.mxu0 0.0
    %1947 = vmatprep.subr.mxu0 0.0
    %1948 = vmatpush1.msra.mxu0 0.0
    %1949 = vmatprep.subr.mxu0 0.0
    %1950 = vmatpush1.msra.mxu0 0.0
    %1951 = vmatprep.subr.mxu0 0.0
    %1952 = vmatpush1.msra.mxu0 0.0
    %1953 = vmatprep.subr.mxu0 0.0
    %1954 = vmatpush1.msra.mxu0 0.0
    %1955 = vmatprep.subr.mxu0 0.0
    %1956 = vmatpush1.msra.mxu0 0.0
    %1957 = vmatprep.subr.mxu0 0.0
    %1958 = vmatpush1.msra.mxu0 0.0
    %1959 = vmatprep.subr.mxu0 0.0
    %1960 = vmatpush1.msra.mxu0 0.0
    %1961 = vmatprep.subr.mxu0 0.0
    %1962 = vmatpush1.msra.mxu0 0.0
    %1963 = vmatprep.subr.mxu0 0.0
    %1964 = vmatpush1.msra.mxu0 0.0
    %1965 = vmatprep.subr.mxu0 0.0
    %1966 = vmatpush1.msra.mxu0 0.0
    %1967 = vmatprep.subr.mxu0 0.0
    %1968 = vmatpush1.msra.mxu0 0.0
    %1969 = vmatprep.subr.mxu0 0.0
    %1970 = vmatpush1.msra.mxu0 0.0
    %1971 = vmatprep.subr.mxu0 0.0
    %1972 = vmatpush1.msra.mxu0 0.0
    %1973 = vmatprep.subr.mxu0 0.0
    %1974 = vmatpush1.msra.mxu0 0.0
    %1975 = vmatprep.subr.mxu0 0.0
    %1976 = vmatpush1.msra.mxu0 0.0
    %1977 = vmatprep.subr.mxu0 0.0
    %1978 = vmatpush1.msra.mxu0 0.0
    %1979 = vmatprep.subr.mxu0 0.0
    %1980 = vmatpush1.msra.mxu0 0.0
    %1981 = vmatprep.subr.mxu0 0.0
    %1982 = vmatpush1.msra.mxu0 0.0
    %1983 = vmatprep.subr.mxu0 0.0
    %1984 = vmatpush1.msra.mxu0 0.0
    %1985 = vmatprep.subr.mxu0 0.0
    %1986 = vmatpush1.msra.mxu0 0.0
    %1987 = vmatprep.subr.mxu0 0.0
    %1988 = vmatpush1.msra.mxu0 0.0
    %1989 = vmatprep.subr.mxu0 0.0
    %1990 = vmatpush1.msra.mxu0 0.0
    %1991 = vmatprep.mubr.f32.mxu0 0.0
    %1992 = vmatmul.mubr.f32.gmra.mrb[0].mxu0 %v1922
    %v1993 = vpop.f32.mrb[0].mxu0
    %v1994 = vadd.f32 0.0, %v1993
    %v1995 = vpop.f32.mrb[0].mxu0
    %1996 = vmatprep.mubr.f32.mxu0 0.0
    %1997 = vmatmul.mubr.f32.gmra.mrb[0].mxu0 %v1925
    %v1998 = vpop.f32.mrb[0].mxu0
    %v1999 = vadd.f32 0.0, %v1998
    %v2000 = vpop.f32.mrb[0].mxu0
    %2001 = vdwg.mxu0
    %v2002 = vadd.f32 %v1585, %v1994
    %v2003 = vadd.f32 %v1586, %v1999
    %v2004 = vld [vmem:[#allocation9] sm:$0x1]
    %v2006 = vlaneseq
    %v2007 = vshrl.u32 %v2006, 7
    %v2008 = vsub.s32 0, %v2007
    %v2009 = vrot.slane %v2004, %v2008
    %v2011 = vadd.f32 %v2002, %v2009
    %v2012 = vadd.f32 %v2003, %v2009
    %v2013 = vadd.f32 %v2011, %v163
    %v2014 = vadd.f32 %v2012, %v164
    %v2015 = vld [vmem:[#allocation11] sm:$0x1]
    %v2016 = vld [vmem:[#allocation12] sm:$0x1]
    %v2017 = vsel %vm191, %v2013, 0.0
    %2018 = vadd.xlane.f32.xlu0 %v2017
    %v2019 = vpop.xlane.xlu0 %2018
    %v2020 = vsel %vm191, %v2014, 0.0
    %2021 = vadd.xlane.f32.xlu0 %v2020
    %v2022 = vpop.xlane.xlu0 %2021
    %v2023 = vmul.f32 %v2019, %v198
    %v2024 = vmul.f32 %v2022, %v198
    %v2025 = vsub.f32 %v2013, %v2023
    %v2026 = vsub.f32 %v2014, %v2024
    %v2027 = vmul.f32 %v2025, %v2025
    %v2028 = vmul.f32 %v2026, %v2026
    %v2029 = vsel %vm191, %v2027, 0.0
    %2030 = vadd.xlane.f32.xlu0 %v2029
    %v2031 = vpop.xlane.xlu0 %2030
    %v2032 = vsel %vm191, %v2028, 0.0
    %2033 = vadd.xlane.f32.xlu0 %v2032
    %v2034 = vpop.xlane.xlu0 %2033
    %v2035 = vmul.f32 %v2031, %v198
    %v2036 = vmul.f32 %v2034, %v198
    %v2037 = vadd.f32 %v2035, 1e-12
    %v2038 = vadd.f32 %v2036, 1e-12
    %v2039 = vrsqrt.pop %v2037
    %v2040 = vrsqrt.pop %v2038
    %v2041 = vmul.f32 %v2025, %v2039
    %v2042 = vmul.f32 %v2026, %v2040
    %v2044 = vlaneseq
    %v2045 = vshrl.u32 %v2044, 7
    %v2046 = vsub.s32 0, %v2045
    %v2047 = vrot.slane %v2015, %v2046
    %v2049 = vmul.f32 %v2041, %v2047
    %v2050 = vmul.f32 %v2042, %v2047
    %v2052 = vlaneseq
    %v2053 = vshrl.u32 %v2052, 7
    %v2054 = vsub.s32 0, %v2053
    %v2055 = vrot.slane %v2016, %v2054
    %v2057 = vadd.f32 %v2049, %v2055
    %v2058 = vadd.f32 %v2050, %v2055
    %v2059 = vld [vmem:[%s10] sm:$0xff]
    %v2060 = vld [vmem:[%s10 + $0x8] sm:$0xff]
    %v2061 = vld [vmem:[%s10 + $0x10] sm:$0xff]
    %v2062 = vld [vmem:[%s10 + $0x18] sm:$0xff]
    %v2063 = vld [vmem:[#allocation14] sm:$0x1]
    %v2065 = vlaneseq
    %v2066 = vshrl.u32 %v2065, 7
    %v2067 = vsub.s32 0, %v2066
    %v2068 = vrot.slane %v2063, %v2067
    %v2071 = vsel %vm191, %v2057, 0
    %v2074 = vsel %vm191, %v2058, 0
    %2076 = vmatprep.subr.mxu0 0.0
    %2077 = vmatpush1.msra.mxu0 %v2059
    %2078 = vmatprep.subr.mxu0 0.0
    %2079 = vmatpush1.msra.mxu0 %v2060
    %2080 = vmatprep.subr.mxu0 0.0
    %2081 = vmatpush1.msra.mxu0 %v2061
    %2082 = vmatprep.subr.mxu0 0.0
    %2083 = vmatpush1.msra.mxu0 %v2062
    %2084 = vmatprep.subr.mxu0 0.0
    %2085 = vmatpush1.msra.mxu0 0.0
    %2086 = vmatprep.subr.mxu0 0.0
    %2087 = vmatpush1.msra.mxu0 0.0
    %2088 = vmatprep.subr.mxu0 0.0
    %2089 = vmatpush1.msra.mxu0 0.0
    %2090 = vmatprep.subr.mxu0 0.0
    %2091 = vmatpush1.msra.mxu0 0.0
    %2092 = vmatprep.subr.mxu0 0.0
    %2093 = vmatpush1.msra.mxu0 0.0
    %2094 = vmatprep.subr.mxu0 0.0
    %2095 = vmatpush1.msra.mxu0 0.0
    %2096 = vmatprep.subr.mxu0 0.0
    %2097 = vmatpush1.msra.mxu0 0.0
    %2098 = vmatprep.subr.mxu0 0.0
    %2099 = vmatpush1.msra.mxu0 0.0
    %2100 = vmatprep.subr.mxu0 0.0
    %2101 = vmatpush1.msra.mxu0 0.0
    %2102 = vmatprep.subr.mxu0 0.0
    %2103 = vmatpush1.msra.mxu0 0.0
    %2104 = vmatprep.subr.mxu0 0.0
    %2105 = vmatpush1.msra.mxu0 0.0
    %2106 = vmatprep.subr.mxu0 0.0
    %2107 = vmatpush1.msra.mxu0 0.0
    %2108 = vmatprep.subr.mxu0 0.0
    %2109 = vmatpush1.msra.mxu0 0.0
    %2110 = vmatprep.subr.mxu0 0.0
    %2111 = vmatpush1.msra.mxu0 0.0
    %2112 = vmatprep.subr.mxu0 0.0
    %2113 = vmatpush1.msra.mxu0 0.0
    %2114 = vmatprep.subr.mxu0 0.0
    %2115 = vmatpush1.msra.mxu0 0.0
    %2116 = vmatprep.subr.mxu0 0.0
    %2117 = vmatpush1.msra.mxu0 0.0
    %2118 = vmatprep.subr.mxu0 0.0
    %2119 = vmatpush1.msra.mxu0 0.0
    %2120 = vmatprep.subr.mxu0 0.0
    %2121 = vmatpush1.msra.mxu0 0.0
    %2122 = vmatprep.subr.mxu0 0.0
    %2123 = vmatpush1.msra.mxu0 0.0
    %2124 = vmatprep.subr.mxu0 0.0
    %2125 = vmatpush1.msra.mxu0 0.0
    %2126 = vmatprep.subr.mxu0 0.0
    %2127 = vmatpush1.msra.mxu0 0.0
    %2128 = vmatprep.subr.mxu0 0.0
    %2129 = vmatpush1.msra.mxu0 0.0
    %2130 = vmatprep.subr.mxu0 0.0
    %2131 = vmatpush1.msra.mxu0 0.0
    %2132 = vmatprep.subr.mxu0 0.0
    %2133 = vmatpush1.msra.mxu0 0.0
    %2134 = vmatprep.subr.mxu0 0.0
    %2135 = vmatpush1.msra.mxu0 0.0
    %2136 = vmatprep.subr.mxu0 0.0
    %2137 = vmatpush1.msra.mxu0 0.0
    %2138 = vmatprep.subr.mxu0 0.0
    %2139 = vmatpush1.msra.mxu0 0.0
    %2140 = vmatprep.mubr.f32.mxu0 0.0
    %2141 = vmatmul.mubr.f32.gmra.mrb[0].mxu0 %v2071
    %v2142 = vpop.f32.mrb[0].mxu0
    %v2143 = vadd.f32 %v2068, %v2142
    %v2144 = vpop.f32.mrb[0].mxu0
    %2145 = vmatprep.mubr.f32.mxu0 0.0
    %2146 = vmatmul.mubr.f32.gmra.mrb[0].mxu0 %v2074
    %v2147 = vpop.f32.mrb[0].mxu0
    %v2148 = vadd.f32 %v2068, %v2147
    %v2149 = vpop.f32.mrb[0].mxu0
    %2150 = vdwg.mxu0
    %v2151 = vmul.f32 %v2143, 0.5
    %v2152 = vmul.f32 %v2148, 0.5
    %v2153 = vmul.f32 %v2143, 0.70710677
    %v2154 = vmul.f32 %v2148, 0.70710677
    %v2155 = verf.f32.pop %v2153
    %v2156 = verf.f32.pop %v2154
    %v2157 = vadd.f32 %v2155, 1.0
    %v2158 = vadd.f32 %v2156, 1.0
    %v2159 = vmul.f32 %v2151, %v2157
    %v2160 = vmul.f32 %v2152, %v2158
    %v2161 = vld [vmem:[%s12] sm:$0xff]
    %v2162 = vld [vmem:[%s12 + $0x8] sm:$0xff]
    %v2163 = vld [vmem:[%s12 + $0x10] sm:$0xff]
    %v2164 = vld [vmem:[%s12 + $0x18] sm:$0xff]
    %v2165 = vld [vmem:[%s12 + $0x20] sm:$0xff]
    %v2166 = vld [vmem:[%s12 + $0x28] sm:$0xff]
    %v2167 = vld [vmem:[%s12 + $0x30] sm:$0xff]
    %v2168 = vld [vmem:[%s12 + $0x38] sm:$0xff]
    %v2169 = vld [vmem:[%s13] sm:$0x1]
    %v2171 = vlaneseq
    %v2172 = vshrl.u32 %v2171, 7
    %v2173 = vsub.s32 0, %v2172
    %v2174 = vrot.slane %v2169, %v2173
    %vm2176 = vcmask 523264
    %v2178 = vsel %vm2176, %v2159, 0
    %v2181 = vsel %vm2176, %v2160, 0
    %2183 = vmatprep.subr.mxu0 0.0
    %2184 = vmatpush1.msra.mxu0 %v2161
    %2185 = vmatprep.subr.mxu0 0.0
    %2186 = vmatpush1.msra.mxu0 %v2162
    %2187 = vmatprep.subr.mxu0 0.0
    %2188 = vmatpush1.msra.mxu0 %v2163
    %2189 = vmatprep.subr.mxu0 0.0
    %2190 = vmatpush1.msra.mxu0 %v2164
    %2191 = vmatprep.subr.mxu0 0.0
    %2192 = vmatpush1.msra.mxu0 %v2165
    %2193 = vmatprep.subr.mxu0 0.0
    %2194 = vmatpush1.msra.mxu0 %v2166
    %2195 = vmatprep.subr.mxu0 0.0
    %2196 = vmatpush1.msra.mxu0 %v2167
    %2197 = vmatprep.subr.mxu0 0.0
    %2198 = vmatpush1.msra.mxu0 %v2168
    %2199 = vmatprep.subr.mxu0 0.0
    %2200 = vmatpush1.msra.mxu0 0.0
    %2201 = vmatprep.subr.mxu0 0.0
    %2202 = vmatpush1.msra.mxu0 0.0
    %2203 = vmatprep.subr.mxu0 0.0
    %2204 = vmatpush1.msra.mxu0 0.0
    %2205 = vmatprep.subr.mxu0 0.0
    %2206 = vmatpush1.msra.mxu0 0.0
    %2207 = vmatprep.subr.mxu0 0.0
    %2208 = vmatpush1.msra.mxu0 0.0
    %2209 = vmatprep.subr.mxu0 0.0
    %2210 = vmatpush1.msra.mxu0 0.0
    %2211 = vmatprep.subr.mxu0 0.0
    %2212 = vmatpush1.msra.mxu0 0.0
    %2213 = vmatprep.subr.mxu0 0.0
    %2214 = vmatpush1.msra.mxu0 0.0
    %2215 = vmatprep.subr.mxu0 0.0
    %2216 = vmatpush1.msra.mxu0 0.0
    %2217 = vmatprep.subr.mxu0 0.0
    %2218 = vmatpush1.msra.mxu0 0.0
    %2219 = vmatprep.subr.mxu0 0.0
    %2220 = vmatpush1.msra.mxu0 0.0
    %2221 = vmatprep.subr.mxu0 0.0
    %2222 = vmatpush1.msra.mxu0 0.0
    %2223 = vmatprep.subr.mxu0 0.0
    %2224 = vmatpush1.msra.mxu0 0.0
    %2225 = vmatprep.subr.mxu0 0.0
    %2226 = vmatpush1.msra.mxu0 0.0
    %2227 = vmatprep.subr.mxu0 0.0
    %2228 = vmatpush1.msra.mxu0 0.0
    %2229 = vmatprep.subr.mxu0 0.0
    %2230 = vmatpush1.msra.mxu0 0.0
    %2231 = vmatprep.subr.mxu0 0.0
    %2232 = vmatpush1.msra.mxu0 0.0
    %2233 = vmatprep.subr.mxu0 0.0
    %2234 = vmatpush1.msra.mxu0 0.0
    %2235 = vmatprep.subr.mxu0 0.0
    %2236 = vmatpush1.msra.mxu0 0.0
    %2237 = vmatprep.subr.mxu0 0.0
    %2238 = vmatpush1.msra.mxu0 0.0
    %2239 = vmatprep.subr.mxu0 0.0
    %2240 = vmatpush1.msra.mxu0 0.0
    %2241 = vmatprep.subr.mxu0 0.0
    %2242 = vmatpush1.msra.mxu0 0.0
    %2243 = vmatprep.subr.mxu0 0.0
    %2244 = vmatpush1.msra.mxu0 0.0
    %2245 = vmatprep.subr.mxu0 0.0
    %2246 = vmatpush1.msra.mxu0 0.0
    %2247 = vmatprep.mubr.f32.mxu0 0.0
    %2248 = vmatmul.mubr.f32.gmra.mrb[0].mxu0 %v2178
    %v2249 = vpop.f32.mrb[0].mxu0
    %v2250 = vadd.f32 %v2174, %v2249
    %v2251 = vpop.f32.mrb[0].mxu0
    %2252 = vmatprep.mubr.f32.mxu0 0.0
    %2253 = vmatmul.mubr.f32.gmra.mrb[0].mxu0 %v2181
    %v2254 = vpop.f32.mrb[0].mxu0
    %v2255 = vadd.f32 %v2174, %v2254
    %v2256 = vpop.f32.mrb[0].mxu0
    %2257 = vdwg.mxu0
    %v2258 = vadd.f32 %v2250, %v2013
    %v2259 = vadd.f32 %v2255, %v2014
    %s2260 = scalar_lea.vmem [#allocation3], 1
    %v2261 = vld [vmem:[%s2260] sm:$0x1]
    %s2262 = scalar_lea.vmem [#allocation6], 1
    %v2263 = vld [vmem:[%s2262] sm:$0x1]
    %v2264 = vsel %vm191, %v2258, 0.0
    %2265 = vadd.xlane.f32.xlu0 %v2264
    %v2266 = vpop.xlane.xlu0 %2265
    %v2267 = vsel %vm191, %v2259, 0.0
    %2268 = vadd.xlane.f32.xlu0 %v2267
    %v2269 = vpop.xlane.xlu0 %2268
    %v2270 = vmul.f32 %v2266, %v198
    %v2271 = vmul.f32 %v2269, %v198
    %v2272 = vsub.f32 %v2258, %v2270
    %v2273 = vsub.f32 %v2259, %v2271
    %v2274 = vmul.f32 %v2272, %v2272
    %v2275 = vmul.f32 %v2273, %v2273
    %v2276 = vsel %vm191, %v2274, 0.0
    %2277 = vadd.xlane.f32.xlu0 %v2276
    %v2278 = vpop.xlane.xlu0 %2277
    %v2279 = vsel %vm191, %v2275, 0.0
    %2280 = vadd.xlane.f32.xlu0 %v2279
    %v2281 = vpop.xlane.xlu0 %2280
    %v2282 = vmul.f32 %v2278, %v198
    %v2283 = vmul.f32 %v2281, %v198
    %v2284 = vadd.f32 %v2282, 1e-12
    %v2285 = vadd.f32 %v2283, 1e-12
    %v2286 = vrsqrt.pop %v2284
    %v2287 = vrsqrt.pop %v2285
    %v2288 = vmul.f32 %v2272, %v2286
    %v2289 = vmul.f32 %v2273, %v2287
    %v2291 = vlaneseq
    %v2292 = vshrl.u32 %v2291, 7
    %v2293 = vsub.s32 0, %v2292
    %v2294 = vrot.slane %v2261, %v2293
    %v2296 = vmul.f32 %v2288, %v2294
    %v2297 = vmul.f32 %v2289, %v2294
    %v2299 = vlaneseq
    %v2300 = vshrl.u32 %v2299, 7
    %v2301 = vsub.s32 0, %v2300
    %v2302 = vrot.slane %v2263, %v2301
    %v2304 = vadd.f32 %v2296, %v2302
    %v2305 = vadd.f32 %v2297, %v2302
    %s2306 = scalar_lea.vmem %s4, 32
    %v2307 = vld [vmem:[%s2306] sm:$0xff]
    %v2308 = vld [vmem:[%s2306 + $0x8] sm:$0xff]
    %v2309 = vld [vmem:[%s2306 + $0x10] sm:$0xff]
    %v2310 = vld [vmem:[%s2306 + $0x18] sm:$0xff]
    %s2311 = scalar_lea.vmem [#allocation8], 1
    %v2312 = vld [vmem:[%s2311] sm:$0x1]
    %v2314 = vlaneseq
    %v2315 = vshrl.u32 %v2314, 7
    %v2316 = vsub.s32 0, %v2315
    %v2317 = vrot.slane %v2312, %v2316
    %v2320 = vsel %vm191, %v2304, 0
    %v2323 = vsel %vm191, %v2305, 0
    %2325 = vmatprep.subr.mxu0 0.0
    %2326 = vmatpush1.msra.mxu0 %v2307
    %2327 = vmatprep.subr.mxu0 0.0
    %2328 = vmatpush1.msra.mxu0 %v2308
    %2329 = vmatprep.subr.mxu0 0.0
    %2330 = vmatpush1.msra.mxu0 %v2309
    %2331 = vmatprep.subr.mxu0 0.0
    %2332 = vmatpush1.msra.mxu0 %v2310
    %2333 = vmatprep.subr.mxu0 0.0
    %2334 = vmatpush1.msra.mxu0 0.0
    %2335 = vmatprep.subr.mxu0 0.0
    %2336 = vmatpush1.msra.mxu0 0.0
    %2337 = vmatprep.subr.mxu0 0.0
    %2338 = vmatpush1.msra.mxu0 0.0
    %2339 = vmatprep.subr.mxu0 0.0
    %2340 = vmatpush1.msra.mxu0 0.0
    %2341 = vmatprep.subr.mxu0 0.0
    %2342 = vmatpush1.msra.mxu0 0.0
    %2343 = vmatprep.subr.mxu0 0.0
    %2344 = vmatpush1.msra.mxu0 0.0
    %2345 = vmatprep.subr.mxu0 0.0
    %2346 = vmatpush1.msra.mxu0 0.0
    %2347 = vmatprep.subr.mxu0 0.0
    %2348 = vmatpush1.msra.mxu0 0.0
    %2349 = vmatprep.subr.mxu0 0.0
    %2350 = vmatpush1.msra.mxu0 0.0
    %2351 = vmatprep.subr.mxu0 0.0
    %2352 = vmatpush1.msra.mxu0 0.0
    %2353 = vmatprep.subr.mxu0 0.0
    %2354 = vmatpush1.msra.mxu0 0.0
    %2355 = vmatprep.subr.mxu0 0.0
    %2356 = vmatpush1.msra.mxu0 0.0
    %2357 = vmatprep.subr.mxu0 0.0
    %2358 = vmatpush1.msra.mxu0 0.0
    %2359 = vmatprep.subr.mxu0 0.0
    %2360 = vmatpush1.msra.mxu0 0.0
    %2361 = vmatprep.subr.mxu0 0.0
    %2362 = vmatpush1.msra.mxu0 0.0
    %2363 = vmatprep.subr.mxu0 0.0
    %2364 = vmatpush1.msra.mxu0 0.0
    %2365 = vmatprep.subr.mxu0 0.0
    %2366 = vmatpush1.msra.mxu0 0.0
    %2367 = vmatprep.subr.mxu0 0.0
    %2368 = vmatpush1.msra.mxu0 0.0
    %2369 = vmatprep.subr.mxu0 0.0
    %2370 = vmatpush1.msra.mxu0 0.0
    %2371 = vmatprep.subr.mxu0 0.0
    %2372 = vmatpush1.msra.mxu0 0.0
    %2373 = vmatprep.subr.mxu0 0.0
    %2374 = vmatpush1.msra.mxu0 0.0
    %2375 = vmatprep.subr.mxu0 0.0
    %2376 = vmatpush1.msra.mxu0 0.0
    %2377 = vmatprep.subr.mxu0 0.0
    %2378 = vmatpush1.msra.mxu0 0.0
    %2379 = vmatprep.subr.mxu0 0.0
    %2380 = vmatpush1.msra.mxu0 0.0
    %2381 = vmatprep.subr.mxu0 0.0
    %2382 = vmatpush1.msra.mxu0 0.0
    %2383 = vmatprep.subr.mxu0 0.0
    %2384 = vmatpush1.msra.mxu0 0.0
    %2385 = vmatprep.subr.mxu0 0.0
    %2386 = vmatpush1.msra.mxu0 0.0
    %2387 = vmatprep.subr.mxu0 0.0
    %2388 = vmatpush1.msra.mxu0 0.0
    %2389 = vmatprep.mubr.f32.mxu0 0.0
    %2390 = vmatmul.mubr.f32.gmra.mrb[0].mxu0 %v2320
    %v2391 = vpop.f32.mrb[0].mxu0
    %v2392 = vadd.f32 %v2317, %v2391
    %v2393 = vpop.f32.mrb[0].mxu0
    %2394 = vmatprep.mubr.f32.mxu0 0.0
    %2395 = vmatmul.mubr.f32.gmra.mrb[0].mxu0 %v2323
    %v2396 = vpop.f32.mrb[0].mxu0
    %v2397 = vadd.f32 %v2317, %v2396
    %v2398 = vpop.f32.mrb[0].mxu0
    %2399 = vdwg.mxu0
    %s2400 = scalar_lea.vmem %s6, 32
    %v2401 = vld [vmem:[%s2400] sm:$0xff]
    %v2402 = vld [vmem:[%s2400 + $0x8] sm:$0xff]
    %v2403 = vld [vmem:[%s2400 + $0x10] sm:$0xff]
    %v2404 = vld [vmem:[%s2400 + $0x18] sm:$0xff]
    %2406 = vrot.lane.b32.xlu0 %v2392, 96
    %v2407 = vpop.permute.xlu0 %2406
    %v2408 = vsel %vm334, %v2392, 0
    %v2410 = vsel %vm334, %v2407, 0
    %2412 = vmatprep.subr.mxu0 0.0
    %2413 = vmatpush1.xpose.msra.mxu0 %v2410
    %2414 = vmatprep.subr.mxu0 0.0
    %2415 = vmatpush1.xpose.msra.mxu0 0.0
    %2416 = vmatprep.subr.mxu0 0.0
    %2417 = vmatpush1.xpose.msra.mxu0 0.0
    %2418 = vmatprep.subr.mxu0 0.0
    %2419 = vmatpush1.xpose.msra.mxu0 0.0
    %2420 = vmatprep.subr.mxu0 0.0
    %2421 = vmatpush1.xpose.msra.mxu0 0.0
    %2422 = vmatprep.subr.mxu0 0.0
    %2423 = vmatpush1.xpose.msra.mxu0 0.0
    %2424 = vmatprep.subr.mxu0 0.0
    %2425 = vmatpush1.xpose.msra.mxu0 0.0
    %2426 = vmatprep.subr.mxu0 0.0
    %2427 = vmatpush1.xpose.msra.mxu0 0.0
    %2428 = vmatprep.subr.mxu0 0.0
    %2429 = vmatpush1.xpose.msra.mxu0 0.0
    %2430 = vmatprep.subr.mxu0 0.0
    %2431 = vmatpush1.xpose.msra.mxu0 0.0
    %2432 = vmatprep.subr.mxu0 0.0
    %2433 = vmatpush1.xpose.msra.mxu0 0.0
    %2434 = vmatprep.subr.mxu0 0.0
    %2435 = vmatpush1.xpose.msra.mxu0 0.0
    %2436 = vmatprep.subr.mxu0 0.0
    %2437 = vmatpush1.xpose.msra.mxu0 0.0
    %2438 = vmatprep.subr.mxu0 0.0
    %2439 = vmatpush1.xpose.msra.mxu0 0.0
    %2440 = vmatprep.subr.mxu0 0.0
    %2441 = vmatpush1.xpose.msra.mxu0 0.0
    %2442 = vmatprep.subr.mxu0 0.0
    %2443 = vmatpush1.xpose.msra.mxu0 0.0
    %2444 = vmatprep.subr.mxu0 0.0
    %2445 = vmatpush1.xpose.msra.mxu0 0.0
    %2446 = vmatprep.subr.mxu0 0.0
    %2447 = vmatpush1.xpose.msra.mxu0 0.0
    %2448 = vmatprep.subr.mxu0 0.0
    %2449 = vmatpush1.xpose.msra.mxu0 0.0
    %2450 = vmatprep.subr.mxu0 0.0
    %2451 = vmatpush1.xpose.msra.mxu0 0.0
    %2452 = vmatprep.subr.mxu0 0.0
    %2453 = vmatpush1.xpose.msra.mxu0 0.0
    %2454 = vmatprep.subr.mxu0 0.0
    %2455 = vmatpush1.xpose.msra.mxu0 0.0
    %2456 = vmatprep.subr.mxu0 0.0
    %2457 = vmatpush1.xpose.msra.mxu0 0.0
    %2458 = vmatprep.subr.mxu0 0.0
    %2459 = vmatpush1.xpose.msra.mxu0 0.0
    %2460 = vmatprep.subr.mxu0 0.0
    %2461 = vmatpush1.xpose.msra.mxu0 0.0
    %2462 = vmatprep.subr.mxu0 0.0
    %2463 = vmatpush1.xpose.msra.mxu0 0.0
    %2464 = vmatprep.subr.mxu0 0.0
    %2465 = vmatpush1.xpose.msra.mxu0 0.0
    %2466 = vmatprep.subr.mxu0 0.0
    %2467 = vmatpush1.xpose.msra.mxu0 0.0
    %2468 = vmatprep.subr.mxu0 0.0
    %2469 = vmatpush1.xpose.msra.mxu0 0.0
    %2470 = vmatprep.subr.mxu0 0.0
    %2471 = vmatpush1.xpose.msra.mxu0 0.0
    %2472 = vmatprep.subr.mxu0 0.0
    %2473 = vmatpush1.xpose.msra.mxu0 0.0
    %2474 = vmatprep.subr.mxu0 0.0
    %2475 = vmatpush1.xpose.msra.mxu0 0.0
    %2476 = vmatprep.mubr.f32.mxu0 0.0
    %2477 = vmatmul.mubr.f32.gmra.mrb[0].mxu0 %v2408
    %v2478 = vpop.f32.mrb[0].mxu0
    %v2479 = vadd.f32 0.0, %v2478
    %v2480 = vpop.f32.mrb[0].mxu0
    %2481 = vdwg.mxu0
    %2483 = vrot.lane.b32.xlu0 %v2397, 96
    %v2484 = vpop.permute.xlu0 %2483
    %v2485 = vsel %vm334, %v2397, 0
    %v2487 = vsel %vm334, %v2484, 0
    %2489 = vmatprep.subr.mxu0 0.0
    %2490 = vmatpush1.xpose.msra.mxu0 %v2487
    %2491 = vmatprep.subr.mxu0 0.0
    %2492 = vmatpush1.xpose.msra.mxu0 0.0
    %2493 = vmatprep.subr.mxu0 0.0
    %2494 = vmatpush1.xpose.msra.mxu0 0.0
    %2495 = vmatprep.subr.mxu0 0.0
    %2496 = vmatpush1.xpose.msra.mxu0 0.0
    %2497 = vmatprep.subr.mxu0 0.0
    %2498 = vmatpush1.xpose.msra.mxu0 0.0
    %2499 = vmatprep.subr.mxu0 0.0
    %2500 = vmatpush1.xpose.msra.mxu0 0.0
    %2501 = vmatprep.subr.mxu0 0.0
    %2502 = vmatpush1.xpose.msra.mxu0 0.0
    %2503 = vmatprep.subr.mxu0 0.0
    %2504 = vmatpush1.xpose.msra.mxu0 0.0
    %2505 = vmatprep.subr.mxu0 0.0
    %2506 = vmatpush1.xpose.msra.mxu0 0.0
    %2507 = vmatprep.subr.mxu0 0.0
    %2508 = vmatpush1.xpose.msra.mxu0 0.0
    %2509 = vmatprep.subr.mxu0 0.0
    %2510 = vmatpush1.xpose.msra.mxu0 0.0
    %2511 = vmatprep.subr.mxu0 0.0
    %2512 = vmatpush1.xpose.msra.mxu0 0.0
    %2513 = vmatprep.subr.mxu0 0.0
    %2514 = vmatpush1.xpose.msra.mxu0 0.0
    %2515 = vmatprep.subr.mxu0 0.0
    %2516 = vmatpush1.xpose.msra.mxu0 0.0
    %2517 = vmatprep.subr.mxu0 0.0
    %2518 = vmatpush1.xpose.msra.mxu0 0.0
    %2519 = vmatprep.subr.mxu0 0.0
    %2520 = vmatpush1.xpose.msra.mxu0 0.0
    %2521 = vmatprep.subr.mxu0 0.0
    %2522 = vmatpush1.xpose.msra.mxu0 0.0
    %2523 = vmatprep.subr.mxu0 0.0
    %2524 = vmatpush1.xpose.msra.mxu0 0.0
    %2525 = vmatprep.subr.mxu0 0.0
    %2526 = vmatpush1.xpose.msra.mxu0 0.0
    %2527 = vmatprep.subr.mxu0 0.0
    %2528 = vmatpush1.xpose.msra.mxu0 0.0
    %2529 = vmatprep.subr.mxu0 0.0
    %2530 = vmatpush1.xpose.msra.mxu0 0.0
    %2531 = vmatprep.subr.mxu0 0.0
    %2532 = vmatpush1.xpose.msra.mxu0 0.0
    %2533 = vmatprep.subr.mxu0 0.0
    %2534 = vmatpush1.xpose.msra.mxu0 0.0
    %2535 = vmatprep.subr.mxu0 0.0
    %2536 = vmatpush1.xpose.msra.mxu0 0.0
    %2537 = vmatprep.subr.mxu0 0.0
    %2538 = vmatpush1.xpose.msra.mxu0 0.0
    %2539 = vmatprep.subr.mxu0 0.0
    %2540 = vmatpush1.xpose.msra.mxu0 0.0
    %2541 = vmatprep.subr.mxu0 0.0
    %2542 = vmatpush1.xpose.msra.mxu0 0.0
    %2543 = vmatprep.subr.mxu0 0.0
    %2544 = vmatpush1.xpose.msra.mxu0 0.0
    %2545 = vmatprep.subr.mxu0 0.0
    %2546 = vmatpush1.xpose.msra.mxu0 0.0
    %2547 = vmatprep.subr.mxu0 0.0
    %2548 = vmatpush1.xpose.msra.mxu0 0.0
    %2549 = vmatprep.subr.mxu0 0.0
    %2550 = vmatpush1.xpose.msra.mxu0 0.0
    %2551 = vmatprep.subr.mxu0 0.0
    %2552 = vmatpush1.xpose.msra.mxu0 0.0
    %2553 = vmatprep.mubr.f32.mxu0 0.0
    %2554 = vmatmul.mubr.f32.gmra.mrb[0].mxu0 %v2485
    %v2555 = vpop.f32.mrb[0].mxu0
    %v2556 = vadd.f32 0.0, %v2555
    %v2557 = vpop.f32.mrb[0].mxu0
    %2558 = vdwg.mxu0
    %v2559 = vmul.f32 %v2479, 0.35355338
    %v2560 = vmul.f32 %v2556, 0.35355338
    %v2561 = vadd.f32 %v2559, %v491
    %v2562 = vadd.f32 %v2560, %v495
    %v2563 = vsel %vm334, %v2561, -inf
    %2564 = vmax.xlane.f32.xlu0 %v2563
    %v2565 = vpop.xlane.xlu0 %2564
    %v2566 = vsel %vm334, %v2562, -inf
    %2567 = vmax.xlane.f32.xlu0 %v2566
    %v2568 = vpop.xlane.xlu0 %2567
    %v2569 = vsub.f32 %v2561, %v2565
    %v2570 = vsub.f32 %v2562, %v2568
    %v2571 = vmul.f32 %v2569, 1.442695
    %v2572 = vpow.pop %v2571
    %v2573 = vmul.f32 %v2570, 1.442695
    %v2574 = vpow.pop %v2573
    %v2575 = vsel %vm334, %v2572, 0.0
    %2576 = vadd.xlane.f32.xlu0 %v2575
    %v2577 = vpop.xlane.xlu0 %2576
    %v2578 = vsel %vm334, %v2574, 0.0
    %2579 = vadd.xlane.f32.xlu0 %v2578
    %v2580 = vpop.xlane.xlu0 %2579
    %v2581 = vrcp.pop %v2577
    %v2582 = vrcp.pop %v2580
    %v2583 = vmul.f32 %v2572, %v2581
    %v2584 = vmul.f32 %v2574, %v2582
    %2585 = vrot.lane.b32.xlu0 %v2392, 64
    %v2586 = vpop.permute.xlu0 %2585
    %v2589 = vsel %vm334, %v2583, 0
    %2591 = vmatprep.subr.mxu0 0.0
    %2592 = vmatpush1.msra.mxu0 %v2586
    %2593 = vmatprep.subr.mxu0 0.0
    %2594 = vmatpush1.msra.mxu0 0.0
    %2595 = vmatprep.subr.mxu0 0.0
    %2596 = vmatpush1.msra.mxu0 0.0
    %2597 = vmatprep.subr.mxu0 0.0
    %2598 = vmatpush1.msra.mxu0 0.0
    %2599 = vmatprep.subr.mxu0 0.0
    %2600 = vmatpush1.msra.mxu0 0.0
    %2601 = vmatprep.subr.mxu0 0.0
    %2602 = vmatpush1.msra.mxu0 0.0
    %2603 = vmatprep.subr.mxu0 0.0
    %2604 = vmatpush1.msra.mxu0 0.0
    %2605 = vmatprep.subr.mxu0 0.0
    %2606 = vmatpush1.msra.mxu0 0.0
    %2607 = vmatprep.subr.mxu0 0.0
    %2608 = vmatpush1.msra.mxu0 0.0
    %2609 = vmatprep.subr.mxu0 0.0
    %2610 = vmatpush1.msra.mxu0 0.0
    %2611 = vmatprep.subr.mxu0 0.0
    %2612 = vmatpush1.msra.mxu0 0.0
    %2613 = vmatprep.subr.mxu0 0.0
    %2614 = vmatpush1.msra.mxu0 0.0
    %2615 = vmatprep.subr.mxu0 0.0
    %2616 = vmatpush1.msra.mxu0 0.0
    %2617 = vmatprep.subr.mxu0 0.0
    %2618 = vmatpush1.msra.mxu0 0.0
    %2619 = vmatprep.subr.mxu0 0.0
    %2620 = vmatpush1.msra.mxu0 0.0
    %2621 = vmatprep.subr.mxu0 0.0
    %2622 = vmatpush1.msra.mxu0 0.0
    %2623 = vmatprep.subr.mxu0 0.0
    %2624 = vmatpush1.msra.mxu0 0.0
    %2625 = vmatprep.subr.mxu0 0.0
    %2626 = vmatpush1.msra.mxu0 0.0
    %2627 = vmatprep.subr.mxu0 0.0
    %2628 = vmatpush1.msra.mxu0 0.0
    %2629 = vmatprep.subr.mxu0 0.0
    %2630 = vmatpush1.msra.mxu0 0.0
    %2631 = vmatprep.subr.mxu0 0.0
    %2632 = vmatpush1.msra.mxu0 0.0
    %2633 = vmatprep.subr.mxu0 0.0
    %2634 = vmatpush1.msra.mxu0 0.0
    %2635 = vmatprep.subr.mxu0 0.0
    %2636 = vmatpush1.msra.mxu0 0.0
    %2637 = vmatprep.subr.mxu0 0.0
    %2638 = vmatpush1.msra.mxu0 0.0
    %2639 = vmatprep.subr.mxu0 0.0
    %2640 = vmatpush1.msra.mxu0 0.0
    %2641 = vmatprep.subr.mxu0 0.0
    %2642 = vmatpush1.msra.mxu0 0.0
    %2643 = vmatprep.subr.mxu0 0.0
    %2644 = vmatpush1.msra.mxu0 0.0
    %2645 = vmatprep.subr.mxu0 0.0
    %2646 = vmatpush1.msra.mxu0 0.0
    %2647 = vmatprep.subr.mxu0 0.0
    %2648 = vmatpush1.msra.mxu0 0.0
    %2649 = vmatprep.subr.mxu0 0.0
    %2650 = vmatpush1.msra.mxu0 0.0
    %2651 = vmatprep.subr.mxu0 0.0
    %2652 = vmatpush1.msra.mxu0 0.0
    %2653 = vmatprep.subr.mxu0 0.0
    %2654 = vmatpush1.msra.mxu0 0.0
    %2655 = vmatprep.mubr.f32.mxu0 0.0
    %2656 = vmatmul.mubr.f32.gmra.mrb[0].mxu0 %v2589
    %v2657 = vpop.f32.mrb[0].mxu0
    %v2658 = vadd.f32 0.0, %v2657
    %v2659 = vpop.f32.mrb[0].mxu0
    %2660 = vdwg.mxu0
    %2661 = vrot.lane.b32.xlu0 %v2397, 64
    %v2662 = vpop.permute.xlu0 %2661
    %v2665 = vsel %vm334, %v2584, 0
    %2667 = vmatprep.subr.mxu0 0.0
    %2668 = vmatpush1.msra.mxu0 %v2662
    %2669 = vmatprep.subr.mxu0 0.0
    %2670 = vmatpush1.msra.mxu0 0.0
    %2671 = vmatprep.subr.mxu0 0.0
    %2672 = vmatpush1.msra.mxu0 0.0
    %2673 = vmatprep.subr.mxu0 0.0
    %2674 = vmatpush1.msra.mxu0 0.0
    %2675 = vmatprep.subr.mxu0 0.0
    %2676 = vmatpush1.msra.mxu0 0.0
    %2677 = vmatprep.subr.mxu0 0.0
    %2678 = vmatpush1.msra.mxu0 0.0
    %2679 = vmatprep.subr.mxu0 0.0
    %2680 = vmatpush1.msra.mxu0 0.0
    %2681 = vmatprep.subr.mxu0 0.0
    %2682 = vmatpush1.msra.mxu0 0.0
    %2683 = vmatprep.subr.mxu0 0.0
    %2684 = vmatpush1.msra.mxu0 0.0
    %2685 = vmatprep.subr.mxu0 0.0
    %2686 = vmatpush1.msra.mxu0 0.0
    %2687 = vmatprep.subr.mxu0 0.0
    %2688 = vmatpush1.msra.mxu0 0.0
    %2689 = vmatprep.subr.mxu0 0.0
    %2690 = vmatpush1.msra.mxu0 0.0
    %2691 = vmatprep.subr.mxu0 0.0
    %2692 = vmatpush1.msra.mxu0 0.0
    %2693 = vmatprep.subr.mxu0 0.0
    %2694 = vmatpush1.msra.mxu0 0.0
    %2695 = vmatprep.subr.mxu0 0.0
    %2696 = vmatpush1.msra.mxu0 0.0
    %2697 = vmatprep.subr.mxu0 0.0
    %2698 = vmatpush1.msra.mxu0 0.0
    %2699 = vmatprep.subr.mxu0 0.0
    %2700 = vmatpush1.msra.mxu0 0.0
    %2701 = vmatprep.subr.mxu0 0.0
    %2702 = vmatpush1.msra.mxu0 0.0
    %2703 = vmatprep.subr.mxu0 0.0
    %2704 = vmatpush1.msra.mxu0 0.0
    %2705 = vmatprep.subr.mxu0 0.0
    %2706 = vmatpush1.msra.mxu0 0.0
    %2707 = vmatprep.subr.mxu0 0.0
    %2708 = vmatpush1.msra.mxu0 0.0
    %2709 = vmatprep.subr.mxu0 0.0
    %2710 = vmatpush1.msra.mxu0 0.0
    %2711 = vmatprep.subr.mxu0 0.0
    %2712 = vmatpush1.msra.mxu0 0.0
    %2713 = vmatprep.subr.mxu0 0.0
    %2714 = vmatpush1.msra.mxu0 0.0
    %2715 = vmatprep.subr.mxu0 0.0
    %2716 = vmatpush1.msra.mxu0 0.0
    %2717 = vmatprep.subr.mxu0 0.0
    %2718 = vmatpush1.msra.mxu0 0.0
    %2719 = vmatprep.subr.mxu0 0.0
    %2720 = vmatpush1.msra.mxu0 0.0
    %2721 = vmatprep.subr.mxu0 0.0
    %2722 = vmatpush1.msra.mxu0 0.0
    %2723 = vmatprep.subr.mxu0 0.0
    %2724 = vmatpush1.msra.mxu0 0.0
    %2725 = vmatprep.subr.mxu0 0.0
    %2726 = vmatpush1.msra.mxu0 0.0
    %2727 = vmatprep.subr.mxu0 0.0
    %2728 = vmatpush1.msra.mxu0 0.0
    %2729 = vmatprep.subr.mxu0 0.0
    %2730 = vmatpush1.msra.mxu0 0.0
    %2731 = vmatprep.mubr.f32.mxu0 0.0
    %2732 = vmatmul.mubr.f32.gmra.mrb[0].mxu0 %v2665
    %v2733 = vpop.f32.mrb[0].mxu0
    %v2734 = vadd.f32 0.0, %v2733
    %v2735 = vpop.f32.mrb[0].mxu0
    %2736 = vdwg.mxu0
    %2737 = vrot.lane.b32.xlu0 %v2392, 120
    %v2738 = vpop.permute.xlu0 %2737
    %2739 = vrot.lane.b32.xlu0 %v2392, 88
    %v2740 = vpop.permute.xlu0 %2739
    %v2741 = vsel %vm334, %v2738, 0
    %v2743 = vsel %vm334, %v2740, 0
    %2745 = vmatprep.subr.mxu0 0.0
    %2746 = vmatpush1.xpose.msra.mxu0 %v2743
    %2747 = vmatprep.subr.mxu0 0.0
    %2748 = vmatpush1.xpose.msra.mxu0 0.0
    %2749 = vmatprep.subr.mxu0 0.0
    %2750 = vmatpush1.xpose.msra.mxu0 0.0
    %2751 = vmatprep.subr.mxu0 0.0
    %2752 = vmatpush1.xpose.msra.mxu0 0.0
    %2753 = vmatprep.subr.mxu0 0.0
    %2754 = vmatpush1.xpose.msra.mxu0 0.0
    %2755 = vmatprep.subr.mxu0 0.0
    %2756 = vmatpush1.xpose.msra.mxu0 0.0
    %2757 = vmatprep.subr.mxu0 0.0
    %2758 = vmatpush1.xpose.msra.mxu0 0.0
    %2759 = vmatprep.subr.mxu0 0.0
    %2760 = vmatpush1.xpose.msra.mxu0 0.0
    %2761 = vmatprep.subr.mxu0 0.0
    %2762 = vmatpush1.xpose.msra.mxu0 0.0
    %2763 = vmatprep.subr.mxu0 0.0
    %2764 = vmatpush1.xpose.msra.mxu0 0.0
    %2765 = vmatprep.subr.mxu0 0.0
    %2766 = vmatpush1.xpose.msra.mxu0 0.0
    %2767 = vmatprep.subr.mxu0 0.0
    %2768 = vmatpush1.xpose.msra.mxu0 0.0
    %2769 = vmatprep.subr.mxu0 0.0
    %2770 = vmatpush1.xpose.msra.mxu0 0.0
    %2771 = vmatprep.subr.mxu0 0.0
    %2772 = vmatpush1.xpose.msra.mxu0 0.0
    %2773 = vmatprep.subr.mxu0 0.0
    %2774 = vmatpush1.xpose.msra.mxu0 0.0
    %2775 = vmatprep.subr.mxu0 0.0
    %2776 = vmatpush1.xpose.msra.mxu0 0.0
    %2777 = vmatprep.subr.mxu0 0.0
    %2778 = vmatpush1.xpose.msra.mxu0 0.0
    %2779 = vmatprep.subr.mxu0 0.0
    %2780 = vmatpush1.xpose.msra.mxu0 0.0
    %2781 = vmatprep.subr.mxu0 0.0
    %2782 = vmatpush1.xpose.msra.mxu0 0.0
    %2783 = vmatprep.subr.mxu0 0.0
    %2784 = vmatpush1.xpose.msra.mxu0 0.0
    %2785 = vmatprep.subr.mxu0 0.0
    %2786 = vmatpush1.xpose.msra.mxu0 0.0
    %2787 = vmatprep.subr.mxu0 0.0
    %2788 = vmatpush1.xpose.msra.mxu0 0.0
    %2789 = vmatprep.subr.mxu0 0.0
    %2790 = vmatpush1.xpose.msra.mxu0 0.0
    %2791 = vmatprep.subr.mxu0 0.0
    %2792 = vmatpush1.xpose.msra.mxu0 0.0
    %2793 = vmatprep.subr.mxu0 0.0
    %2794 = vmatpush1.xpose.msra.mxu0 0.0
    %2795 = vmatprep.subr.mxu0 0.0
    %2796 = vmatpush1.xpose.msra.mxu0 0.0
    %2797 = vmatprep.subr.mxu0 0.0
    %2798 = vmatpush1.xpose.msra.mxu0 0.0
    %2799 = vmatprep.subr.mxu0 0.0
    %2800 = vmatpush1.xpose.msra.mxu0 0.0
    %2801 = vmatprep.subr.mxu0 0.0
    %2802 = vmatpush1.xpose.msra.mxu0 0.0
    %2803 = vmatprep.subr.mxu0 0.0
    %2804 = vmatpush1.xpose.msra.mxu0 0.0
    %2805 = vmatprep.subr.mxu0 0.0
    %2806 = vmatpush1.xpose.msra.mxu0 0.0
    %2807 = vmatprep.subr.mxu0 0.0
    %2808 = vmatpush1.xpose.msra.mxu0 0.0
    %2809 = vmatprep.mubr.f32.mxu0 0.0
    %2810 = vmatmul.mubr.f32.gmra.mrb[0].mxu0 %v2741
    %v2811 = vpop.f32.mrb[0].mxu0
    %v2812 = vadd.f32 0.0, %v2811
    %v2813 = vpop.f32.mrb[0].mxu0
    %2814 = vdwg.mxu0
    %2815 = vrot.lane.b32.xlu0 %v2397, 120
    %v2816 = vpop.permute.xlu0 %2815
    %2817 = vrot.lane.b32.xlu0 %v2397, 88
    %v2818 = vpop.permute.xlu0 %2817
    %v2819 = vsel %vm334, %v2816, 0
    %v2821 = vsel %vm334, %v2818, 0
    %2823 = vmatprep.subr.mxu0 0.0
    %2824 = vmatpush1.xpose.msra.mxu0 %v2821
    %2825 = vmatprep.subr.mxu0 0.0
    %2826 = vmatpush1.xpose.msra.mxu0 0.0
    %2827 = vmatprep.subr.mxu0 0.0
    %2828 = vmatpush1.xpose.msra.mxu0 0.0
    %2829 = vmatprep.subr.mxu0 0.0
    %2830 = vmatpush1.xpose.msra.mxu0 0.0
    %2831 = vmatprep.subr.mxu0 0.0
    %2832 = vmatpush1.xpose.msra.mxu0 0.0
    %2833 = vmatprep.subr.mxu0 0.0
    %2834 = vmatpush1.xpose.msra.mxu0 0.0
    %2835 = vmatprep.subr.mxu0 0.0
    %2836 = vmatpush1.xpose.msra.mxu0 0.0
    %2837 = vmatprep.subr.mxu0 0.0
    %2838 = vmatpush1.xpose.msra.mxu0 0.0
    %2839 = vmatprep.subr.mxu0 0.0
    %2840 = vmatpush1.xpose.msra.mxu0 0.0
    %2841 = vmatprep.subr.mxu0 0.0
    %2842 = vmatpush1.xpose.msra.mxu0 0.0
    %2843 = vmatprep.subr.mxu0 0.0
    %2844 = vmatpush1.xpose.msra.mxu0 0.0
    %2845 = vmatprep.subr.mxu0 0.0
    %2846 = vmatpush1.xpose.msra.mxu0 0.0
    %2847 = vmatprep.subr.mxu0 0.0
    %2848 = vmatpush1.xpose.msra.mxu0 0.0
    %2849 = vmatprep.subr.mxu0 0.0
    %2850 = vmatpush1.xpose.msra.mxu0 0.0
    %2851 = vmatprep.subr.mxu0 0.0
    %2852 = vmatpush1.xpose.msra.mxu0 0.0
    %2853 = vmatprep.subr.mxu0 0.0
    %2854 = vmatpush1.xpose.msra.mxu0 0.0
    %2855 = vmatprep.subr.mxu0 0.0
    %2856 = vmatpush1.xpose.msra.mxu0 0.0
    %2857 = vmatprep.subr.mxu0 0.0
    %2858 = vmatpush1.xpose.msra.mxu0 0.0
    %2859 = vmatprep.subr.mxu0 0.0
    %2860 = vmatpush1.xpose.msra.mxu0 0.0
    %2861 = vmatprep.subr.mxu0 0.0
    %2862 = vmatpush1.xpose.msra.mxu0 0.0
    %2863 = vmatprep.subr.mxu0 0.0
    %2864 = vmatpush1.xpose.msra.mxu0 0.0
    %2865 = vmatprep.subr.mxu0 0.0
    %2866 = vmatpush1.xpose.msra.mxu0 0.0
    %2867 = vmatprep.subr.mxu0 0.0
    %2868 = vmatpush1.xpose.msra.mxu0 0.0
    %2869 = vmatprep.subr.mxu0 0.0
    %2870 = vmatpush1.xpose.msra.mxu0 0.0
    %2871 = vmatprep.subr.mxu0 0.0
    %2872 = vmatpush1.xpose.msra.mxu0 0.0
    %2873 = vmatprep.subr.mxu0 0.0
    %2874 = vmatpush1.xpose.msra.mxu0 0.0
    %2875 = vmatprep.subr.mxu0 0.0
    %2876 = vmatpush1.xpose.msra.mxu0 0.0
    %2877 = vmatprep.subr.mxu0 0.0
    %2878 = vmatpush1.xpose.msra.mxu0 0.0
    %2879 = vmatprep.subr.mxu0 0.0
    %2880 = vmatpush1.xpose.msra.mxu0 0.0
    %2881 = vmatprep.subr.mxu0 0.0
    %2882 = vmatpush1.xpose.msra.mxu0 0.0
    %2883 = vmatprep.subr.mxu0 0.0
    %2884 = vmatpush1.xpose.msra.mxu0 0.0
    %2885 = vmatprep.subr.mxu0 0.0
    %2886 = vmatpush1.xpose.msra.mxu0 0.0
    %2887 = vmatprep.mubr.f32.mxu0 0.0
    %2888 = vmatmul.mubr.f32.gmra.mrb[0].mxu0 %v2819
    %v2889 = vpop.f32.mrb[0].mxu0
    %v2890 = vadd.f32 0.0, %v2889
    %v2891 = vpop.f32.mrb[0].mxu0
    %2892 = vdwg.mxu0
    %v2893 = vmul.f32 %v2812, 0.35355338
    %v2894 = vmul.f32 %v2890, 0.35355338
    %v2895 = vadd.f32 %v2893, %v491
    %v2896 = vadd.f32 %v2894, %v495
    %v2897 = vsel %vm334, %v2895, -inf
    %2898 = vmax.xlane.f32.xlu0 %v2897
    %v2899 = vpop.xlane.xlu0 %2898
    %v2900 = vsel %vm334, %v2896, -inf
    %2901 = vmax.xlane.f32.xlu0 %v2900
    %v2902 = vpop.xlane.xlu0 %2901
    %v2903 = vsub.f32 %v2895, %v2899
    %v2904 = vsub.f32 %v2896, %v2902
    %v2905 = vmul.f32 %v2903, 1.442695
    %v2906 = vpow.pop %v2905
    %v2907 = vmul.f32 %v2904, 1.442695
    %v2908 = vpow.pop %v2907
    %v2909 = vsel %vm334, %v2906, 0.0
    %2910 = vadd.xlane.f32.xlu0 %v2909
    %v2911 = vpop.xlane.xlu0 %2910
    %v2912 = vsel %vm334, %v2908, 0.0
    %2913 = vadd.xlane.f32.xlu0 %v2912
    %v2914 = vpop.xlane.xlu0 %2913
    %v2915 = vrcp.pop %v2911
    %v2916 = vrcp.pop %v2914
    %v2917 = vmul.f32 %v2906, %v2915
    %v2918 = vmul.f32 %v2908, %v2916
    %2919 = vrot.lane.b32.xlu0 %v2392, 56
    %v2920 = vpop.permute.xlu0 %2919
    %v2923 = vsel %vm334, %v2917, 0
    %2925 = vmatprep.subr.mxu0 0.0
    %2926 = vmatpush1.msra.mxu0 %v2920
    %2927 = vmatprep.subr.mxu0 0.0
    %2928 = vmatpush1.msra.mxu0 0.0
    %2929 = vmatprep.subr.mxu0 0.0
    %2930 = vmatpush1.msra.mxu0 0.0
    %2931 = vmatprep.subr.mxu0 0.0
    %2932 = vmatpush1.msra.mxu0 0.0
    %2933 = vmatprep.subr.mxu0 0.0
    %2934 = vmatpush1.msra.mxu0 0.0
    %2935 = vmatprep.subr.mxu0 0.0
    %2936 = vmatpush1.msra.mxu0 0.0
    %2937 = vmatprep.subr.mxu0 0.0
    %2938 = vmatpush1.msra.mxu0 0.0
    %2939 = vmatprep.subr.mxu0 0.0
    %2940 = vmatpush1.msra.mxu0 0.0
    %2941 = vmatprep.subr.mxu0 0.0
    %2942 = vmatpush1.msra.mxu0 0.0
    %2943 = vmatprep.subr.mxu0 0.0
    %2944 = vmatpush1.msra.mxu0 0.0
    %2945 = vmatprep.subr.mxu0 0.0
    %2946 = vmatpush1.msra.mxu0 0.0
    %2947 = vmatprep.subr.mxu0 0.0
    %2948 = vmatpush1.msra.mxu0 0.0
    %2949 = vmatprep.subr.mxu0 0.0
    %2950 = vmatpush1.msra.mxu0 0.0
    %2951 = vmatprep.subr.mxu0 0.0
    %2952 = vmatpush1.msra.mxu0 0.0
    %2953 = vmatprep.subr.mxu0 0.0
    %2954 = vmatpush1.msra.mxu0 0.0
    %2955 = vmatprep.subr.mxu0 0.0
    %2956 = vmatpush1.msra.mxu0 0.0
    %2957 = vmatprep.subr.mxu0 0.0
    %2958 = vmatpush1.msra.mxu0 0.0
    %2959 = vmatprep.subr.mxu0 0.0
    %2960 = vmatpush1.msra.mxu0 0.0
    %2961 = vmatprep.subr.mxu0 0.0
    %2962 = vmatpush1.msra.mxu0 0.0
    %2963 = vmatprep.subr.mxu0 0.0
    %2964 = vmatpush1.msra.mxu0 0.0
    %2965 = vmatprep.subr.mxu0 0.0
    %2966 = vmatpush1.msra.mxu0 0.0
    %2967 = vmatprep.subr.mxu0 0.0
    %2968 = vmatpush1.msra.mxu0 0.0
    %2969 = vmatprep.subr.mxu0 0.0
    %2970 = vmatpush1.msra.mxu0 0.0
    %2971 = vmatprep.subr.mxu0 0.0
    %2972 = vmatpush1.msra.mxu0 0.0
    %2973 = vmatprep.subr.mxu0 0.0
    %2974 = vmatpush1.msra.mxu0 0.0
    %2975 = vmatprep.subr.mxu0 0.0
    %2976 = vmatpush1.msra.mxu0 0.0
    %2977 = vmatprep.subr.mxu0 0.0
    %2978 = vmatpush1.msra.mxu0 0.0
    %2979 = vmatprep.subr.mxu0 0.0
    %2980 = vmatpush1.msra.mxu0 0.0
    %2981 = vmatprep.subr.mxu0 0.0
    %2982 = vmatpush1.msra.mxu0 0.0
    %2983 = vmatprep.subr.mxu0 0.0
    %2984 = vmatpush1.msra.mxu0 0.0
    %2985 = vmatprep.subr.mxu0 0.0
    %2986 = vmatpush1.msra.mxu0 0.0
    %2987 = vmatprep.subr.mxu0 0.0
    %2988 = vmatpush1.msra.mxu0 0.0
    %2989 = vmatprep.mubr.f32.mxu0 0.0
    %2990 = vmatmul.mubr.f32.gmra.mrb[0].mxu0 %v2923
    %v2991 = vpop.f32.mrb[0].mxu0
    %v2992 = vadd.f32 0.0, %v2991
    %v2993 = vpop.f32.mrb[0].mxu0
    %2994 = vdwg.mxu0
    %2995 = vrot.lane.b32.xlu0 %v2397, 56
    %v2996 = vpop.permute.xlu0 %2995
    %v2999 = vsel %vm334, %v2918, 0
    %3001 = vmatprep.subr.mxu0 0.0
    %3002 = vmatpush1.msra.mxu0 %v2996
    %3003 = vmatprep.subr.mxu0 0.0
    %3004 = vmatpush1.msra.mxu0 0.0
    %3005 = vmatprep.subr.mxu0 0.0
    %3006 = vmatpush1.msra.mxu0 0.0
    %3007 = vmatprep.subr.mxu0 0.0
    %3008 = vmatpush1.msra.mxu0 0.0
    %3009 = vmatprep.subr.mxu0 0.0
    %3010 = vmatpush1.msra.mxu0 0.0
    %3011 = vmatprep.subr.mxu0 0.0
    %3012 = vmatpush1.msra.mxu0 0.0
    %3013 = vmatprep.subr.mxu0 0.0
    %3014 = vmatpush1.msra.mxu0 0.0
    %3015 = vmatprep.subr.mxu0 0.0
    %3016 = vmatpush1.msra.mxu0 0.0
    %3017 = vmatprep.subr.mxu0 0.0
    %3018 = vmatpush1.msra.mxu0 0.0
    %3019 = vmatprep.subr.mxu0 0.0
    %3020 = vmatpush1.msra.mxu0 0.0
    %3021 = vmatprep.subr.mxu0 0.0
    %3022 = vmatpush1.msra.mxu0 0.0
    %3023 = vmatprep.subr.mxu0 0.0
    %3024 = vmatpush1.msra.mxu0 0.0
    %3025 = vmatprep.subr.mxu0 0.0
    %3026 = vmatpush1.msra.mxu0 0.0
    %3027 = vmatprep.subr.mxu0 0.0
    %3028 = vmatpush1.msra.mxu0 0.0
    %3029 = vmatprep.subr.mxu0 0.0
    %3030 = vmatpush1.msra.mxu0 0.0
    %3031 = vmatprep.subr.mxu0 0.0
    %3032 = vmatpush1.msra.mxu0 0.0
    %3033 = vmatprep.subr.mxu0 0.0
    %3034 = vmatpush1.msra.mxu0 0.0
    %3035 = vmatprep.subr.mxu0 0.0
    %3036 = vmatpush1.msra.mxu0 0.0
    %3037 = vmatprep.subr.mxu0 0.0
    %3038 = vmatpush1.msra.mxu0 0.0
    %3039 = vmatprep.subr.mxu0 0.0
    %3040 = vmatpush1.msra.mxu0 0.0
    %3041 = vmatprep.subr.mxu0 0.0
    %3042 = vmatpush1.msra.mxu0 0.0
    %3043 = vmatprep.subr.mxu0 0.0
    %3044 = vmatpush1.msra.mxu0 0.0
    %3045 = vmatprep.subr.mxu0 0.0
    %3046 = vmatpush1.msra.mxu0 0.0
    %3047 = vmatprep.subr.mxu0 0.0
    %3048 = vmatpush1.msra.mxu0 0.0
    %3049 = vmatprep.subr.mxu0 0.0
    %3050 = vmatpush1.msra.mxu0 0.0
    %3051 = vmatprep.subr.mxu0 0.0
    %3052 = vmatpush1.msra.mxu0 0.0
    %3053 = vmatprep.subr.mxu0 0.0
    %3054 = vmatpush1.msra.mxu0 0.0
    %3055 = vmatprep.subr.mxu0 0.0
    %3056 = vmatpush1.msra.mxu0 0.0
    %3057 = vmatprep.subr.mxu0 0.0
    %3058 = vmatpush1.msra.mxu0 0.0
    %3059 = vmatprep.subr.mxu0 0.0
    %3060 = vmatpush1.msra.mxu0 0.0
    %3061 = vmatprep.subr.mxu0 0.0
    %3062 = vmatpush1.msra.mxu0 0.0
    %3063 = vmatprep.subr.mxu0 0.0
    %3064 = vmatpush1.msra.mxu0 0.0
    %3065 = vmatprep.mubr.f32.mxu0 0.0
    %3066 = vmatmul.mubr.f32.gmra.mrb[0].mxu0 %v2999
    %v3067 = vpop.f32.mrb[0].mxu0
    %v3068 = vadd.f32 0.0, %v3067
    %v3069 = vpop.f32.mrb[0].mxu0
    %3070 = vdwg.mxu0
    %v3072 = vsel %vm334, %v2992, 0
    %v3075 = vsel %vm334, %v3068, 0
    %3077 = vmatprep.subr.mxu0 0.0
    %3078 = vmatpush1.msra.mxu0 %v2402
    %3079 = vmatprep.subr.mxu0 0.0
    %3080 = vmatpush1.msra.mxu0 0.0
    %3081 = vmatprep.subr.mxu0 0.0
    %3082 = vmatpush1.msra.mxu0 0.0
    %3083 = vmatprep.subr.mxu0 0.0
    %3084 = vmatpush1.msra.mxu0 0.0
    %3085 = vmatprep.subr.mxu0 0.0
    %3086 = vmatpush1.msra.mxu0 0.0
    %3087 = vmatprep.subr.mxu0 0.0
    %3088 = vmatpush1.msra.mxu0 0.0
    %3089 = vmatprep.subr.mxu0 0.0
    %3090 = vmatpush1.msra.mxu0 0.0
    %3091 = vmatprep.subr.mxu0 0.0
    %3092 = vmatpush1.msra.mxu0 0.0
    %3093 = vmatprep.subr.mxu0 0.0
    %3094 = vmatpush1.msra.mxu0 0.0
    %3095 = vmatprep.subr.mxu0 0.0
    %3096 = vmatpush1.msra.mxu0 0.0
    %3097 = vmatprep.subr.mxu0 0.0
    %3098 = vmatpush1.msra.mxu0 0.0
    %3099 = vmatprep.subr.mxu0 0.0
    %3100 = vmatpush1.msra.mxu0 0.0
    %3101 = vmatprep.subr.mxu0 0.0
    %3102 = vmatpush1.msra.mxu0 0.0
    %3103 = vmatprep.subr.mxu0 0.0
    %3104 = vmatpush1.msra.mxu0 0.0
    %3105 = vmatprep.subr.mxu0 0.0
    %3106 = vmatpush1.msra.mxu0 0.0
    %3107 = vmatprep.subr.mxu0 0.0
    %3108 = vmatpush1.msra.mxu0 0.0
    %3109 = vmatprep.subr.mxu0 0.0
    %3110 = vmatpush1.msra.mxu0 0.0
    %3111 = vmatprep.subr.mxu0 0.0
    %3112 = vmatpush1.msra.mxu0 0.0
    %3113 = vmatprep.subr.mxu0 0.0
    %3114 = vmatpush1.msra.mxu0 0.0
    %3115 = vmatprep.subr.mxu0 0.0
    %3116 = vmatpush1.msra.mxu0 0.0
    %3117 = vmatprep.subr.mxu0 0.0
    %3118 = vmatpush1.msra.mxu0 0.0
    %3119 = vmatprep.subr.mxu0 0.0
    %3120 = vmatpush1.msra.mxu0 0.0
    %3121 = vmatprep.subr.mxu0 0.0
    %3122 = vmatpush1.msra.mxu0 0.0
    %3123 = vmatprep.subr.mxu0 0.0
    %3124 = vmatpush1.msra.mxu0 0.0
    %3125 = vmatprep.subr.mxu0 0.0
    %3126 = vmatpush1.msra.mxu0 0.0
    %3127 = vmatprep.subr.mxu0 0.0
    %3128 = vmatpush1.msra.mxu0 0.0
    %3129 = vmatprep.subr.mxu0 0.0
    %3130 = vmatpush1.msra.mxu0 0.0
    %3131 = vmatprep.subr.mxu0 0.0
    %3132 = vmatpush1.msra.mxu0 0.0
    %3133 = vmatprep.subr.mxu0 0.0
    %3134 = vmatpush1.msra.mxu0 0.0
    %3135 = vmatprep.subr.mxu0 0.0
    %3136 = vmatpush1.msra.mxu0 0.0
    %3137 = vmatprep.subr.mxu0 0.0
    %3138 = vmatpush1.msra.mxu0 0.0
    %3139 = vmatprep.subr.mxu0 0.0
    %3140 = vmatpush1.msra.mxu0 0.0
    %3141 = vmatprep.mubr.f32.mxu0 0.0
    %3142 = vmatmul.mubr.f32.gmra.mrb[0].mxu0 %v3072
    %v3143 = vpop.f32.mrb[0].mxu0
    %v3144 = vadd.f32 0.0, %v3143
    %v3145 = vpop.f32.mrb[0].mxu0
    %3146 = vmatprep.mubr.f32.mxu0 0.0
    %3147 = vmatmul.mubr.f32.gmra.mrb[0].mxu0 %v3075
    %v3148 = vpop.f32.mrb[0].mxu0
    %v3149 = vadd.f32 0.0, %v3148
    %v3150 = vpop.f32.mrb[0].mxu0
    %3151 = vdwg.mxu0
    %v3153 = vsel %vm334, %v2658, 0
    %v3156 = vsel %vm334, %v2734, 0
    %3158 = vmatprep.subr.mxu0 0.0
    %3159 = vmatpush1.msra.mxu0 %v2401
    %3160 = vmatprep.subr.mxu0 0.0
    %3161 = vmatpush1.msra.mxu0 0.0
    %3162 = vmatprep.subr.mxu0 0.0
    %3163 = vmatpush1.msra.mxu0 0.0
    %3164 = vmatprep.subr.mxu0 0.0
    %3165 = vmatpush1.msra.mxu0 0.0
    %3166 = vmatprep.subr.mxu0 0.0
    %3167 = vmatpush1.msra.mxu0 0.0
    %3168 = vmatprep.subr.mxu0 0.0
    %3169 = vmatpush1.msra.mxu0 0.0
    %3170 = vmatprep.subr.mxu0 0.0
    %3171 = vmatpush1.msra.mxu0 0.0
    %3172 = vmatprep.subr.mxu0 0.0
    %3173 = vmatpush1.msra.mxu0 0.0
    %3174 = vmatprep.subr.mxu0 0.0
    %3175 = vmatpush1.msra.mxu0 0.0
    %3176 = vmatprep.subr.mxu0 0.0
    %3177 = vmatpush1.msra.mxu0 0.0
    %3178 = vmatprep.subr.mxu0 0.0
    %3179 = vmatpush1.msra.mxu0 0.0
    %3180 = vmatprep.subr.mxu0 0.0
    %3181 = vmatpush1.msra.mxu0 0.0
    %3182 = vmatprep.subr.mxu0 0.0
    %3183 = vmatpush1.msra.mxu0 0.0
    %3184 = vmatprep.subr.mxu0 0.0
    %3185 = vmatpush1.msra.mxu0 0.0
    %3186 = vmatprep.subr.mxu0 0.0
    %3187 = vmatpush1.msra.mxu0 0.0
    %3188 = vmatprep.subr.mxu0 0.0
    %3189 = vmatpush1.msra.mxu0 0.0
    %3190 = vmatprep.subr.mxu0 0.0
    %3191 = vmatpush1.msra.mxu0 0.0
    %3192 = vmatprep.subr.mxu0 0.0
    %3193 = vmatpush1.msra.mxu0 0.0
    %3194 = vmatprep.subr.mxu0 0.0
    %3195 = vmatpush1.msra.mxu0 0.0
    %3196 = vmatprep.subr.mxu0 0.0
    %3197 = vmatpush1.msra.mxu0 0.0
    %3198 = vmatprep.subr.mxu0 0.0
    %3199 = vmatpush1.msra.mxu0 0.0
    %3200 = vmatprep.subr.mxu0 0.0
    %3201 = vmatpush1.msra.mxu0 0.0
    %3202 = vmatprep.subr.mxu0 0.0
    %3203 = vmatpush1.msra.mxu0 0.0
    %3204 = vmatprep.subr.mxu0 0.0
    %3205 = vmatpush1.msra.mxu0 0.0
    %3206 = vmatprep.subr.mxu0 0.0
    %3207 = vmatpush1.msra.mxu0 0.0
    %3208 = vmatprep.subr.mxu0 0.0
    %3209 = vmatpush1.msra.mxu0 0.0
    %3210 = vmatprep.subr.mxu0 0.0
    %3211 = vmatpush1.msra.mxu0 0.0
    %3212 = vmatprep.subr.mxu0 0.0
    %3213 = vmatpush1.msra.mxu0 0.0
    %3214 = vmatprep.subr.mxu0 0.0
    %3215 = vmatpush1.msra.mxu0 0.0
    %3216 = vmatprep.subr.mxu0 0.0
    %3217 = vmatpush1.msra.mxu0 0.0
    %3218 = vmatprep.subr.mxu0 0.0
    %3219 = vmatpush1.msra.mxu0 0.0
    %3220 = vmatprep.subr.mxu0 0.0
    %3221 = vmatpush1.msra.mxu0 0.0
    %3222 = vmatprep.mubr.f32.mxu0 0.0
    %3223 = vmatmul.mubr.f32.gmra.mrb[0].mxu0 %v3153
    %v3224 = vpop.f32.mrb[0].mxu0
    %v3225 = vadd.f32 %v3144, %v3224
    %v3226 = vpop.f32.mrb[0].mxu0
    %3227 = vmatprep.mubr.f32.mxu0 0.0
    %3228 = vmatmul.mubr.f32.gmra.mrb[0].mxu0 %v3156
    %v3229 = vpop.f32.mrb[0].mxu0
    %v3230 = vadd.f32 %v3149, %v3229
    %v3231 = vpop.f32.mrb[0].mxu0
    %3232 = vdwg.mxu0
    %3233 = vrot.lane.b32.xlu0 %v2392, 112
    %v3234 = vpop.permute.xlu0 %3233
    %3235 = vrot.lane.b32.xlu0 %v2392, 80
    %v3236 = vpop.permute.xlu0 %3235
    %v3237 = vsel %vm334, %v3234, 0
    %v3239 = vsel %vm334, %v3236, 0
    %3241 = vmatprep.subr.mxu0 0.0
    %3242 = vmatpush1.xpose.msra.mxu0 %v3239
    %3243 = vmatprep.subr.mxu0 0.0
    %3244 = vmatpush1.xpose.msra.mxu0 0.0
    %3245 = vmatprep.subr.mxu0 0.0
    %3246 = vmatpush1.xpose.msra.mxu0 0.0
    %3247 = vmatprep.subr.mxu0 0.0
    %3248 = vmatpush1.xpose.msra.mxu0 0.0
    %3249 = vmatprep.subr.mxu0 0.0
    %3250 = vmatpush1.xpose.msra.mxu0 0.0
    %3251 = vmatprep.subr.mxu0 0.0
    %3252 = vmatpush1.xpose.msra.mxu0 0.0
    %3253 = vmatprep.subr.mxu0 0.0
    %3254 = vmatpush1.xpose.msra.mxu0 0.0
    %3255 = vmatprep.subr.mxu0 0.0
    %3256 = vmatpush1.xpose.msra.mxu0 0.0
    %3257 = vmatprep.subr.mxu0 0.0
    %3258 = vmatpush1.xpose.msra.mxu0 0.0
    %3259 = vmatprep.subr.mxu0 0.0
    %3260 = vmatpush1.xpose.msra.mxu0 0.0
    %3261 = vmatprep.subr.mxu0 0.0
    %3262 = vmatpush1.xpose.msra.mxu0 0.0
    %3263 = vmatprep.subr.mxu0 0.0
    %3264 = vmatpush1.xpose.msra.mxu0 0.0
    %3265 = vmatprep.subr.mxu0 0.0
    %3266 = vmatpush1.xpose.msra.mxu0 0.0
    %3267 = vmatprep.subr.mxu0 0.0
    %3268 = vmatpush1.xpose.msra.mxu0 0.0
    %3269 = vmatprep.subr.mxu0 0.0
    %3270 = vmatpush1.xpose.msra.mxu0 0.0
    %3271 = vmatprep.subr.mxu0 0.0
    %3272 = vmatpush1.xpose.msra.mxu0 0.0
    %3273 = vmatprep.subr.mxu0 0.0
    %3274 = vmatpush1.xpose.msra.mxu0 0.0
    %3275 = vmatprep.subr.mxu0 0.0
    %3276 = vmatpush1.xpose.msra.mxu0 0.0
    %3277 = vmatprep.subr.mxu0 0.0
    %3278 = vmatpush1.xpose.msra.mxu0 0.0
    %3279 = vmatprep.subr.mxu0 0.0
    %3280 = vmatpush1.xpose.msra.mxu0 0.0
    %3281 = vmatprep.subr.mxu0 0.0
    %3282 = vmatpush1.xpose.msra.mxu0 0.0
    %3283 = vmatprep.subr.mxu0 0.0
    %3284 = vmatpush1.xpose.msra.mxu0 0.0
    %3285 = vmatprep.subr.mxu0 0.0
    %3286 = vmatpush1.xpose.msra.mxu0 0.0
    %3287 = vmatprep.subr.mxu0 0.0
    %3288 = vmatpush1.xpose.msra.mxu0 0.0
    %3289 = vmatprep.subr.mxu0 0.0
    %3290 = vmatpush1.xpose.msra.mxu0 0.0
    %3291 = vmatprep.subr.mxu0 0.0
    %3292 = vmatpush1.xpose.msra.mxu0 0.0
    %3293 = vmatprep.subr.mxu0 0.0
    %3294 = vmatpush1.xpose.msra.mxu0 0.0
    %3295 = vmatprep.subr.mxu0 0.0
    %3296 = vmatpush1.xpose.msra.mxu0 0.0
    %3297 = vmatprep.subr.mxu0 0.0
    %3298 = vmatpush1.xpose.msra.mxu0 0.0
    %3299 = vmatprep.subr.mxu0 0.0
    %3300 = vmatpush1.xpose.msra.mxu0 0.0
    %3301 = vmatprep.subr.mxu0 0.0
    %3302 = vmatpush1.xpose.msra.mxu0 0.0
    %3303 = vmatprep.subr.mxu0 0.0
    %3304 = vmatpush1.xpose.msra.mxu0 0.0
    %3305 = vmatprep.mubr.f32.mxu0 0.0
    %3306 = vmatmul.mubr.f32.gmra.mrb[0].mxu0 %v3237
    %v3307 = vpop.f32.mrb[0].mxu0
    %v3308 = vadd.f32 0.0, %v3307
    %v3309 = vpop.f32.mrb[0].mxu0
    %3310 = vdwg.mxu0
    %3311 = vrot.lane.b32.xlu0 %v2397, 112
    %v3312 = vpop.permute.xlu0 %3311
    %3313 = vrot.lane.b32.xlu0 %v2397, 80
    %v3314 = vpop.permute.xlu0 %3313
    %v3315 = vsel %vm334, %v3312, 0
    %v3317 = vsel %vm334, %v3314, 0
    %3319 = vmatprep.subr.mxu0 0.0
    %3320 = vmatpush1.xpose.msra.mxu0 %v3317
    %3321 = vmatprep.subr.mxu0 0.0
    %3322 = vmatpush1.xpose.msra.mxu0 0.0
    %3323 = vmatprep.subr.mxu0 0.0
    %3324 = vmatpush1.xpose.msra.mxu0 0.0
    %3325 = vmatprep.subr.mxu0 0.0
    %3326 = vmatpush1.xpose.msra.mxu0 0.0
    %3327 = vmatprep.subr.mxu0 0.0
    %3328 = vmatpush1.xpose.msra.mxu0 0.0
    %3329 = vmatprep.subr.mxu0 0.0
    %3330 = vmatpush1.xpose.msra.mxu0 0.0
    %3331 = vmatprep.subr.mxu0 0.0
    %3332 = vmatpush1.xpose.msra.mxu0 0.0
    %3333 = vmatprep.subr.mxu0 0.0
    %3334 = vmatpush1.xpose.msra.mxu0 0.0
    %3335 = vmatprep.subr.mxu0 0.0
    %3336 = vmatpush1.xpose.msra.mxu0 0.0
    %3337 = vmatprep.subr.mxu0 0.0
    %3338 = vmatpush1.xpose.msra.mxu0 0.0
    %3339 = vmatprep.subr.mxu0 0.0
    %3340 = vmatpush1.xpose.msra.mxu0 0.0
    %3341 = vmatprep.subr.mxu0 0.0
    %3342 = vmatpush1.xpose.msra.mxu0 0.0
    %3343 = vmatprep.subr.mxu0 0.0
    %3344 = vmatpush1.xpose.msra.mxu0 0.0
    %3345 = vmatprep.subr.mxu0 0.0
    %3346 = vmatpush1.xpose.msra.mxu0 0.0
    %3347 = vmatprep.subr.mxu0 0.0
    %3348 = vmatpush1.xpose.msra.mxu0 0.0
    %3349 = vmatprep.subr.mxu0 0.0
    %3350 = vmatpush1.xpose.msra.mxu0 0.0
    %3351 = vmatprep.subr.mxu0 0.0
    %3352 = vmatpush1.xpose.msra.mxu0 0.0
    %3353 = vmatprep.subr.mxu0 0.0
    %3354 = vmatpush1.xpose.msra.mxu0 0.0
    %3355 = vmatprep.subr.mxu0 0.0
    %3356 = vmatpush1.xpose.msra.mxu0 0.0
    %3357 = vmatprep.subr.mxu0 0.0
    %3358 = vmatpush1.xpose.msra.mxu0 0.0
    %3359 = vmatprep.subr.mxu0 0.0
    %3360 = vmatpush1.xpose.msra.mxu0 0.0
    %3361 = vmatprep.subr.mxu0 0.0
    %3362 = vmatpush1.xpose.msra.mxu0 0.0
    %3363 = vmatprep.subr.mxu0 0.0
    %3364 = vmatpush1.xpose.msra.mxu0 0.0
    %3365 = vmatprep.subr.mxu0 0.0
    %3366 = vmatpush1.xpose.msra.mxu0 0.0
    %3367 = vmatprep.subr.mxu0 0.0
    %3368 = vmatpush1.xpose.msra.mxu0 0.0
    %3369 = vmatprep.subr.mxu0 0.0
    %3370 = vmatpush1.xpose.msra.mxu0 0.0
    %3371 = vmatprep.subr.mxu0 0.0
    %3372 = vmatpush1.xpose.msra.mxu0 0.0
    %3373 = vmatprep.subr.mxu0 0.0
    %3374 = vmatpush1.xpose.msra.mxu0 0.0
    %3375 = vmatprep.subr.mxu0 0.0
    %3376 = vmatpush1.xpose.msra.mxu0 0.0
    %3377 = vmatprep.subr.mxu0 0.0
    %3378 = vmatpush1.xpose.msra.mxu0 0.0
    %3379 = vmatprep.subr.mxu0 0.0
    %3380 = vmatpush1.xpose.msra.mxu0 0.0
    %3381 = vmatprep.subr.mxu0 0.0
    %3382 = vmatpush1.xpose.msra.mxu0 0.0
    %3383 = vmatprep.mubr.f32.mxu0 0.0
    %3384 = vmatmul.mubr.f32.gmra.mrb[0].mxu0 %v3315
    %v3385 = vpop.f32.mrb[0].mxu0
    %v3386 = vadd.f32 0.0, %v3385
    %v3387 = vpop.f32.mrb[0].mxu0
    %3388 = vdwg.mxu0
    %v3389 = vmul.f32 %v3308, 0.35355338
    %v3390 = vmul.f32 %v3386, 0.35355338
    %v3391 = vadd.f32 %v3389, %v491
    %v3392 = vadd.f32 %v3390, %v495
    %v3393 = vsel %vm334, %v3391, -inf
    %3394 = vmax.xlane.f32.xlu0 %v3393
    %v3395 = vpop.xlane.xlu0 %3394
    %v3396 = vsel %vm334, %v3392, -inf
    %3397 = vmax.xlane.f32.xlu0 %v3396
    %v3398 = vpop.xlane.xlu0 %3397
    %v3399 = vsub.f32 %v3391, %v3395
    %v3400 = vsub.f32 %v3392, %v3398
    %v3401 = vmul.f32 %v3399, 1.442695
    %v3402 = vpow.pop %v3401
    %v3403 = vmul.f32 %v3400, 1.442695
    %v3404 = vpow.pop %v3403
    %v3405 = vsel %vm334, %v3402, 0.0
    %3406 = vadd.xlane.f32.xlu0 %v3405
    %v3407 = vpop.xlane.xlu0 %3406
    %v3408 = vsel %vm334, %v3404, 0.0
    %3409 = vadd.xlane.f32.xlu0 %v3408
    %v3410 = vpop.xlane.xlu0 %3409
    %v3411 = vrcp.pop %v3407
    %v3412 = vrcp.pop %v3410
    %v3413 = vmul.f32 %v3402, %v3411
    %v3414 = vmul.f32 %v3404, %v3412
    %3415 = vrot.lane.b32.xlu0 %v2392, 48
    %v3416 = vpop.permute.xlu0 %3415
    %v3419 = vsel %vm334, %v3413, 0
    %3421 = vmatprep.subr.mxu0 0.0
    %3422 = vmatpush1.msra.mxu0 %v3416
    %3423 = vmatprep.subr.mxu0 0.0
    %3424 = vmatpush1.msra.mxu0 0.0
    %3425 = vmatprep.subr.mxu0 0.0
    %3426 = vmatpush1.msra.mxu0 0.0
    %3427 = vmatprep.subr.mxu0 0.0
    %3428 = vmatpush1.msra.mxu0 0.0
    %3429 = vmatprep.subr.mxu0 0.0
    %3430 = vmatpush1.msra.mxu0 0.0
    %3431 = vmatprep.subr.mxu0 0.0
    %3432 = vmatpush1.msra.mxu0 0.0
    %3433 = vmatprep.subr.mxu0 0.0
    %3434 = vmatpush1.msra.mxu0 0.0
    %3435 = vmatprep.subr.mxu0 0.0
    %3436 = vmatpush1.msra.mxu0 0.0
    %3437 = vmatprep.subr.mxu0 0.0
    %3438 = vmatpush1.msra.mxu0 0.0
    %3439 = vmatprep.subr.mxu0 0.0
    %3440 = vmatpush1.msra.mxu0 0.0
    %3441 = vmatprep.subr.mxu0 0.0
    %3442 = vmatpush1.msra.mxu0 0.0
    %3443 = vmatprep.subr.mxu0 0.0
    %3444 = vmatpush1.msra.mxu0 0.0
    %3445 = vmatprep.subr.mxu0 0.0
    %3446 = vmatpush1.msra.mxu0 0.0
    %3447 = vmatprep.subr.mxu0 0.0
    %3448 = vmatpush1.msra.mxu0 0.0
    %3449 = vmatprep.subr.mxu0 0.0
    %3450 = vmatpush1.msra.mxu0 0.0
    %3451 = vmatprep.subr.mxu0 0.0
    %3452 = vmatpush1.msra.mxu0 0.0
    %3453 = vmatprep.subr.mxu0 0.0
    %3454 = vmatpush1.msra.mxu0 0.0
    %3455 = vmatprep.subr.mxu0 0.0
    %3456 = vmatpush1.msra.mxu0 0.0
    %3457 = vmatprep.subr.mxu0 0.0
    %3458 = vmatpush1.msra.mxu0 0.0
    %3459 = vmatprep.subr.mxu0 0.0
    %3460 = vmatpush1.msra.mxu0 0.0
    %3461 = vmatprep.subr.mxu0 0.0
    %3462 = vmatpush1.msra.mxu0 0.0
    %3463 = vmatprep.subr.mxu0 0.0
    %3464 = vmatpush1.msra.mxu0 0.0
    %3465 = vmatprep.subr.mxu0 0.0
    %3466 = vmatpush1.msra.mxu0 0.0
    %3467 = vmatprep.subr.mxu0 0.0
    %3468 = vmatpush1.msra.mxu0 0.0
    %3469 = vmatprep.subr.mxu0 0.0
    %3470 = vmatpush1.msra.mxu0 0.0
    %3471 = vmatprep.subr.mxu0 0.0
    %3472 = vmatpush1.msra.mxu0 0.0
    %3473 = vmatprep.subr.mxu0 0.0
    %3474 = vmatpush1.msra.mxu0 0.0
    %3475 = vmatprep.subr.mxu0 0.0
    %3476 = vmatpush1.msra.mxu0 0.0
    %3477 = vmatprep.subr.mxu0 0.0
    %3478 = vmatpush1.msra.mxu0 0.0
    %3479 = vmatprep.subr.mxu0 0.0
    %3480 = vmatpush1.msra.mxu0 0.0
    %3481 = vmatprep.subr.mxu0 0.0
    %3482 = vmatpush1.msra.mxu0 0.0
    %3483 = vmatprep.subr.mxu0 0.0
    %3484 = vmatpush1.msra.mxu0 0.0
    %3485 = vmatprep.mubr.f32.mxu0 0.0
    %3486 = vmatmul.mubr.f32.gmra.mrb[0].mxu0 %v3419
    %v3487 = vpop.f32.mrb[0].mxu0
    %v3488 = vadd.f32 0.0, %v3487
    %v3489 = vpop.f32.mrb[0].mxu0
    %3490 = vdwg.mxu0
    %3491 = vrot.lane.b32.xlu0 %v2397, 48
    %v3492 = vpop.permute.xlu0 %3491
    %v3495 = vsel %vm334, %v3414, 0
    %3497 = vmatprep.subr.mxu0 0.0
    %3498 = vmatpush1.msra.mxu0 %v3492
    %3499 = vmatprep.subr.mxu0 0.0
    %3500 = vmatpush1.msra.mxu0 0.0
    %3501 = vmatprep.subr.mxu0 0.0
    %3502 = vmatpush1.msra.mxu0 0.0
    %3503 = vmatprep.subr.mxu0 0.0
    %3504 = vmatpush1.msra.mxu0 0.0
    %3505 = vmatprep.subr.mxu0 0.0
    %3506 = vmatpush1.msra.mxu0 0.0
    %3507 = vmatprep.subr.mxu0 0.0
    %3508 = vmatpush1.msra.mxu0 0.0
    %3509 = vmatprep.subr.mxu0 0.0
    %3510 = vmatpush1.msra.mxu0 0.0
    %3511 = vmatprep.subr.mxu0 0.0
    %3512 = vmatpush1.msra.mxu0 0.0
    %3513 = vmatprep.subr.mxu0 0.0
    %3514 = vmatpush1.msra.mxu0 0.0
    %3515 = vmatprep.subr.mxu0 0.0
    %3516 = vmatpush1.msra.mxu0 0.0
    %3517 = vmatprep.subr.mxu0 0.0
    %3518 = vmatpush1.msra.mxu0 0.0
    %3519 = vmatprep.subr.mxu0 0.0
    %3520 = vmatpush1.msra.mxu0 0.0
    %3521 = vmatprep.subr.mxu0 0.0
    %3522 = vmatpush1.msra.mxu0 0.0
    %3523 = vmatprep.subr.mxu0 0.0
    %3524 = vmatpush1.msra.mxu0 0.0
    %3525 = vmatprep.subr.mxu0 0.0
    %3526 = vmatpush1.msra.mxu0 0.0
    %3527 = vmatprep.subr.mxu0 0.0
    %3528 = vmatpush1.msra.mxu0 0.0
    %3529 = vmatprep.subr.mxu0 0.0
    %3530 = vmatpush1.msra.mxu0 0.0
    %3531 = vmatprep.subr.mxu0 0.0
    %3532 = vmatpush1.msra.mxu0 0.0
    %3533 = vmatprep.subr.mxu0 0.0
    %3534 = vmatpush1.msra.mxu0 0.0
    %3535 = vmatprep.subr.mxu0 0.0
    %3536 = vmatpush1.msra.mxu0 0.0
    %3537 = vmatprep.subr.mxu0 0.0
    %3538 = vmatpush1.msra.mxu0 0.0
    %3539 = vmatprep.subr.mxu0 0.0
    %3540 = vmatpush1.msra.mxu0 0.0
    %3541 = vmatprep.subr.mxu0 0.0
    %3542 = vmatpush1.msra.mxu0 0.0
    %3543 = vmatprep.subr.mxu0 0.0
    %3544 = vmatpush1.msra.mxu0 0.0
    %3545 = vmatprep.subr.mxu0 0.0
    %3546 = vmatpush1.msra.mxu0 0.0
    %3547 = vmatprep.subr.mxu0 0.0
    %3548 = vmatpush1.msra.mxu0 0.0
    %3549 = vmatprep.subr.mxu0 0.0
    %3550 = vmatpush1.msra.mxu0 0.0
    %3551 = vmatprep.subr.mxu0 0.0
    %3552 = vmatpush1.msra.mxu0 0.0
    %3553 = vmatprep.subr.mxu0 0.0
    %3554 = vmatpush1.msra.mxu0 0.0
    %3555 = vmatprep.subr.mxu0 0.0
    %3556 = vmatpush1.msra.mxu0 0.0
    %3557 = vmatprep.subr.mxu0 0.0
    %3558 = vmatpush1.msra.mxu0 0.0
    %3559 = vmatprep.subr.mxu0 0.0
    %3560 = vmatpush1.msra.mxu0 0.0
    %3561 = vmatprep.mubr.f32.mxu0 0.0
    %3562 = vmatmul.mubr.f32.gmra.mrb[0].mxu0 %v3495
    %v3563 = vpop.f32.mrb[0].mxu0
    %v3564 = vadd.f32 0.0, %v3563
    %v3565 = vpop.f32.mrb[0].mxu0
    %3566 = vdwg.mxu0
    %v3568 = vsel %vm334, %v3488, 0
    %v3571 = vsel %vm334, %v3564, 0
    %3573 = vmatprep.subr.mxu0 0.0
    %3574 = vmatpush1.msra.mxu0 %v2403
    %3575 = vmatprep.subr.mxu0 0.0
    %3576 = vmatpush1.msra.mxu0 0.0
    %3577 = vmatprep.subr.mxu0 0.0
    %3578 = vmatpush1.msra.mxu0 0.0
    %3579 = vmatprep.subr.mxu0 0.0
    %3580 = vmatpush1.msra.mxu0 0.0
    %3581 = vmatprep.subr.mxu0 0.0
    %3582 = vmatpush1.msra.mxu0 0.0
    %3583 = vmatprep.subr.mxu0 0.0
    %3584 = vmatpush1.msra.mxu0 0.0
    %3585 = vmatprep.subr.mxu0 0.0
    %3586 = vmatpush1.msra.mxu0 0.0
    %3587 = vmatprep.subr.mxu0 0.0
    %3588 = vmatpush1.msra.mxu0 0.0
    %3589 = vmatprep.subr.mxu0 0.0
    %3590 = vmatpush1.msra.mxu0 0.0
    %3591 = vmatprep.subr.mxu0 0.0
    %3592 = vmatpush1.msra.mxu0 0.0
    %3593 = vmatprep.subr.mxu0 0.0
    %3594 = vmatpush1.msra.mxu0 0.0
    %3595 = vmatprep.subr.mxu0 0.0
    %3596 = vmatpush1.msra.mxu0 0.0
    %3597 = vmatprep.subr.mxu0 0.0
    %3598 = vmatpush1.msra.mxu0 0.0
    %3599 = vmatprep.subr.mxu0 0.0
    %3600 = vmatpush1.msra.mxu0 0.0
    %3601 = vmatprep.subr.mxu0 0.0
    %3602 = vmatpush1.msra.mxu0 0.0
    %3603 = vmatprep.subr.mxu0 0.0
    %3604 = vmatpush1.msra.mxu0 0.0
    %3605 = vmatprep.subr.mxu0 0.0
    %3606 = vmatpush1.msra.mxu0 0.0
    %3607 = vmatprep.subr.mxu0 0.0
    %3608 = vmatpush1.msra.mxu0 0.0
    %3609 = vmatprep.subr.mxu0 0.0
    %3610 = vmatpush1.msra.mxu0 0.0
    %3611 = vmatprep.subr.mxu0 0.0
    %3612 = vmatpush1.msra.mxu0 0.0
    %3613 = vmatprep.subr.mxu0 0.0
    %3614 = vmatpush1.msra.mxu0 0.0
    %3615 = vmatprep.subr.mxu0 0.0
    %3616 = vmatpush1.msra.mxu0 0.0
    %3617 = vmatprep.subr.mxu0 0.0
    %3618 = vmatpush1.msra.mxu0 0.0
    %3619 = vmatprep.subr.mxu0 0.0
    %3620 = vmatpush1.msra.mxu0 0.0
    %3621 = vmatprep.subr.mxu0 0.0
    %3622 = vmatpush1.msra.mxu0 0.0
    %3623 = vmatprep.subr.mxu0 0.0
    %3624 = vmatpush1.msra.mxu0 0.0
    %3625 = vmatprep.subr.mxu0 0.0
    %3626 = vmatpush1.msra.mxu0 0.0
    %3627 = vmatprep.subr.mxu0 0.0
    %3628 = vmatpush1.msra.mxu0 0.0
    %3629 = vmatprep.subr.mxu0 0.0
    %3630 = vmatpush1.msra.mxu0 0.0
    %3631 = vmatprep.subr.mxu0 0.0
    %3632 = vmatpush1.msra.mxu0 0.0
    %3633 = vmatprep.subr.mxu0 0.0
    %3634 = vmatpush1.msra.mxu0 0.0
    %3635 = vmatprep.subr.mxu0 0.0
    %3636 = vmatpush1.msra.mxu0 0.0
    %3637 = vmatprep.mubr.f32.mxu0 0.0
    %3638 = vmatmul.mubr.f32.gmra.mrb[0].mxu0 %v3568
    %v3639 = vpop.f32.mrb[0].mxu0
    %v3640 = vadd.f32 0.0, %v3639
    %v3641 = vpop.f32.mrb[0].mxu0
    %3642 = vmatprep.mubr.f32.mxu0 0.0
    %3643 = vmatmul.mubr.f32.gmra.mrb[0].mxu0 %v3571
    %v3644 = vpop.f32.mrb[0].mxu0
    %v3645 = vadd.f32 0.0, %v3644
    %v3646 = vpop.f32.mrb[0].mxu0
    %3647 = vdwg.mxu0
    %v3648 = vadd.f32 %v3225, %v3640
    %v3649 = vadd.f32 %v3230, %v3645
    %3650 = vrot.lane.b32.xlu0 %v2392, 104
    %v3651 = vpop.permute.xlu0 %3650
    %3652 = vrot.lane.b32.xlu0 %v2392, 72
    %v3653 = vpop.permute.xlu0 %3652
    %v3654 = vsel %vm334, %v3651, 0
    %v3656 = vsel %vm334, %v3653, 0
    %3658 = vmatprep.subr.mxu0 0.0
    %3659 = vmatpush1.xpose.msra.mxu0 %v3656
    %3660 = vmatprep.subr.mxu0 0.0
    %3661 = vmatpush1.xpose.msra.mxu0 0.0
    %3662 = vmatprep.subr.mxu0 0.0
    %3663 = vmatpush1.xpose.msra.mxu0 0.0
    %3664 = vmatprep.subr.mxu0 0.0
    %3665 = vmatpush1.xpose.msra.mxu0 0.0
    %3666 = vmatprep.subr.mxu0 0.0
    %3667 = vmatpush1.xpose.msra.mxu0 0.0
    %3668 = vmatprep.subr.mxu0 0.0
    %3669 = vmatpush1.xpose.msra.mxu0 0.0
    %3670 = vmatprep.subr.mxu0 0.0
    %3671 = vmatpush1.xpose.msra.mxu0 0.0
    %3672 = vmatprep.subr.mxu0 0.0
    %3673 = vmatpush1.xpose.msra.mxu0 0.0
    %3674 = vmatprep.subr.mxu0 0.0
    %3675 = vmatpush1.xpose.msra.mxu0 0.0
    %3676 = vmatprep.subr.mxu0 0.0
    %3677 = vmatpush1.xpose.msra.mxu0 0.0
    %3678 = vmatprep.subr.mxu0 0.0
    %3679 = vmatpush1.xpose.msra.mxu0 0.0
    %3680 = vmatprep.subr.mxu0 0.0
    %3681 = vmatpush1.xpose.msra.mxu0 0.0
    %3682 = vmatprep.subr.mxu0 0.0
    %3683 = vmatpush1.xpose.msra.mxu0 0.0
    %3684 = vmatprep.subr.mxu0 0.0
    %3685 = vmatpush1.xpose.msra.mxu0 0.0
    %3686 = vmatprep.subr.mxu0 0.0
    %3687 = vmatpush1.xpose.msra.mxu0 0.0
    %3688 = vmatprep.subr.mxu0 0.0
    %3689 = vmatpush1.xpose.msra.mxu0 0.0
    %3690 = vmatprep.subr.mxu0 0.0
    %3691 = vmatpush1.xpose.msra.mxu0 0.0
    %3692 = vmatprep.subr.mxu0 0.0
    %3693 = vmatpush1.xpose.msra.mxu0 0.0
    %3694 = vmatprep.subr.mxu0 0.0
    %3695 = vmatpush1.xpose.msra.mxu0 0.0
    %3696 = vmatprep.subr.mxu0 0.0
    %3697 = vmatpush1.xpose.msra.mxu0 0.0
    %3698 = vmatprep.subr.mxu0 0.0
    %3699 = vmatpush1.xpose.msra.mxu0 0.0
    %3700 = vmatprep.subr.mxu0 0.0
    %3701 = vmatpush1.xpose.msra.mxu0 0.0
    %3702 = vmatprep.subr.mxu0 0.0
    %3703 = vmatpush1.xpose.msra.mxu0 0.0
    %3704 = vmatprep.subr.mxu0 0.0
    %3705 = vmatpush1.xpose.msra.mxu0 0.0
    %3706 = vmatprep.subr.mxu0 0.0
    %3707 = vmatpush1.xpose.msra.mxu0 0.0
    %3708 = vmatprep.subr.mxu0 0.0
    %3709 = vmatpush1.xpose.msra.mxu0 0.0
    %3710 = vmatprep.subr.mxu0 0.0
    %3711 = vmatpush1.xpose.msra.mxu0 0.0
    %3712 = vmatprep.subr.mxu0 0.0
    %3713 = vmatpush1.xpose.msra.mxu0 0.0
    %3714 = vmatprep.subr.mxu0 0.0
    %3715 = vmatpush1.xpose.msra.mxu0 0.0
    %3716 = vmatprep.subr.mxu0 0.0
    %3717 = vmatpush1.xpose.msra.mxu0 0.0
    %3718 = vmatprep.subr.mxu0 0.0
    %3719 = vmatpush1.xpose.msra.mxu0 0.0
    %3720 = vmatprep.subr.mxu0 0.0
    %3721 = vmatpush1.xpose.msra.mxu0 0.0
    %3722 = vmatprep.mubr.f32.mxu0 0.0
    %3723 = vmatmul.mubr.f32.gmra.mrb[0].mxu0 %v3654
    %v3724 = vpop.f32.mrb[0].mxu0
    %v3725 = vadd.f32 0.0, %v3724
    %v3726 = vpop.f32.mrb[0].mxu0
    %3727 = vdwg.mxu0
    %3728 = vrot.lane.b32.xlu0 %v2397, 104
    %v3729 = vpop.permute.xlu0 %3728
    %3730 = vrot.lane.b32.xlu0 %v2397, 72
    %v3731 = vpop.permute.xlu0 %3730
    %v3732 = vsel %vm334, %v3729, 0
    %v3734 = vsel %vm334, %v3731, 0
    %3736 = vmatprep.subr.mxu0 0.0
    %3737 = vmatpush1.xpose.msra.mxu0 %v3734
    %3738 = vmatprep.subr.mxu0 0.0
    %3739 = vmatpush1.xpose.msra.mxu0 0.0
    %3740 = vmatprep.subr.mxu0 0.0
    %3741 = vmatpush1.xpose.msra.mxu0 0.0
    %3742 = vmatprep.subr.mxu0 0.0
    %3743 = vmatpush1.xpose.msra.mxu0 0.0
    %3744 = vmatprep.subr.mxu0 0.0
    %3745 = vmatpush1.xpose.msra.mxu0 0.0
    %3746 = vmatprep.subr.mxu0 0.0
    %3747 = vmatpush1.xpose.msra.mxu0 0.0
    %3748 = vmatprep.subr.mxu0 0.0
    %3749 = vmatpush1.xpose.msra.mxu0 0.0
    %3750 = vmatprep.subr.mxu0 0.0
    %3751 = vmatpush1.xpose.msra.mxu0 0.0
    %3752 = vmatprep.subr.mxu0 0.0
    %3753 = vmatpush1.xpose.msra.mxu0 0.0
    %3754 = vmatprep.subr.mxu0 0.0
    %3755 = vmatpush1.xpose.msra.mxu0 0.0
    %3756 = vmatprep.subr.mxu0 0.0
    %3757 = vmatpush1.xpose.msra.mxu0 0.0
    %3758 = vmatprep.subr.mxu0 0.0
    %3759 = vmatpush1.xpose.msra.mxu0 0.0
    %3760 = vmatprep.subr.mxu0 0.0
    %3761 = vmatpush1.xpose.msra.mxu0 0.0
    %3762 = vmatprep.subr.mxu0 0.0
    %3763 = vmatpush1.xpose.msra.mxu0 0.0
    %3764 = vmatprep.subr.mxu0 0.0
    %3765 = vmatpush1.xpose.msra.mxu0 0.0
    %3766 = vmatprep.subr.mxu0 0.0
    %3767 = vmatpush1.xpose.msra.mxu0 0.0
    %3768 = vmatprep.subr.mxu0 0.0
    %3769 = vmatpush1.xpose.msra.mxu0 0.0
    %3770 = vmatprep.subr.mxu0 0.0
    %3771 = vmatpush1.xpose.msra.mxu0 0.0
    %3772 = vmatprep.subr.mxu0 0.0
    %3773 = vmatpush1.xpose.msra.mxu0 0.0
    %3774 = vmatprep.subr.mxu0 0.0
    %3775 = vmatpush1.xpose.msra.mxu0 0.0
    %3776 = vmatprep.subr.mxu0 0.0
    %3777 = vmatpush1.xpose.msra.mxu0 0.0
    %3778 = vmatprep.subr.mxu0 0.0
    %3779 = vmatpush1.xpose.msra.mxu0 0.0
    %3780 = vmatprep.subr.mxu0 0.0
    %3781 = vmatpush1.xpose.msra.mxu0 0.0
    %3782 = vmatprep.subr.mxu0 0.0
    %3783 = vmatpush1.xpose.msra.mxu0 0.0
    %3784 = vmatprep.subr.mxu0 0.0
    %3785 = vmatpush1.xpose.msra.mxu0 0.0
    %3786 = vmatprep.subr.mxu0 0.0
    %3787 = vmatpush1.xpose.msra.mxu0 0.0
    %3788 = vmatprep.subr.mxu0 0.0
    %3789 = vmatpush1.xpose.msra.mxu0 0.0
    %3790 = vmatprep.subr.mxu0 0.0
    %3791 = vmatpush1.xpose.msra.mxu0 0.0
    %3792 = vmatprep.subr.mxu0 0.0
    %3793 = vmatpush1.xpose.msra.mxu0 0.0
    %3794 = vmatprep.subr.mxu0 0.0
    %3795 = vmatpush1.xpose.msra.mxu0 0.0
    %3796 = vmatprep.subr.mxu0 0.0
    %3797 = vmatpush1.xpose.msra.mxu0 0.0
    %3798 = vmatprep.subr.mxu0 0.0
    %3799 = vmatpush1.xpose.msra.mxu0 0.0
    %3800 = vmatprep.mubr.f32.mxu0 0.0
    %3801 = vmatmul.mubr.f32.gmra.mrb[0].mxu0 %v3732
    %v3802 = vpop.f32.mrb[0].mxu0
    %v3803 = vadd.f32 0.0, %v3802
    %v3804 = vpop.f32.mrb[0].mxu0
    %3805 = vdwg.mxu0
    %v3806 = vmul.f32 %v3725, 0.35355338
    %v3807 = vmul.f32 %v3803, 0.35355338
    %v3808 = vadd.f32 %v3806, %v491
    %v3809 = vadd.f32 %v3807, %v495
    %v3810 = vsel %vm334, %v3808, -inf
    %3811 = vmax.xlane.f32.xlu0 %v3810
    %v3812 = vpop.xlane.xlu0 %3811
    %v3813 = vsel %vm334, %v3809, -inf
    %3814 = vmax.xlane.f32.xlu0 %v3813
    %v3815 = vpop.xlane.xlu0 %3814
    %v3816 = vsub.f32 %v3808, %v3812
    %v3817 = vsub.f32 %v3809, %v3815
    %v3818 = vmul.f32 %v3816, 1.442695
    %v3819 = vpow.pop %v3818
    %v3820 = vmul.f32 %v3817, 1.442695
    %v3821 = vpow.pop %v3820
    %v3822 = vsel %vm334, %v3819, 0.0
    %3823 = vadd.xlane.f32.xlu0 %v3822
    %v3824 = vpop.xlane.xlu0 %3823
    %v3825 = vsel %vm334, %v3821, 0.0
    %3826 = vadd.xlane.f32.xlu0 %v3825
    %v3827 = vpop.xlane.xlu0 %3826
    %v3828 = vrcp.pop %v3824
    %v3829 = vrcp.pop %v3827
    %v3830 = vmul.f32 %v3819, %v3828
    %v3831 = vmul.f32 %v3821, %v3829
    %3832 = vrot.lane.b32.xlu0 %v2392, 40
    %v3833 = vpop.permute.xlu0 %3832
    %v3836 = vsel %vm334, %v3830, 0
    %3838 = vmatprep.subr.mxu0 0.0
    %3839 = vmatpush1.msra.mxu0 %v3833
    %3840 = vmatprep.subr.mxu0 0.0
    %3841 = vmatpush1.msra.mxu0 0.0
    %3842 = vmatprep.subr.mxu0 0.0
    %3843 = vmatpush1.msra.mxu0 0.0
    %3844 = vmatprep.subr.mxu0 0.0
    %3845 = vmatpush1.msra.mxu0 0.0
    %3846 = vmatprep.subr.mxu0 0.0
    %3847 = vmatpush1.msra.mxu0 0.0
    %3848 = vmatprep.subr.mxu0 0.0
    %3849 = vmatpush1.msra.mxu0 0.0
    %3850 = vmatprep.subr.mxu0 0.0
    %3851 = vmatpush1.msra.mxu0 0.0
    %3852 = vmatprep.subr.mxu0 0.0
    %3853 = vmatpush1.msra.mxu0 0.0
    %3854 = vmatprep.subr.mxu0 0.0
    %3855 = vmatpush1.msra.mxu0 0.0
    %3856 = vmatprep.subr.mxu0 0.0
    %3857 = vmatpush1.msra.mxu0 0.0
    %3858 = vmatprep.subr.mxu0 0.0
    %3859 = vmatpush1.msra.mxu0 0.0
    %3860 = vmatprep.subr.mxu0 0.0
    %3861 = vmatpush1.msra.mxu0 0.0
    %3862 = vmatprep.subr.mxu0 0.0
    %3863 = vmatpush1.msra.mxu0 0.0
    %3864 = vmatprep.subr.mxu0 0.0
    %3865 = vmatpush1.msra.mxu0 0.0
    %3866 = vmatprep.subr.mxu0 0.0
    %3867 = vmatpush1.msra.mxu0 0.0
    %3868 = vmatprep.subr.mxu0 0.0
    %3869 = vmatpush1.msra.mxu0 0.0
    %3870 = vmatprep.subr.mxu0 0.0
    %3871 = vmatpush1.msra.mxu0 0.0
    %3872 = vmatprep.subr.mxu0 0.0
    %3873 = vmatpush1.msra.mxu0 0.0
    %3874 = vmatprep.subr.mxu0 0.0
    %3875 = vmatpush1.msra.mxu0 0.0
    %3876 = vmatprep.subr.mxu0 0.0
    %3877 = vmatpush1.msra.mxu0 0.0
    %3878 = vmatprep.subr.mxu0 0.0
    %3879 = vmatpush1.msra.mxu0 0.0
    %3880 = vmatprep.subr.mxu0 0.0
    %3881 = vmatpush1.msra.mxu0 0.0
    %3882 = vmatprep.subr.mxu0 0.0
    %3883 = vmatpush1.msra.mxu0 0.0
    %3884 = vmatprep.subr.mxu0 0.0
    %3885 = vmatpush1.msra.mxu0 0.0
    %3886 = vmatprep.subr.mxu0 0.0
    %3887 = vmatpush1.msra.mxu0 0.0
    %3888 = vmatprep.subr.mxu0 0.0
    %3889 = vmatpush1.msra.mxu0 0.0
    %3890 = vmatprep.subr.mxu0 0.0
    %3891 = vmatpush1.msra.mxu0 0.0
    %3892 = vmatprep.subr.mxu0 0.0
    %3893 = vmatpush1.msra.mxu0 0.0
    %3894 = vmatprep.subr.mxu0 0.0
    %3895 = vmatpush1.msra.mxu0 0.0
    %3896 = vmatprep.subr.mxu0 0.0
    %3897 = vmatpush1.msra.mxu0 0.0
    %3898 = vmatprep.subr.mxu0 0.0
    %3899 = vmatpush1.msra.mxu0 0.0
    %3900 = vmatprep.subr.mxu0 0.0
    %3901 = vmatpush1.msra.mxu0 0.0
    %3902 = vmatprep.mubr.f32.mxu0 0.0
    %3903 = vmatmul.mubr.f32.gmra.mrb[0].mxu0 %v3836
    %v3904 = vpop.f32.mrb[0].mxu0
    %v3905 = vadd.f32 0.0, %v3904
    %v3906 = vpop.f32.mrb[0].mxu0
    %3907 = vdwg.mxu0
    %3908 = vrot.lane.b32.xlu0 %v2397, 40
    %v3909 = vpop.permute.xlu0 %3908
    %v3912 = vsel %vm334, %v3831, 0
    %3914 = vmatprep.subr.mxu0 0.0
    %3915 = vmatpush1.msra.mxu0 %v3909
    %3916 = vmatprep.subr.mxu0 0.0
    %3917 = vmatpush1.msra.mxu0 0.0
    %3918 = vmatprep.subr.mxu0 0.0
    %3919 = vmatpush1.msra.mxu0 0.0
    %3920 = vmatprep.subr.mxu0 0.0
    %3921 = vmatpush1.msra.mxu0 0.0
    %3922 = vmatprep.subr.mxu0 0.0
    %3923 = vmatpush1.msra.mxu0 0.0
    %3924 = vmatprep.subr.mxu0 0.0
    %3925 = vmatpush1.msra.mxu0 0.0
    %3926 = vmatprep.subr.mxu0 0.0
    %3927 = vmatpush1.msra.mxu0 0.0
    %3928 = vmatprep.subr.mxu0 0.0
    %3929 = vmatpush1.msra.mxu0 0.0
    %3930 = vmatprep.subr.mxu0 0.0
    %3931 = vmatpush1.msra.mxu0 0.0
    %3932 = vmatprep.subr.mxu0 0.0
    %3933 = vmatpush1.msra.mxu0 0.0
    %3934 = vmatprep.subr.mxu0 0.0
    %3935 = vmatpush1.msra.mxu0 0.0
    %3936 = vmatprep.subr.mxu0 0.0
    %3937 = vmatpush1.msra.mxu0 0.0
    %3938 = vmatprep.subr.mxu0 0.0
    %3939 = vmatpush1.msra.mxu0 0.0
    %3940 = vmatprep.subr.mxu0 0.0
    %3941 = vmatpush1.msra.mxu0 0.0
    %3942 = vmatprep.subr.mxu0 0.0
    %3943 = vmatpush1.msra.mxu0 0.0
    %3944 = vmatprep.subr.mxu0 0.0
    %3945 = vmatpush1.msra.mxu0 0.0
    %3946 = vmatprep.subr.mxu0 0.0
    %3947 = vmatpush1.msra.mxu0 0.0
    %3948 = vmatprep.subr.mxu0 0.0
    %3949 = vmatpush1.msra.mxu0 0.0
    %3950 = vmatprep.subr.mxu0 0.0
    %3951 = vmatpush1.msra.mxu0 0.0
    %3952 = vmatprep.subr.mxu0 0.0
    %3953 = vmatpush1.msra.mxu0 0.0
    %3954 = vmatprep.subr.mxu0 0.0
    %3955 = vmatpush1.msra.mxu0 0.0
    %3956 = vmatprep.subr.mxu0 0.0
    %3957 = vmatpush1.msra.mxu0 0.0
    %3958 = vmatprep.subr.mxu0 0.0
    %3959 = vmatpush1.msra.mxu0 0.0
    %3960 = vmatprep.subr.mxu0 0.0
    %3961 = vmatpush1.msra.mxu0 0.0
    %3962 = vmatprep.subr.mxu0 0.0
    %3963 = vmatpush1.msra.mxu0 0.0
    %3964 = vmatprep.subr.mxu0 0.0
    %3965 = vmatpush1.msra.mxu0 0.0
    %3966 = vmatprep.subr.mxu0 0.0
    %3967 = vmatpush1.msra.mxu0 0.0
    %3968 = vmatprep.subr.mxu0 0.0
    %3969 = vmatpush1.msra.mxu0 0.0
    %3970 = vmatprep.subr.mxu0 0.0
    %3971 = vmatpush1.msra.mxu0 0.0
    %3972 = vmatprep.subr.mxu0 0.0
    %3973 = vmatpush1.msra.mxu0 0.0
    %3974 = vmatprep.subr.mxu0 0.0
    %3975 = vmatpush1.msra.mxu0 0.0
    %3976 = vmatprep.subr.mxu0 0.0
    %3977 = vmatpush1.msra.mxu0 0.0
    %3978 = vmatprep.mubr.f32.mxu0 0.0
    %3979 = vmatmul.mubr.f32.gmra.mrb[0].mxu0 %v3912
    %v3980 = vpop.f32.mrb[0].mxu0
    %v3981 = vadd.f32 0.0, %v3980
    %v3982 = vpop.f32.mrb[0].mxu0
    %3983 = vdwg.mxu0
    %v3985 = vsel %vm334, %v3905, 0
    %v3988 = vsel %vm334, %v3981, 0
    %3990 = vmatprep.subr.mxu0 0.0
    %3991 = vmatpush1.msra.mxu0 %v2404
    %3992 = vmatprep.subr.mxu0 0.0
    %3993 = vmatpush1.msra.mxu0 0.0
    %3994 = vmatprep.subr.mxu0 0.0
    %3995 = vmatpush1.msra.mxu0 0.0
    %3996 = vmatprep.subr.mxu0 0.0
    %3997 = vmatpush1.msra.mxu0 0.0
    %3998 = vmatprep.subr.mxu0 0.0
    %3999 = vmatpush1.msra.mxu0 0.0
    %4000 = vmatprep.subr.mxu0 0.0
    %4001 = vmatpush1.msra.mxu0 0.0
    %4002 = vmatprep.subr.mxu0 0.0
    %4003 = vmatpush1.msra.mxu0 0.0
    %4004 = vmatprep.subr.mxu0 0.0
    %4005 = vmatpush1.msra.mxu0 0.0
    %4006 = vmatprep.subr.mxu0 0.0
    %4007 = vmatpush1.msra.mxu0 0.0
    %4008 = vmatprep.subr.mxu0 0.0
    %4009 = vmatpush1.msra.mxu0 0.0
    %4010 = vmatprep.subr.mxu0 0.0
    %4011 = vmatpush1.msra.mxu0 0.0
    %4012 = vmatprep.subr.mxu0 0.0
    %4013 = vmatpush1.msra.mxu0 0.0
    %4014 = vmatprep.subr.mxu0 0.0
    %4015 = vmatpush1.msra.mxu0 0.0
    %4016 = vmatprep.subr.mxu0 0.0
    %4017 = vmatpush1.msra.mxu0 0.0
    %4018 = vmatprep.subr.mxu0 0.0
    %4019 = vmatpush1.msra.mxu0 0.0
    %4020 = vmatprep.subr.mxu0 0.0
    %4021 = vmatpush1.msra.mxu0 0.0
    %4022 = vmatprep.subr.mxu0 0.0
    %4023 = vmatpush1.msra.mxu0 0.0
    %4024 = vmatprep.subr.mxu0 0.0
    %4025 = vmatpush1.msra.mxu0 0.0
    %4026 = vmatprep.subr.mxu0 0.0
    %4027 = vmatpush1.msra.mxu0 0.0
    %4028 = vmatprep.subr.mxu0 0.0
    %4029 = vmatpush1.msra.mxu0 0.0
    %4030 = vmatprep.subr.mxu0 0.0
    %4031 = vmatpush1.msra.mxu0 0.0
    %4032 = vmatprep.subr.mxu0 0.0
    %4033 = vmatpush1.msra.mxu0 0.0
    %4034 = vmatprep.subr.mxu0 0.0
    %4035 = vmatpush1.msra.mxu0 0.0
    %4036 = vmatprep.subr.mxu0 0.0
    %4037 = vmatpush1.msra.mxu0 0.0
    %4038 = vmatprep.subr.mxu0 0.0
    %4039 = vmatpush1.msra.mxu0 0.0
    %4040 = vmatprep.subr.mxu0 0.0
    %4041 = vmatpush1.msra.mxu0 0.0
    %4042 = vmatprep.subr.mxu0 0.0
    %4043 = vmatpush1.msra.mxu0 0.0
    %4044 = vmatprep.subr.mxu0 0.0
    %4045 = vmatpush1.msra.mxu0 0.0
    %4046 = vmatprep.subr.mxu0 0.0
    %4047 = vmatpush1.msra.mxu0 0.0
    %4048 = vmatprep.subr.mxu0 0.0
    %4049 = vmatpush1.msra.mxu0 0.0
    %4050 = vmatprep.subr.mxu0 0.0
    %4051 = vmatpush1.msra.mxu0 0.0
    %4052 = vmatprep.subr.mxu0 0.0
    %4053 = vmatpush1.msra.mxu0 0.0
    %4054 = vmatprep.mubr.f32.mxu0 0.0
    %4055 = vmatmul.mubr.f32.gmra.mrb[0].mxu0 %v3985
    %v4056 = vpop.f32.mrb[0].mxu0
    %v4057 = vadd.f32 0.0, %v4056
    %v4058 = vpop.f32.mrb[0].mxu0
    %4059 = vmatprep.mubr.f32.mxu0 0.0
    %4060 = vmatmul.mubr.f32.gmra.mrb[0].mxu0 %v3988
    %v4061 = vpop.f32.mrb[0].mxu0
    %v4062 = vadd.f32 0.0, %v4061
    %v4063 = vpop.f32.mrb[0].mxu0
    %4064 = vdwg.mxu0
    %v4065 = vadd.f32 %v3648, %v4057
    %v4066 = vadd.f32 %v3649, %v4062
    %s4067 = scalar_lea.vmem [#allocation9], 1
    %v4068 = vld [vmem:[%s4067] sm:$0x1]
    %v4070 = vlaneseq
    %v4071 = vshrl.u32 %v4070, 7
    %v4072 = vsub.s32 0, %v4071
    %v4073 = vrot.slane %v4068, %v4072
    %v4075 = vadd.f32 %v4065, %v4073
    %v4076 = vadd.f32 %v4066, %v4073
    %v4077 = vadd.f32 %v4075, %v2258
    %v4078 = vadd.f32 %v4076, %v2259
    %s4079 = scalar_lea.vmem [#allocation11], 1
    %v4080 = vld [vmem:[%s4079] sm:$0x1]
    %s4081 = scalar_lea.vmem [#allocation12], 1
    %v4082 = vld [vmem:[%s4081] sm:$0x1]
    %v4083 = vsel %vm191, %v4077, 0.0
    %4084 = vadd.xlane.f32.xlu0 %v4083
    %v4085 = vpop.xlane.xlu0 %4084
    %v4086 = vsel %vm191, %v4078, 0.0
    %4087 = vadd.xlane.f32.xlu0 %v4086
    %v4088 = vpop.xlane.xlu0 %4087
    %v4089 = vmul.f32 %v4085, %v198
    %v4090 = vmul.f32 %v4088, %v198
    %v4091 = vsub.f32 %v4077, %v4089
    %v4092 = vsub.f32 %v4078, %v4090
    %v4093 = vmul.f32 %v4091, %v4091
    %v4094 = vmul.f32 %v4092, %v4092
    %v4095 = vsel %vm191, %v4093, 0.0
    %4096 = vadd.xlane.f32.xlu0 %v4095
    %v4097 = vpop.xlane.xlu0 %4096
    %v4098 = vsel %vm191, %v4094, 0.0
    %4099 = vadd.xlane.f32.xlu0 %v4098
    %v4100 = vpop.xlane.xlu0 %4099
    %v4101 = vmul.f32 %v4097, %v198
    %v4102 = vmul.f32 %v4100, %v198
    %v4103 = vadd.f32 %v4101, 1e-12
    %v4104 = vadd.f32 %v4102, 1e-12
    %v4105 = vrsqrt.pop %v4103
    %v4106 = vrsqrt.pop %v4104
    %v4107 = vmul.f32 %v4091, %v4105
    %v4108 = vmul.f32 %v4092, %v4106
    %v4110 = vlaneseq
    %v4111 = vshrl.u32 %v4110, 7
    %v4112 = vsub.s32 0, %v4111
    %v4113 = vrot.slane %v4080, %v4112
    %v4115 = vmul.f32 %v4107, %v4113
    %v4116 = vmul.f32 %v4108, %v4113
    %v4118 = vlaneseq
    %v4119 = vshrl.u32 %v4118, 7
    %v4120 = vsub.s32 0, %v4119
    %v4121 = vrot.slane %v4082, %v4120
    %v4123 = vadd.f32 %v4115, %v4121
    %v4124 = vadd.f32 %v4116, %v4121
    %s4125 = scalar_lea.vmem %s10, 32
    %v4126 = vld [vmem:[%s4125] sm:$0xff]
    %v4127 = vld [vmem:[%s4125 + $0x8] sm:$0xff]
    %v4128 = vld [vmem:[%s4125 + $0x10] sm:$0xff]
    %v4129 = vld [vmem:[%s4125 + $0x18] sm:$0xff]
    %s4130 = scalar_lea.vmem [#allocation14], 1
    %v4131 = vld [vmem:[%s4130] sm:$0x1]
    %v4133 = vlaneseq
    %v4134 = vshrl.u32 %v4133, 7
    %v4135 = vsub.s32 0, %v4134
    %v4136 = vrot.slane %v4131, %v4135
    %v4139 = vsel %vm191, %v4123, 0
    %v4142 = vsel %vm191, %v4124, 0
    %4144 = vmatprep.subr.mxu0 0.0
    %4145 = vmatpush1.msra.mxu0 %v4126
    %4146 = vmatprep.subr.mxu0 0.0
    %4147 = vmatpush1.msra.mxu0 %v4127
    %4148 = vmatprep.subr.mxu0 0.0
    %4149 = vmatpush1.msra.mxu0 %v4128
    %4150 = vmatprep.subr.mxu0 0.0
    %4151 = vmatpush1.msra.mxu0 %v4129
    %4152 = vmatprep.subr.mxu0 0.0
    %4153 = vmatpush1.msra.mxu0 0.0
    %4154 = vmatprep.subr.mxu0 0.0
    %4155 = vmatpush1.msra.mxu0 0.0
    %4156 = vmatprep.subr.mxu0 0.0
    %4157 = vmatpush1.msra.mxu0 0.0
    %4158 = vmatprep.subr.mxu0 0.0
    %4159 = vmatpush1.msra.mxu0 0.0
    %4160 = vmatprep.subr.mxu0 0.0
    %4161 = vmatpush1.msra.mxu0 0.0
    %4162 = vmatprep.subr.mxu0 0.0
    %4163 = vmatpush1.msra.mxu0 0.0
    %4164 = vmatprep.subr.mxu0 0.0
    %4165 = vmatpush1.msra.mxu0 0.0
    %4166 = vmatprep.subr.mxu0 0.0
    %4167 = vmatpush1.msra.mxu0 0.0
    %4168 = vmatprep.subr.mxu0 0.0
    %4169 = vmatpush1.msra.mxu0 0.0
    %4170 = vmatprep.subr.mxu0 0.0
    %4171 = vmatpush1.msra.mxu0 0.0
    %4172 = vmatprep.subr.mxu0 0.0
    %4173 = vmatpush1.msra.mxu0 0.0
    %4174 = vmatprep.subr.mxu0 0.0
    %4175 = vmatpush1.msra.mxu0 0.0
    %4176 = vmatprep.subr.mxu0 0.0
    %4177 = vmatpush1.msra.mxu0 0.0
    %4178 = vmatprep.subr.mxu0 0.0
    %4179 = vmatpush1.msra.mxu0 0.0
    %4180 = vmatprep.subr.mxu0 0.0
    %4181 = vmatpush1.msra.mxu0 0.0
    %4182 = vmatprep.subr.mxu0 0.0
    %4183 = vmatpush1.msra.mxu0 0.0
    %4184 = vmatprep.subr.mxu0 0.0
    %4185 = vmatpush1.msra.mxu0 0.0
    %4186 = vmatprep.subr.mxu0 0.0
    %4187 = vmatpush1.msra.mxu0 0.0
    %4188 = vmatprep.subr.mxu0 0.0
    %4189 = vmatpush1.msra.mxu0 0.0
    %4190 = vmatprep.subr.mxu0 0.0
    %4191 = vmatpush1.msra.mxu0 0.0
    %4192 = vmatprep.subr.mxu0 0.0
    %4193 = vmatpush1.msra.mxu0 0.0
    %4194 = vmatprep.subr.mxu0 0.0
    %4195 = vmatpush1.msra.mxu0 0.0
    %4196 = vmatprep.subr.mxu0 0.0
    %4197 = vmatpush1.msra.mxu0 0.0
    %4198 = vmatprep.subr.mxu0 0.0
    %4199 = vmatpush1.msra.mxu0 0.0
    %4200 = vmatprep.subr.mxu0 0.0
    %4201 = vmatpush1.msra.mxu0 0.0
    %4202 = vmatprep.subr.mxu0 0.0
    %4203 = vmatpush1.msra.mxu0 0.0
    %4204 = vmatprep.subr.mxu0 0.0
    %4205 = vmatpush1.msra.mxu0 0.0
    %4206 = vmatprep.subr.mxu0 0.0
    %4207 = vmatpush1.msra.mxu0 0.0
    %4208 = vmatprep.mubr.f32.mxu0 0.0
    %4209 = vmatmul.mubr.f32.gmra.mrb[0].mxu0 %v4139
    %v4210 = vpop.f32.mrb[0].mxu0
    %v4211 = vadd.f32 %v4136, %v4210
    %v4212 = vpop.f32.mrb[0].mxu0
    %4213 = vmatprep.mubr.f32.mxu0 0.0
    %4214 = vmatmul.mubr.f32.gmra.mrb[0].mxu0 %v4142
    %v4215 = vpop.f32.mrb[0].mxu0
    %v4216 = vadd.f32 %v4136, %v4215
    %v4217 = vpop.f32.mrb[0].mxu0
    %4218 = vdwg.mxu0
    %v4219 = vmul.f32 %v4211, 0.5
    %v4220 = vmul.f32 %v4216, 0.5
    %v4221 = vmul.f32 %v4211, 0.70710677
    %v4222 = vmul.f32 %v4216, 0.70710677
    %v4223 = verf.f32.pop %v4221
    %v4224 = verf.f32.pop %v4222
    %v4225 = vadd.f32 %v4223, 1.0
    %v4226 = vadd.f32 %v4224, 1.0
    %v4227 = vmul.f32 %v4219, %v4225
    %v4228 = vmul.f32 %v4220, %v4226
    %s4229 = scalar_lea.vmem %s12, 64
    %v4230 = vld [vmem:[%s4229] sm:$0xff]
    %v4231 = vld [vmem:[%s4229 + $0x8] sm:$0xff]
    %v4232 = vld [vmem:[%s4229 + $0x10] sm:$0xff]
    %v4233 = vld [vmem:[%s4229 + $0x18] sm:$0xff]
    %v4234 = vld [vmem:[%s4229 + $0x20] sm:$0xff]
    %v4235 = vld [vmem:[%s4229 + $0x28] sm:$0xff]
    %v4236 = vld [vmem:[%s4229 + $0x30] sm:$0xff]
    %v4237 = vld [vmem:[%s4229 + $0x38] sm:$0xff]
    %s4238 = scalar_lea.vmem %s13, 1
    %v4239 = vld [vmem:[%s4238] sm:$0x1]
    %v4241 = vlaneseq
    %v4242 = vshrl.u32 %v4241, 7
    %v4243 = vsub.s32 0, %v4242
    %v4244 = vrot.slane %v4239, %v4243
    %v4247 = vsel %vm2176, %v4227, 0
    %v4250 = vsel %vm2176, %v4228, 0
    %4252 = vmatprep.subr.mxu0 0.0
    %4253 = vmatpush1.msra.mxu0 %v4230
    %4254 = vmatprep.subr.mxu0 0.0
    %4255 = vmatpush1.msra.mxu0 %v4231
    %4256 = vmatprep.subr.mxu0 0.0
    %4257 = vmatpush1.msra.mxu0 %v4232
    %4258 = vmatprep.subr.mxu0 0.0
    %4259 = vmatpush1.msra.mxu0 %v4233
    %4260 = vmatprep.subr.mxu0 0.0
    %4261 = vmatpush1.msra.mxu0 %v4234
    %4262 = vmatprep.subr.mxu0 0.0
    %4263 = vmatpush1.msra.mxu0 %v4235
    %4264 = vmatprep.subr.mxu0 0.0
    %4265 = vmatpush1.msra.mxu0 %v4236
    %4266 = vmatprep.subr.mxu0 0.0
    %4267 = vmatpush1.msra.mxu0 %v4237
    %4268 = vmatprep.subr.mxu0 0.0
    %4269 = vmatpush1.msra.mxu0 0.0
    %4270 = vmatprep.subr.mxu0 0.0
    %4271 = vmatpush1.msra.mxu0 0.0
    %4272 = vmatprep.subr.mxu0 0.0
    %4273 = vmatpush1.msra.mxu0 0.0
    %4274 = vmatprep.subr.mxu0 0.0
    %4275 = vmatpush1.msra.mxu0 0.0
    %4276 = vmatprep.subr.mxu0 0.0
    %4277 = vmatpush1.msra.mxu0 0.0
    %4278 = vmatprep.subr.mxu0 0.0
    %4279 = vmatpush1.msra.mxu0 0.0
    %4280 = vmatprep.subr.mxu0 0.0
    %4281 = vmatpush1.msra.mxu0 0.0
    %4282 = vmatprep.subr.mxu0 0.0
    %4283 = vmatpush1.msra.mxu0 0.0
    %4284 = vmatprep.subr.mxu0 0.0
    %4285 = vmatpush1.msra.mxu0 0.0
    %4286 = vmatprep.subr.mxu0 0.0
    %4287 = vmatpush1.msra.mxu0 0.0
    %4288 = vmatprep.subr.mxu0 0.0
    %4289 = vmatpush1.msra.mxu0 0.0
    %4290 = vmatprep.subr.mxu0 0.0
    %4291 = vmatpush1.msra.mxu0 0.0
    %4292 = vmatprep.subr.mxu0 0.0
    %4293 = vmatpush1.msra.mxu0 0.0
    %4294 = vmatprep.subr.mxu0 0.0
    %4295 = vmatpush1.msra.mxu0 0.0
    %4296 = vmatprep.subr.mxu0 0.0
    %4297 = vmatpush1.msra.mxu0 0.0
    %4298 = vmatprep.subr.mxu0 0.0
    %4299 = vmatpush1.msra.mxu0 0.0
    %4300 = vmatprep.subr.mxu0 0.0
    %4301 = vmatpush1.msra.mxu0 0.0
    %4302 = vmatprep.subr.mxu0 0.0
    %4303 = vmatpush1.msra.mxu0 0.0
    %4304 = vmatprep.subr.mxu0 0.0
    %4305 = vmatpush1.msra.mxu0 0.0
    %4306 = vmatprep.subr.mxu0 0.0
    %4307 = vmatpush1.msra.mxu0 0.0
    %4308 = vmatprep.subr.mxu0 0.0
    %4309 = vmatpush1.msra.mxu0 0.0
    %4310 = vmatprep.subr.mxu0 0.0
    %4311 = vmatpush1.msra.mxu0 0.0
    %4312 = vmatprep.subr.mxu0 0.0
    %4313 = vmatpush1.msra.mxu0 0.0
    %4314 = vmatprep.subr.mxu0 0.0
    %4315 = vmatpush1.msra.mxu0 0.0
    %4316 = vmatprep.mubr.f32.mxu0 0.0
    %4317 = vmatmul.mubr.f32.gmra.mrb[0].mxu0 %v4247
    %v4318 = vpop.f32.mrb[0].mxu0
    %v4319 = vadd.f32 %v4244, %v4318
    %v4320 = vpop.f32.mrb[0].mxu0
    %4321 = vmatprep.mubr.f32.mxu0 0.0
    %4322 = vmatmul.mubr.f32.gmra.mrb[0].mxu0 %v4250
    %v4323 = vpop.f32.mrb[0].mxu0
    %v4324 = vadd.f32 %v4244, %v4323
    %v4325 = vpop.f32.mrb[0].mxu0
    %4326 = vdwg.mxu0
    %v4327 = vadd.f32 %v4319, %v4077
    %v4328 = vadd.f32 %v4324, %v4078
    %v4329 = vld [vmem:[%s14] sm:$0x1]
    %v4330 = vld [vmem:[%s15] sm:$0x1]
    %v4331 = vsel %vm191, %v4327, 0.0
    %4332 = vadd.xlane.f32.xlu0 %v4331
    %v4333 = vpop.xlane.xlu0 %4332
    %v4334 = vsel %vm191, %v4328, 0.0
    %4335 = vadd.xlane.f32.xlu0 %v4334
    %v4336 = vpop.xlane.xlu0 %4335
    %v4337 = vmul.f32 %v4333, %v198
    %v4338 = vmul.f32 %v4336, %v198
    %v4339 = vsub.f32 %v4327, %v4337
    %v4340 = vsub.f32 %v4328, %v4338
    %v4341 = vmul.f32 %v4339, %v4339
    %v4342 = vmul.f32 %v4340, %v4340
    %v4343 = vsel %vm191, %v4341, 0.0
    %4344 = vadd.xlane.f32.xlu0 %v4343
    %v4345 = vpop.xlane.xlu0 %4344
    %v4346 = vsel %vm191, %v4342, 0.0
    %4347 = vadd.xlane.f32.xlu0 %v4346
    %v4348 = vpop.xlane.xlu0 %4347
    %v4349 = vmul.f32 %v4345, %v198
    %v4350 = vmul.f32 %v4348, %v198
    %v4351 = vadd.f32 %v4349, 1e-12
    %v4352 = vadd.f32 %v4350, 1e-12
    %v4353 = vrsqrt.pop %v4351
    %v4354 = vrsqrt.pop %v4352
    %v4355 = vmul.f32 %v4339, %v4353
    %v4356 = vmul.f32 %v4340, %v4354
    %v4358 = vlaneseq
    %v4359 = vshrl.u32 %v4358, 7
    %v4360 = vsub.s32 0, %v4359
    %v4361 = vrot.slane %v4329, %v4360
    %v4363 = vmul.f32 %v4355, %v4361
    %v4364 = vmul.f32 %v4356, %v4361
    %v4366 = vlaneseq
    %v4367 = vshrl.u32 %v4366, 7
    %v4368 = vsub.s32 0, %v4367
    %v4369 = vrot.slane %v4330, %v4368
    %v4371 = vadd.f32 %v4363, %v4369
    %v4372 = vadd.f32 %v4364, %v4369
    %v4373 = vld [vmem:[%s16] sm:$0x1]
    %v4375 = vlaneseq
    %v4376 = vshrl.u32 %v4375, 7
    %v4377 = vsub.s32 0, %v4376
    %v4378 = vrot.slane %v4373, %v4377
    %v4380 = vmul.f32 %v4371, %v4378
    %v4381 = vmul.f32 %v4372, %v4378
    %v4382 = vsel %vm191, %v4380, 0.0
    %4383 = vadd.xlane.f32.xlu0 %v4382
    %v4384 = vpop.xlane.xlu0 %4383
    %v4385 = vsel %vm191, %v4381, 0.0
    %4386 = vadd.xlane.f32.xlu0 %v4385
    %v4387 = vpop.xlane.xlu0 %4386
    %v4388 = vld [vmem:[#allocation2] sm:$0x1]
    %v4390 = vlaneseq
    %v4391 = vshrl.u32 %v4390, 7
    %v4392 = vsub.s32 0, %v4391
    %v4393 = vrot.slane %v4388, %v4392
    %4394 = vset.pattern.permute.xlu0 0
    %4395 = vperm.xlu0 %4394, %v4393
    %v4396 = vpop.permute.xlu0 %4395
    %v4398 = vadd.f32 %v4384, %v4396
    %v4399 = vadd.f32 %v4387, %v4396
    %v4402 = vlaneseq
    %v4403 = vand.u32 %v4402, 127
    %v4404 = vlaneseq
    %v4405 = vshrl.u32 %v4404, 7
    %v4406 = vsub.s32 %v4403, %v4405
    %v4407 = vrot.slane %v4398, %v4406
    %v4408 = vlaneseq
    %v4409 = vshrl.u32 %v4408, 7
    %v4410 = vsub.s32 %v4403, %v4409
    %v4411 = vrot.slane %v4399, %v4410
    %vm4412 = vcmask 1041409
    %v4413 = vsel %vm4412, %v4411, %v4407
    %vm4415 = vcmask 58368
    %v4416 = vsel %vm4415, %v4413, -inf
    %4417 = vmax.xlane.f32.xlu0 %v4416
    %v4418 = vpop.xlane.xlu0 %4417
    %v4420 = vlaneseq
    %v4421 = vshrl.u32 %v4420, 7
    %v4422 = vsub.s32 0, %v4421
    %v4423 = vrot.slane %v4418, %v4422
    %v4424 = vlaneseq
    %v4425 = vshrl.u32 %v4424, 7
    %v4426 = vsub.s32 1, %v4425
    %v4427 = vrot.slane %v4418, %v4426
    %v4430 = vsub.f32 %v4398, %v4423
    %v4431 = vsub.f32 %v4399, %v4427
    %v4432 = vmul.f32 %v4430, 1.442695
    %v4433 = vpow.pop %v4432
    %v4434 = vmul.f32 %v4431, 1.442695
    %v4435 = vpow.pop %v4434
    %4438 = vset.pattern.permute.xlu0 0
    %4439 = vperm.xlu0 %4438, %v4433
    %v4440 = vpop.permute.xlu0 %4439
    %4441 = vset.pattern.permute.xlu0 0
    %4442 = vperm.xlu0 %4441, %v4435
    %v4443 = vpop.permute.xlu0 %4442
    %v4444 = vlaneseq
    %v4445 = vshrl.u32 %v4444, 7
    %v4446 = vsub.s32 %v4403, %v4445
    %v4447 = vrot.slane %v4440, %v4446
    %v4448 = vlaneseq
    %v4449 = vshrl.u32 %v4448, 7
    %v4450 = vsub.s32 %v4403, %v4449
    %v4451 = vrot.slane %v4443, %v4450
    %v4452 = vsel %vm4412, %v4451, %v4447
    %v4454 = vsel %vm4415, %v4452, 0.0
    %4455 = vadd.xlane.f32.xlu0 %v4454
    %v4456 = vpop.xlane.xlu0 %4455
    %v4457 = vrcp.pop %v4456
    %v4459 = vlaneseq
    %v4460 = vshrl.u32 %v4459, 7
    %v4461 = vsub.s32 0, %v4460
    %v4462 = vrot.slane %v4457, %v4461
    %v4463 = vlaneseq
    %v4464 = vshrl.u32 %v4463, 7
    %v4465 = vsub.s32 1, %v4464
    %v4466 = vrot.slane %v4457, %v4465
    %v4469 = vmul.f32 %v4433, %v4462
    %v4470 = vmul.f32 %v4435, %v4466
    %4472 = vset.pattern.permute.xlu0 0
    %4473 = vperm.xlu0 %4472, %v4469
    %v4474 = vpop.permute.xlu0 %4473
    %4477 = vset.pattern.permute.xlu0 0
    %4478 = vperm.xlu0 %4477, %v4470
    %v4479 = vpop.permute.xlu0 %4478
    %v4481 = vmul.f32 %v4474, %v4371
    %v4482 = vmul.f32 %v4479, %v4372
    %v4483 = vsel %vm191, %v4481, 0.0
    %v4484 = vrot.slane %v4483, 4
    %v4485 = vadd.f32 %v4483, %v4484
    %v4486 = vrot.slane %v4485, 2
    %v4487 = vadd.f32 %v4485, %v4486
    %v4488 = vrot.slane %v4487, 1
    %v4489 = vadd.f32 %v4487, %v4488
    %v4490 = vsel %vm191, %v4482, 0.0
    %v4491 = vrot.slane %v4490, 4
    %v4492 = vadd.f32 %v4490, %v4491
    %v4493 = vrot.slane %v4492, 2
    %v4494 = vadd.f32 %v4492, %v4493
    %v4495 = vrot.slane %v4494, 1
    %v4496 = vadd.f32 %v4494, %v4495
    %v4497 = vld [vmem:[%s18] sm:$0xff]
    %v4498 = vld [vmem:[%s18 + $0x8] sm:$0xff]
    %v4499 = vld [vmem:[%s18 + $0x10] sm:$0xff]
    %v4500 = vld [vmem:[%s18 + $0x18] sm:$0xff]
    %v4501 = vld [vmem:[%s19] sm:$0x1]
    %v4503 = vlaneseq
    %v4504 = vshrl.u32 %v4503, 7
    %v4505 = vsub.s32 0, %v4504
    %v4506 = vrot.slane %v4501, %v4505
    %v4510 = vsel %vm4412, %v4496, %v4489
    %v4511 = vsel %vm191, %v4510, 0
    %4513 = vmatprep.subr.mxu0 0.0
    %4514 = vmatpush1.msra.mxu0 %v4497
    %4515 = vmatprep.subr.mxu0 0.0
    %4516 = vmatpush1.msra.mxu0 %v4498
    %4517 = vmatprep.subr.mxu0 0.0
    %4518 = vmatpush1.msra.mxu0 %v4499
    %4519 = vmatprep.subr.mxu0 0.0
    %4520 = vmatpush1.msra.mxu0 %v4500
    %4521 = vmatprep.subr.mxu0 0.0
    %4522 = vmatpush1.msra.mxu0 0.0
    %4523 = vmatprep.subr.mxu0 0.0
    %4524 = vmatpush1.msra.mxu0 0.0
    %4525 = vmatprep.subr.mxu0 0.0
    %4526 = vmatpush1.msra.mxu0 0.0
    %4527 = vmatprep.subr.mxu0 0.0
    %4528 = vmatpush1.msra.mxu0 0.0
    %4529 = vmatprep.subr.mxu0 0.0
    %4530 = vmatpush1.msra.mxu0 0.0
    %4531 = vmatprep.subr.mxu0 0.0
    %4532 = vmatpush1.msra.mxu0 0.0
    %4533 = vmatprep.subr.mxu0 0.0
    %4534 = vmatpush1.msra.mxu0 0.0
    %4535 = vmatprep.subr.mxu0 0.0
    %4536 = vmatpush1.msra.mxu0 0.0
    %4537 = vmatprep.subr.mxu0 0.0
    %4538 = vmatpush1.msra.mxu0 0.0
    %4539 = vmatprep.subr.mxu0 0.0
    %4540 = vmatpush1.msra.mxu0 0.0
    %4541 = vmatprep.subr.mxu0 0.0
    %4542 = vmatpush1.msra.mxu0 0.0
    %4543 = vmatprep.subr.mxu0 0.0
    %4544 = vmatpush1.msra.mxu0 0.0
    %4545 = vmatprep.subr.mxu0 0.0
    %4546 = vmatpush1.msra.mxu0 0.0
    %4547 = vmatprep.subr.mxu0 0.0
    %4548 = vmatpush1.msra.mxu0 0.0
    %4549 = vmatprep.subr.mxu0 0.0
    %4550 = vmatpush1.msra.mxu0 0.0
    %4551 = vmatprep.subr.mxu0 0.0
    %4552 = vmatpush1.msra.mxu0 0.0
    %4553 = vmatprep.subr.mxu0 0.0
    %4554 = vmatpush1.msra.mxu0 0.0
    %4555 = vmatprep.subr.mxu0 0.0
    %4556 = vmatpush1.msra.mxu0 0.0
    %4557 = vmatprep.subr.mxu0 0.0
    %4558 = vmatpush1.msra.mxu0 0.0
    %4559 = vmatprep.subr.mxu0 0.0
    %4560 = vmatpush1.msra.mxu0 0.0
    %4561 = vmatprep.subr.mxu0 0.0
    %4562 = vmatpush1.msra.mxu0 0.0
    %4563 = vmatprep.subr.mxu0 0.0
    %4564 = vmatpush1.msra.mxu0 0.0
    %4565 = vmatprep.subr.mxu0 0.0
    %4566 = vmatpush1.msra.mxu0 0.0
    %4567 = vmatprep.subr.mxu0 0.0
    %4568 = vmatpush1.msra.mxu0 0.0
    %4569 = vmatprep.subr.mxu0 0.0
    %4570 = vmatpush1.msra.mxu0 0.0
    %4571 = vmatprep.subr.mxu0 0.0
    %4572 = vmatpush1.msra.mxu0 0.0
    %4573 = vmatprep.subr.mxu0 0.0
    %4574 = vmatpush1.msra.mxu0 0.0
    %4575 = vmatprep.subr.mxu0 0.0
    %4576 = vmatpush1.msra.mxu0 0.0
    %4577 = vmatprep.mubr.f32.mxu0 0.0
    %4578 = vmatmul.mubr.f32.gmra.mrb[0].mxu0 %v4511
    %v4579 = vpop.f32.mrb[0].mxu0
    %v4580 = vadd.f32 %v4506, %v4579
    %v4581 = vpop.f32.mrb[0].mxu0
    %4582 = vdwg.mxu0
    %vm4583 = vcmask 9216
    %4584 = vst.msk [vmem:[#allocation15] sm:$0x3] %vm4583, %v4580
    // Predicated region
    $region110: #{tpu_custom_call.1} parent=1 // pred_check
      _
    $region111: #{tpu_custom_call.1} parent=1 // pred_check_branch
      %4586 = sbr.rel (0) target = $region113
    $region112: #{tpu_custom_call.1} parent=1 // pred_region
      %s4588 = ssub.s32 32, 32
      %4589 = vsyncadd [#allocation5], %s4588
      %s4591 = sshll.u32 [#allocation15], 4
      %s4592 = int_to_ptr.vmem [resolvable:$true] %s4591
      %4594 = dma.vmem_to_hbm [thread:$0]  %s4592, 32, %s20, [#allocation5]
    $region113: #{tpu_custom_call.1} parent=1 // pred_fallthru
      _
    // Predicated region
    $region114: #{tpu_custom_call.1} parent=1 // pred_check
      _
    $region115: #{tpu_custom_call.1} parent=1 // pred_check_branch
      %4596 = sbr.rel (0) target = $region117
    $region116: #{tpu_custom_call.1} parent=1 // pred_region
      %4597 = dma.done [#allocation5], 32
    $region117: #{tpu_custom_call.1} parent=1 // pred_fallthru
      _
    %4598 = vsyncpa [#allocation4], 1
    %4599 = vsyncpa [#allocation7], 1
    %4600 = vsyncpa [#allocation10], 1
    %4601 = vsyncpa [#allocation13], 1
    %4602 = vsyncpa [#allocation5], 1

</llo_original>
